<compile_context>
chip_gen: v7x
topology: tpu7x:2x2x1
jax: 0.10.0
libtpu: 0.0.40
codegen_flags: <defaults>
</compile_context>

<pallas_src>
import functools

import jax
import jax.numpy as jnp
import numpy as np
from jax import lax
from jax.experimental import pallas as pl
from jax.experimental.pallas import tpu as pltpu


# --------------------------------------------------------------------------
# In-kernel helpers
# --------------------------------------------------------------------------
def _welford_accumulate(vals, valid, n_b, n_a, mean_ref, m2_ref):
    """Merge this tile's per-channel (mean, M2) partials into the resident
    (1, H) accumulators using the Chan/Welford parallel-combine formula."""
    if valid is None:
        mean_b = jnp.sum(vals, axis=0, keepdims=True) / n_b
        d = vals - mean_b
    else:
        mean_b = jnp.sum(jnp.where(valid, vals, 0.0), axis=0, keepdims=True) / n_b
        d = jnp.where(valid, vals - mean_b, 0.0)
    m2_b = jnp.sum(d * d, axis=0, keepdims=True)
    n_ab = n_a + n_b
    delta = mean_b - mean_ref[...]
    mean_ref[...] += delta * (n_b / n_ab)
    m2_ref[...] += m2_b + delta * delta * (n_a * n_b / n_ab)


# --------------------------------------------------------------------------
# Kernels (tiled 3-pass path)
# --------------------------------------------------------------------------
def _pointwise_prelu_stats_kernel(x_ref, w_ref, b_ref, a_ref,
                                  y_ref, mean_ref, m2_ref, *,
                                  t_tile, t_total, n_inner, mask_tail,
                                  mxu_dtype):
    """y1 = PReLU(x^T @ W1 + b1); accumulate per-core per-channel Welford stats."""
    j = pl.program_id(1)
    i = pl.program_id(0) * n_inner + j

    @pl.when(j == 0)
    def _():
        mean_ref[...] = jnp.zeros_like(mean_ref)
        m2_ref[...] = jnp.zeros_like(m2_ref)

    # (Cin, t_tile) x (Cin, H) -> (t_tile, H): channels contract on the
    # sublane axis of the native-layout x tile (no wrapper transpose).
    y = lax.dot_general(x_ref[...].astype(mxu_dtype), w_ref[...],
                        (((0,), (0,)), ((), ())),
                        preferred_element_type=jnp.float32)
    y = y + b_ref[...]
    y = jnp.where(y > 0, y, y * a_ref[...])          # PReLU (single alpha)
    y_ref[...] = y.astype(y_ref.dtype)

    if mask_tail:
        row = i * t_tile + lax.broadcasted_iota(jnp.int32, y.shape, 0)
        valid = row < t_total
        n_b = jnp.minimum(t_tile, t_total - i * t_tile).astype(jnp.float32)
    else:
        valid = None
        n_b = jnp.float32(t_tile)
    _welford_accumulate(y, valid, n_b, (j * t_tile).astype(jnp.float32),
                        mean_ref, m2_ref)


def _depthwise_prelu_stats_kernel(yc_ref, yl_ref, yr_ref, sc_ref, sh_ref,
                                  wd_ref, bd_ref, a_ref,
                                  y_ref, mean_ref, m2_ref, *,
                                  ksize, dilation, pad_left, hb,
                                  t_tile, t_total, n_inner, mask_tail):
    """norm1 (precomputed affine) -> depthwise conv along T -> PReLU -> stats."""
    j = pl.program_id(1)
    i = pl.program_id(0) * n_inner + j

    @pl.when(j == 0)
    def _():
        mean_ref[...] = jnp.zeros_like(mean_ref)
        m2_ref[...] = jnp.zeros_like(m2_ref)

    sc = sc_ref[...]
    sh = sh_ref[...]

    cur = yc_ref[...].astype(jnp.float32) * sc + sh   # GroupNorm1 as affine
    if mask_tail:
        row = i * t_tile + lax.broadcasted_iota(jnp.int32, cur.shape, 0)
        valid = row < t_total
        cur = jnp.where(valid, cur, 0.0)              # tail rows == conv zero pad
        n_b = jnp.minimum(t_tile, t_total - i * t_tile).astype(jnp.float32)
    else:
        valid = None
        n_b = jnp.float32(t_tile)

    # Left halo: semantic rows [i*t_tile - hb, i*t_tile); all are the conv's
    # zero padding (of the *normalized* signal) when i == 0.
    lh = yl_ref[...].astype(jnp.float32) * sc + sh
    lh = jnp.where(i > 0, lh, 0.0)
    # Right halo: semantic rows [(i+1)*t_tile, (i+1)*t_tile + hb).
    rh = yr_ref[...].astype(jnp.float32) * sc + sh
    rrow = (i + 1) * t_tile + lax.broadcasted_iota(jnp.int32, rh.shape, 0)
    rh = jnp.where(rrow < t_total, rh, 0.0)

    ext = jnp.concatenate([lh, cur, rh], axis=0)      # (hb + t_tile + hb, H)
    base = hb - pad_left
    # Depthwise conv: K sublane-shifted VPU multiply-adds (groups == channels,
    # so the MXU would run at ~1/H utilization -- keep it on the VPU).
    z = ext[base:base + t_tile] * wd_ref[0:1, :]
    for k in range(1, ksize):
        o = base + k * dilation
        z = z + ext[o:o + t_tile] * wd_ref[k:k + 1, :]
    z = z + bd_ref[...]
    z = jnp.where(z > 0, z, z * a_ref[...])           # PReLU
    y_ref[...] = z.astype(y_ref.dtype)

    _welford_accumulate(z, valid, n_b, (j * t_tile).astype(jnp.float32),
                        mean_ref, m2_ref)


def _pointwise_residual_kernel(*refs, use_skip, mxu_dtype):
    """Final 1x1 conv (GroupNorm2 already folded into W/b) -> optional residual."""
    if use_skip:
        y_ref, w_ref, b_ref, x_ref, out_ref = refs
    else:
        y_ref, w_ref, b_ref, out_ref = refs
    # (Cout, H) x (t_tile, H)^T -> (Cout, t_tile): time lands on lanes
    # (lane-dense output store).
    out = lax.dot_general(w_ref[...], y_ref[...].astype(mxu_dtype),
                          (((1,), (1,)), ((), ())),
                          preferred_element_type=jnp.float32)
    out = out + b_ref[...]
    if use_skip:
        out = out + x_ref[...].astype(jnp.float32)
    out_ref[...] = out.astype(out_ref.dtype)


# --------------------------------------------------------------------------
# Fused fully-resident kernel (fast path for small T)
# --------------------------------------------------------------------------
def _fused_kernel(x_ref, w1_ref, b1_ref, a1_ref, g1_ref, be1_ref,
                  wd_ref, bd_ref, a2_ref, g2_ref, be2_ref, ws_ref, bs_ref,
                  out_ref, *, ksize, dilation, pad_left, pad_right, eps,
                  use_skip, mxu_dtype):
    x = x_ref[...]
    t_total = x.shape[1]
    hid = w1_ref.shape[1]

    y = lax.dot_general(x.astype(mxu_dtype), w1_ref[...],
                        (((0,), (0,)), ((), ())),
                        preferred_element_type=jnp.float32)       # (T, H)
    y = y + b1_ref[...]
    y = jnp.where(y > 0, y, y * a1_ref[...])
    mu = jnp.mean(y)
    var = jnp.mean((y - mu) ** 2)
    y = (y - mu) * lax.rsqrt(var + eps) * g1_ref[...] + be1_ref[...]

    pieces = []
    if pad_left:
        pieces.append(jnp.zeros((pad_left, hid), jnp.float32))
    pieces.append(y)
    if pad_right:
        pieces.append(jnp.zeros((pad_right, hid), jnp.float32))
    yp = jnp.concatenate(pieces, axis=0) if len(pieces) > 1 else y

    z = yp[0:t_total] * wd_ref[0:1, :]
    for k in range(1, ksize):
        o = k * dilation
        z = z + yp[o:o + t_total] * wd_ref[k:k + 1, :]
    z = z + bd_ref[...]
    z = jnp.where(z > 0, z, z * a2_ref[...])
    mu2 = jnp.mean(z)
    var2 = jnp.mean((z - mu2) ** 2)
    z = (z - mu2) * lax.rsqrt(var2 + eps) * g2_ref[...] + be2_ref[...]

    out = lax.dot_general(ws_ref[...], z.astype(mxu_dtype),
                          (((1,), (1,)), ((), ())),
                          preferred_element_type=jnp.float32)     # (Cout, T)
    out = out + bs_ref[...]
    if use_skip:
        out = out + x.astype(jnp.float32)
    out_ref[...] = out.astype(out_ref.dtype)


# --------------------------------------------------------------------------
# Wrapper
# --------------------------------------------------------------------------
def _stats_to_affine(mean_p, m2_p, counts, gamma, beta, eps):
    """Combine per-core per-channel (mean, M2, count) partials (Chan) and turn
    GroupNorm(num_groups=1) statistics into a per-channel affine (scale, shift)."""
    mean = mean_p[0].astype(jnp.float32)              # (1, H)
    m2 = m2_p[0].astype(jnp.float32)
    n = float(counts[0])
    for p in range(1, mean_p.shape[0]):
        n_b = float(counts[p])
        delta = mean_p[p].astype(jnp.float32) - mean
        n_new = n + n_b
        mean = mean + delta * (n_b / n_new)
        m2 = m2 + m2_p[p].astype(jnp.float32) + delta * delta * (n * n_b / n_new)
        n = n_new
    var_c = m2 / n                                    # per-channel biased var
    mu = jnp.mean(mean)                               # global mean over (C, T)
    var = jnp.mean(var_c + (mean - mu) ** 2)          # global var over (C, T)
    inv = lax.rsqrt(var + jnp.float32(eps))
    scale = gamma.astype(jnp.float32).reshape(1, -1) * inv
    shift = beta.astype(jnp.float32).reshape(1, -1) - mu * scale
    return scale, shift


def stcn_block(x, params, *, kernel_size=3, dilation=1, causal=False,
               use_skip_connection=True, eps=1e-8, t_tile_cap=512,
               use_bf16=True, force_tiled=False,
               fused_vmem_budget=12 * 1024 * 1024):
    """Forward pass of STCNBlock.

    x: (C_in, T)  -- the module's documented "[channels, T]" layout.
    returns: (C_out, T)
    """
    # TODO(synk): batched (N, C, T) input would add a leading grid axis; only
    # the module's documented unbatched [C, T] layout is implemented here.
    w1, b1, a1 = params["w1"], params["b1"], params["a1"]
    g1, be1 = params["g1"], params["be1"]
    wd, bd, a2 = params["wd"], params["bd"], params["a2"]
    g2, be2 = params["g2"], params["be2"]
    ws, bs = params["ws"], params["bs"]

    cin, t_total = x.shape
    hid = w1.shape[0]
    cout = ws.shape[0]
    if use_skip_connection and cin != cout:
        raise ValueError("skip connection requires in_channels == out_channels")

    if causal:
        pad_left, pad_right = dilation * (kernel_size - 1), 0
    else:
        if (dilation * (kernel_size - 1)) % 2 != 0:
            # TODO(synk): PyTorch's non-causal path changes the length when
            # dilation*(k-1) is odd; only the length-preserving case is implemented.
            raise NotImplementedError(
                "non-causal path requires dilation*(kernel_size-1) to be even")
        pad_left = dilation * (kernel_size - 1) // 2
        pad_right = dilation * (kernel_size - 1) - pad_left

    f32 = jnp.float32
    mxu_dtype = jnp.bfloat16 if use_bf16 else f32     # MXU operands
    inter_dtype = jnp.bfloat16 if use_bf16 else f32   # HBM intermediates

    x = x.astype(f32)
    out_dtype = x.dtype
    w1_k = jnp.transpose(w1, (1, 0)).astype(mxu_dtype)   # (Cin, H)
    wd_k = jnp.transpose(wd, (1, 0)).astype(f32)          # (K, H) - VPU, keep f32
    b1_k = b1.reshape(1, hid).astype(f32)
    bd_k = bd.reshape(1, hid).astype(f32)
    a1_k = jnp.reshape(a1, (1, 1)).astype(f32)
    a2_k = jnp.reshape(a2, (1, 1)).astype(f32)
    ws_f = ws.astype(f32)                                  # (Cout, H)
    bs_k = bs.reshape(cout, 1).astype(f32)

    # ---- fused fast path: everything resident in VMEM for small T ---------
    est_bytes = 4 * t_total * (cin + cout + 6 * hid)
    if (not force_tiled) and est_bytes <= fused_vmem_budget:
        kernel = functools.partial(
            _fused_kernel, ksize=kernel_size, dilation=dilation,
            pad_left=pad_left, pad_right=pad_right, eps=eps,
            use_skip=use_skip_connection, mxu_dtype=mxu_dtype)
        return pl.pallas_call(
            kernel,
            out_shape=jax.ShapeDtypeStruct((cout, t_total), out_dtype),
        )(x, w1_k, b1_k, a1_k,
          g1.reshape(1, hid).astype(f32), be1.reshape(1, hid).astype(f32),
          wd_k, bd_k, a2_k,
          g2.reshape(1, hid).astype(f32), be2.reshape(1, hid).astype(f32),
          ws_f.astype(mxu_dtype), bs_k)

    # ---- tiled 3-pass pipeline --------------------------------------------
    if t_total <= t_tile_cap:
        t_tile = t_total
    else:
        t_tile = max(128, (t_tile_cap // 128) * 128)   # lane-aligned time tile
    n_tiles = pl.cdiv(t_total, t_tile)
    t_pad = n_tiles * t_tile
    mask_tail = (t_total % t_tile) != 0

    # Megacore (v7x): split the sequential stats passes across 2 TensorCores
    # when the tile count splits evenly; partials combined in the wrapper.
    num_par = 2 if (n_tiles % 2 == 0 and n_tiles >= 2) else 1
    n_inner = n_tiles // num_par

    # Depthwise-conv halo: one hb-row aligned neighbor block per side.
    halo = max(pad_left, pad_right, 1)
    hb = 8
    while hb < halo:
        hb *= 2
    if hb > 128:
        raise NotImplementedError("receptive-field halo larger than supported")
    n_hb = pl.cdiv(t_pad, hb)

    tile_idx = lambda p, j: (p * n_inner + j, 0)
    xcol_idx = lambda p, j: (0, p * n_inner + j)
    const2 = lambda p, j: (0, 0)
    stat_idx = lambda p, j: (p, 0, 0)
    lhalo_idx = lambda p, j: (
        jnp.maximum((p * n_inner + j) * (t_tile // hb) - 1, 0), 0)
    rhalo_idx = lambda p, j: (
        jnp.minimum((p * n_inner + j + 1) * (t_tile // hb), n_hb - 1), 0)

    counts = [min((p + 1) * n_inner * t_tile, t_total) - p * n_inner * t_tile
              for p in range(num_par)]

    # ---- pass A: 1x1 conv + PReLU + per-channel partial stats --------------
    kernel_a = functools.partial(
        _pointwise_prelu_stats_kernel, t_tile=t_tile, t_total=t_total,
        n_inner=n_inner, mask_tail=mask_tail, mxu_dtype=mxu_dtype)
    y1, mean1, m21 = pl.pallas_call(
        kernel_a,
        grid=(num_par, n_inner),
        in_specs=[
            pl.BlockSpec((cin, t_tile), xcol_idx),
            pl.BlockSpec((cin, hid), const2),
            pl.BlockSpec((1, hid), const2),
            pl.BlockSpec((1, 1), const2),
        ],
        out_specs=(
            pl.BlockSpec((t_tile, hid), tile_idx),
            pl.BlockSpec((None, 1, hid), stat_idx),
            pl.BlockSpec((None, 1, hid), stat_idx),
        ),
        out_shape=(
            jax.ShapeDtypeStruct((t_pad, hid), inter_dtype),
            jax.ShapeDtypeStruct((num_par, 1, hid), f32),
            jax.ShapeDtypeStruct((num_par, 1, hid), f32),
        ),
        compiler_params=pltpu.CompilerParams(
            dimension_semantics=("parallel", "arbitrary")),
    )(x, w1_k, b1_k, a1_k)

    scale1, shift1 = _stats_to_affine(mean1, m21, counts, g1, be1, eps)

    # ---- pass B: norm1 + depthwise conv + PReLU + partial stats ------------
    kernel_b = functools.partial(
        _depthwise_prelu_stats_kernel, ksize=kernel_size, dilation=dilation,
        pad_left=pad_left, hb=hb, t_tile=t_tile, t_total=t_total,
        n_inner=n_inner, mask_tail=mask_tail)
    y2, mean2, m22 = pl.pallas_call(
        kernel_b,
        grid=(num_par, n_inner),
        in_specs=[
            pl.BlockSpec((t_tile, hid), tile_idx),     # current tile of y1
            pl.BlockSpec((hb, hid), lhalo_idx),        # left halo rows
            pl.BlockSpec((hb, hid), rhalo_idx),        # right halo rows
            pl.BlockSpec((1, hid), const2),
            pl.BlockSpec((1, hid), const2),
            pl.BlockSpec((kernel_size, hid), const2),
            pl.BlockSpec((1, hid), const2),
            pl.BlockSpec((1, 1), const2),
        ],
        out_specs=(
            pl.BlockSpec((t_tile, hid), tile_idx),
            pl.BlockSpec((None, 1, hid), stat_idx),
            pl.BlockSpec((None, 1, hid), stat_idx),
        ),
        out_shape=(
            jax.ShapeDtypeStruct((t_pad, hid), inter_dtype),
            jax.ShapeDtypeStruct((num_par, 1, hid), f32),
            jax.ShapeDtypeStruct((num_par, 1, hid), f32),
        ),
        compiler_params=pltpu.CompilerParams(
            dimension_semantics=("parallel", "arbitrary")),
    )(y1, y1, y1, scale1, shift1, wd_k, bd_k, a2_k)

    scale2, shift2 = _stats_to_affine(mean2, m22, counts, g2, be2, eps)
    # Fold GroupNorm2's per-channel affine into the final 1x1 conv (exact).
    ws_eff = (ws_f * scale2).astype(mxu_dtype)               # (Cout, H)
    bs_eff = bs_k + ws_f @ shift2.reshape(hid, 1)            # (Cout, 1)

    # ---- pass C: (folded norm2 +) 1x1 conv + optional residual -------------
    kernel_c = functools.partial(_pointwise_residual_kernel,
                                 use_skip=use_skip_connection,
                                 mxu_dtype=mxu_dtype)
    in_specs_c = [
        pl.BlockSpec((t_tile, hid), lambda i: (i, 0)),
        pl.BlockSpec((cout, hid), lambda i: (0, 0)),
        pl.BlockSpec((cout, 1), lambda i: (0, 0)),
    ]
    args_c = [y2, ws_eff, bs_eff]
    if use_skip_connection:
        in_specs_c.append(pl.BlockSpec((cin, t_tile), lambda i: (0, i)))
        args_c.append(x)
    out = pl.pallas_call(
        kernel_c,
        grid=(n_tiles,),
        in_specs=in_specs_c,
        out_specs=pl.BlockSpec((cout, t_tile), lambda i: (0, i)),
        out_shape=jax.ShapeDtypeStruct((cout, t_total), out_dtype),
        compiler_params=pltpu.CompilerParams(
            dimension_semantics=("parallel",)),
    )(*args_c)
    return out


# --------------------------------------------------------------------------
# NumPy reference (PyTorch semantics) + self-test
# --------------------------------------------------------------------------
def _reference_numpy(x, p, *, kernel_size, dilation, causal, use_skip, eps=1e-8):
    x = np.asarray(x, np.float64)
    w1 = np.asarray(p["w1"], np.float64); b1 = np.asarray(p["b1"], np.float64)
    a1 = float(p["a1"])
    g1 = np.asarray(p["g1"], np.float64); be1 = np.asarray(p["be1"], np.float64)
    wd = np.asarray(p["wd"], np.float64); bd = np.asarray(p["bd"], np.float64)
    a2 = float(p["a2"])
    g2 = np.asarray(p["g2"], np.float64); be2 = np.asarray(p["be2"], np.float64)
    ws = np.asarray(p["ws"], np.float64); bs = np.asarray(p["bs"], np.float64)

    cin, T = x.shape
    H = w1.shape[0]

    y = w1 @ x + b1[:, None]                           # conv1x1
    y = np.where(y > 0, y, a1 * y)                     # prelu1
    m, v = y.mean(), y.var()                           # GroupNorm(1, H)
    y = (y - m) / np.sqrt(v + eps) * g1[:, None] + be1[:, None]

    pad = dilation * (kernel_size - 1) if causal else dilation * (kernel_size - 1) // 2
    yp = np.pad(y, ((0, 0), (pad, pad)))
    L = T + 2 * pad - dilation * (kernel_size - 1)
    z = np.zeros((H, L))
    for k in range(kernel_size):                       # depthwise conv
        z += wd[:, k:k + 1] * yp[:, k * dilation:k * dilation + L]
    z += bd[:, None]
    if causal:
        z = z[:, :T]                                   # y[:, :, :-padding]
    z = np.where(z > 0, z, a2 * z)                     # prelu2
    m2, v2 = z.mean(), z.var()                         # GroupNorm(1, H)
    z = (z - m2) / np.sqrt(v2 + eps) * g2[:, None] + be2[:, None]
    out = ws @ z + bs[:, None]                         # sconv
    if use_skip:
        out = out + x
    return out


def _make_params(key, cin, hid, cout, ksize):
    ks = jax.random.split(key, 10)
    return {
        "w1": 0.1 * jax.random.normal(ks[0], (hid, cin), jnp.float32),
        "b1": 0.1 * jax.random.normal(ks[1], (hid,), jnp.float32),
        "a1": jnp.float32(0.25),
        "g1": 1.0 + 0.1 * jax.random.normal(ks[2], (hid,), jnp.float32),
        "be1": 0.1 * jax.random.normal(ks[3], (hid,), jnp.float32),
        "wd": 0.3 * jax.random.normal(ks[4], (hid, ksize), jnp.float32),
        "bd": 0.1 * jax.random.normal(ks[5], (hid,), jnp.float32),
        "a2": jnp.float32(0.2),
        "g2": 1.0 + 0.1 * jax.random.normal(ks[6], (hid,), jnp.float32),
        "be2": 0.1 * jax.random.normal(ks[7], (hid,), jnp.float32),
        "ws": 0.1 * jax.random.normal(ks[8], (cout, hid), jnp.float32),
        "bs": 0.1 * jax.random.normal(ks[9], (cout,), jnp.float32),
    }


if __name__ == "__main__":
    key = jax.random.PRNGKey(0)
    k_pa, k_pb, k_xa, k_xb = jax.random.split(key, 4)

    # Config A: non-causal, residual, two time tiles (exercises halo views,
    # the 2-way megacore stats split, fused path, and both dtype modes).
    cin = cout = 64; hid = 128; T = 1024; ksize, dil = 3, 1
    x = jax.random.normal(k_xa, (cin, T), jnp.float32)
    params = _make_params(k_pa, cin, hid, cout, ksize)
    ref = _reference_numpy(x, params, kernel_size=ksize, dilation=dil,
                           causal=False, use_skip=True)

    run_f32 = jax.jit(functools.partial(
        stcn_block, kernel_size=ksize, dilation=dil, causal=False,
        use_skip_connection=True, use_bf16=False, force_tiled=True))
    out = jax.block_until_ready(run_f32(x, params))
    assert out.shape == (cout, T), out.shape
    np.testing.assert_allclose(np.asarray(out), ref, rtol=1e-3, atol=1e-3)

    run_bf16 = jax.jit(functools.partial(
        stcn_block, kernel_size=ksize, dilation=dil, causal=False,
        use_skip_connection=True, use_bf16=True, force_tiled=True))
    out_bf16 = jax.block_until_ready(run_bf16(x, params))
    np.testing.assert_allclose(np.asarray(out_bf16), ref, rtol=6e-2, atol=6e-2)

    run_fused = jax.jit(functools.partial(
        stcn_block, kernel_size=ksize, dilation=dil, causal=False,
        use_skip_connection=True, use_bf16=False))
    out_fused = jax.block_until_ready(run_fused(x, params))
    np.testing.assert_allclose(np.asarray(out_fused), ref, rtol=1e-3, atol=1e-3)

    # Config B: causal, dilated, no residual, T not a multiple of the time
    # tile (exercises the masked tail, odd tile count, cin != cout).
    cin_b, hid_b, cout_b, T_b = 48, 128, 80, 1250
    ksize_b, dil_b = 3, 2
    x_b = jax.random.normal(k_xb, (cin_b, T_b), jnp.float32)
    params_b = _make_params(k_pb, cin_b, hid_b, cout_b, ksize_b)
    ref_b = _reference_numpy(x_b, params_b, kernel_size=ksize_b, dilation=dil_b,
                             causal=True, use_skip=False)
    run_b = jax.jit(functools.partial(
        stcn_block, kernel_size=ksize_b, dilation=dil_b, causal=True,
        use_skip_connection=False, use_bf16=False, force_tiled=True))
    out_b = jax.block_until_ready(run_b(x_b, params_b))
    assert out_b.shape == (cout_b, T_b), out_b.shape
    np.testing.assert_allclose(np.asarray(out_b), ref_b, rtol=1e-3, atol=1e-3)

    print("KERNEL_OK")
</pallas_src>

<mosaic_0001>
module attributes {stable_mosaic.version = 11 : i64} {
  func.func @_pointwise_prelu_stats_kernel(%arg0: i32, %arg1: i32, %arg2: memref<64x512xf32, #tpu.memory_space<vmem>>, %arg3: memref<64x128xf32, #tpu.memory_space<vmem>>, %arg4: memref<1x128xf32, #tpu.memory_space<vmem>>, %arg5: memref<1x1xf32, #tpu.memory_space<vmem>>, %arg6: memref<512x128xf32, #tpu.memory_space<vmem>>, %arg7: memref<1x1x128xf32, #tpu.memory_space<vmem>>, %arg8: memref<1x1x128xf32, #tpu.memory_space<vmem>>) attributes {dimension_semantics = [#tpu.dimension_semantics<parallel>, #tpu.dimension_semantics<arbitrary>], iteration_bounds = array<i64: 2, 1>, scalar_prefetch = 0 : i64, scratch_operands = 0 : i64, tpu.core_type = #tpu.core_type<tc>, window_params = [{transform_indices = @transform_0, window_bounds = array<i64: 64, 512>}, {pipeline_mode = #tpu.pipeline_mode<synchronous>, transform_indices = @transform_1, window_bounds = array<i64: 64, 128>}, {pipeline_mode = #tpu.pipeline_mode<synchronous>, transform_indices = @transform_2, window_bounds = array<i64: 1, 128>}, {pipeline_mode = #tpu.pipeline_mode<synchronous>, transform_indices = @transform_3, window_bounds = array<i64: 1, 1>}, {transform_indices = @transform_4, window_bounds = array<i64: 512, 128>}, {transform_indices = @transform_5, window_bounds = array<i64: 1, 1, 128>}, {transform_indices = @transform_6, window_bounds = array<i64: 1, 1, 128>}]} {
    %c0_i32 = arith.constant 0 : i32
    %0 = arith.cmpi eq, %arg1, %c0_i32 : i32
    %1 = arith.extui %0 : i1 to i32
    %c0_i32_0 = arith.constant 0 : i32
    %2 = arith.cmpi ne, %1, %c0_i32_0 : i32
    scf.if %2 {
      %cst_32 = arith.constant 0.000000e+00 : f32
      %52 = vector.broadcast %cst_32 : f32 to vector<1x128xf32>
      %c0_33 = arith.constant 0 : index
      %c0_34 = arith.constant 0 : index
      %c0_35 = arith.constant 0 : index
      %53 = vector.load %arg7[%c0_33, %c0_34, %c0_35] : memref<1x1x128xf32, #tpu.memory_space<vmem>>, vector<1x1x128xf32>
      %54 = vector.shape_cast %53 : vector<1x1x128xf32> to vector<1x128xf32>
      %55 = vector.shape_cast %52 : vector<1x128xf32> to vector<1x1x128xf32>
      tpu.vector_store %arg7[%c0_33, %c0_34, %c0_35], %55 {strides = array<i32>} : memref<1x1x128xf32, #tpu.memory_space<vmem>>, vector<1x1x128xf32>,
      %cst_36 = arith.constant 0.000000e+00 : f32
      %56 = vector.broadcast %cst_36 : f32 to vector<1x128xf32>
      %c0_37 = arith.constant 0 : index
      %c0_38 = arith.constant 0 : index
      %c0_39 = arith.constant 0 : index
      %57 = vector.load %arg8[%c0_37, %c0_38, %c0_39] : memref<1x1x128xf32, #tpu.memory_space<vmem>>, vector<1x1x128xf32>
      %58 = vector.shape_cast %57 : vector<1x1x128xf32> to vector<1x128xf32>
      %59 = vector.shape_cast %56 : vector<1x128xf32> to vector<1x1x128xf32>
      tpu.vector_store %arg8[%c0_37, %c0_38, %c0_39], %59 {strides = array<i32>} : memref<1x1x128xf32, #tpu.memory_space<vmem>>, vector<1x1x128xf32>,
    } else {
    }
    %c0 = arith.constant 0 : index
    %c0_1 = arith.constant 0 : index
    %3 = vector.load %arg2[%c0, %c0_1] : memref<64x512xf32, #tpu.memory_space<vmem>>, vector<64x512xf32>
    %c0_2 = arith.constant 0 : index
    %c0_3 = arith.constant 0 : index
    %4 = vector.load %arg3[%c0_2, %c0_3] : memref<64x128xf32, #tpu.memory_space<vmem>>, vector<64x128xf32>
    %cst = arith.constant dense<0.000000e+00> : vector<512x128xf32>
    %5 = tpu.matmul %3, %4, %cst {dimension_numbers = #tpu.dot_dimension_numbers<[0], [0], [1], [1], [0, 1, 1, 1], [], []>} : vector<64x512xf32>, vector<64x128xf32>, vector<512x128xf32> -> vector<512x128xf32>
    %c0_4 = arith.constant 0 : index
    %c0_5 = arith.constant 0 : index
    %6 = vector.load %arg4[%c0_4, %c0_5] : memref<1x128xf32, #tpu.memory_space<vmem>>, vector<1x128xf32>
    %7 = vector.broadcast %6 : vector<1x128xf32> to vector<512x128xf32>
    %8 = arith.addf %5, %7 : vector<512x128xf32>
    %cst_6 = arith.constant 0.000000e+00 : f32
    %9 = vector.broadcast %cst_6 : f32 to vector<512x128xf32>
    %10 = arith.cmpf ogt, %8, %9 : vector<512x128xf32>
    %c0_7 = arith.constant 0 : index
    %c0_8 = arith.constant 0 : index
    %11 = vector.load %arg5[%c0_7, %c0_8] : memref<1x1xf32, #tpu.memory_space<vmem>>, vector<1x1xf32>
    %12 = vector.broadcast %11 : vector<1x1xf32> to vector<512x128xf32>
    %13 = arith.mulf %8, %12 : vector<512x128xf32>
    %14 = arith.select %10, %8, %13 : vector<512x128xi1>, vector<512x128xf32>
    %c0_9 = arith.constant 0 : index
    %c0_10 = arith.constant 0 : index
    %15 = vector.load %arg6[%c0_9, %c0_10] : memref<512x128xf32, #tpu.memory_space<vmem>>, vector<512x128xf32>
    tpu.vector_store %arg6[%c0_9, %c0_10], %14 {strides = array<i32>} : memref<512x128xf32, #tpu.memory_space<vmem>>, vector<512x128xf32>,
    %c512_i32 = arith.constant 512 : i32
    %16 = arith.muli %arg1, %c512_i32 : i32
    %17 = arith.sitofp %16 : i32 to f32
    %cst_11 = arith.constant dense<0.000000e+00> : vector<128xf32>
    %18 = vector.multi_reduction <add>, %14, %cst_11 [0] : vector<512x128xf32> to vector<128xf32>
    %19 = vector.shape_cast %18 : vector<128xf32> to vector<1x128xf32>
    %cst_12 = arith.constant 5.120000e+02 : f32
    %20 = vector.broadcast %cst_12 : f32 to vector<1x128xf32>
    %21 = arith.divf %19, %20 : vector<1x128xf32>
    %22 = vector.broadcast %21 : vector<1x128xf32> to vector<512x128xf32>
    %23 = arith.subf %14, %22 : vector<512x128xf32>
    %24 = arith.mulf %23, %23 : vector<512x128xf32>
    %cst_13 = arith.constant dense<0.000000e+00> : vector<128xf32>
    %25 = vector.multi_reduction <add>, %24, %cst_13 [0] : vector<512x128xf32> to vector<128xf32>
    %26 = vector.shape_cast %25 : vector<128xf32> to vector<1x128xf32>
    %cst_14 = arith.constant 5.120000e+02 : f32
    %27 = arith.addf %17, %cst_14 : f32
    %c0_15 = arith.constant 0 : index
    %c0_16 = arith.constant 0 : index
    %c0_17 = arith.constant 0 : index
    %28 = vector.load %arg7[%c0_15, %c0_16, %c0_17] : memref<1x1x128xf32, #tpu.memory_space<vmem>>, vector<1x1x128xf32>
    %29 = vector.shape_cast %28 : vector<1x1x128xf32> to vector<1x128xf32>
    %30 = arith.subf %21, %29 : vector<1x128xf32>
    %c0_18 = arith.constant 0 : index
    %c0_19 = arith.constant 0 : index
    %c0_20 = arith.constant 0 : index
    %31 = vector.load %arg7[%c0_18, %c0_19, %c0_20] : memref<1x1x128xf32, #tpu.memory_space<vmem>>, vector<1x1x128xf32>
    %32 = vector.shape_cast %31 : vector<1x1x128xf32> to vector<1x128xf32>
    %cst_21 = arith.constant 5.120000e+02 : f32
    %33 = arith.divf %cst_21, %27 : f32
    %34 = vector.broadcast %33 : f32 to vector<1x128xf32>
    %35 = arith.mulf %30, %34 : vector<1x128xf32>
    %36 = arith.addf %32, %35 : vector<1x128xf32>
    %c0_22 = arith.constant 0 : index
    %c0_23 = arith.constant 0 : index
    %c0_24 = arith.constant 0 : index
    %37 = vector.load %arg7[%c0_22, %c0_23, %c0_24] : memref<1x1x128xf32, #tpu.memory_space<vmem>>, vector<1x1x128xf32>
    %38 = vector.shape_cast %37 : vector<1x1x128xf32> to vector<1x128xf32>
    %39 = vector.shape_cast %36 : vector<1x128xf32> to vector<1x1x128xf32>
    tpu.vector_store %arg7[%c0_22, %c0_23, %c0_24], %39 {strides = array<i32>} : memref<1x1x128xf32, #tpu.memory_space<vmem>>, vector<1x1x128xf32>,
    %c0_25 = arith.constant 0 : index
    %c0_26 = arith.constant 0 : index
    %c0_27 = arith.constant 0 : index
    %40 = vector.load %arg8[%c0_25, %c0_26, %c0_27] : memref<1x1x128xf32, #tpu.memory_space<vmem>>, vector<1x1x128xf32>
    %41 = vector.shape_cast %40 : vector<1x1x128xf32> to vector<1x128xf32>
    %42 = arith.mulf %30, %30 : vector<1x128xf32>
    %cst_28 = arith.constant 5.120000e+02 : f32
    %43 = arith.mulf %17, %cst_28 : f32
    %44 = arith.divf %43, %27 : f32
    %45 = vector.broadcast %44 : f32 to vector<1x128xf32>
    %46 = arith.mulf %42, %45 : vector<1x128xf32>
    %47 = arith.addf %26, %46 : vector<1x128xf32>
    %48 = arith.addf %41, %47 : vector<1x128xf32>
    %c0_29 = arith.constant 0 : index
    %c0_30 = arith.constant 0 : index
    %c0_31 = arith.constant 0 : index
    %49 = vector.load %arg8[%c0_29, %c0_30, %c0_31] : memref<1x1x128xf32, #tpu.memory_space<vmem>>, vector<1x1x128xf32>
    %50 = vector.shape_cast %49 : vector<1x1x128xf32> to vector<1x128xf32>
    %51 = vector.shape_cast %48 : vector<1x128xf32> to vector<1x1x128xf32>
    tpu.vector_store %arg8[%c0_29, %c0_30, %c0_31], %51 {strides = array<i32>} : memref<1x1x128xf32, #tpu.memory_space<vmem>>, vector<1x1x128xf32>,
    return
  }
  func.func @transform_0(%arg0: i32, %arg1: i32) -> (i32, i32) {
    %c1_i32 = arith.constant 1 : i32
    %0 = arith.muli %arg0, %c1_i32 : i32
    %1 = arith.addi %0, %arg1 : i32
    %c0_i32 = arith.constant 0 : i32
    %c0_i32_0 = arith.constant 0 : i32
    return %c0_i32, %1 : i32, i32
  }
  func.func @transform_1(%arg0: i32, %arg1: i32) -> (i32, i32) {
    %c0_i32 = arith.constant 0 : i32
    %c0_i32_0 = arith.constant 0 : i32
    %c0_i32_1 = arith.constant 0 : i32
    return %c0_i32, %c0_i32_0 : i32, i32
  }
  func.func @transform_2(%arg0: i32, %arg1: i32) -> (i32, i32) {
    %c0_i32 = arith.constant 0 : i32
    %c0_i32_0 = arith.constant 0 : i32
    %c0_i32_1 = arith.constant 0 : i32
    return %c0_i32, %c0_i32_0 : i32, i32
  }
  func.func @transform_3(%arg0: i32, %arg1: i32) -> (i32, i32) {
    %c0_i32 = arith.constant 0 : i32
    %c0_i32_0 = arith.constant 0 : i32
    %c0_i32_1 = arith.constant 0 : i32
    return %c0_i32, %c0_i32_0 : i32, i32
  }
  func.func @transform_4(%arg0: i32, %arg1: i32) -> (i32, i32) {
    %c1_i32 = arith.constant 1 : i32
    %0 = arith.muli %arg0, %c1_i32 : i32
    %1 = arith.addi %0, %arg1 : i32
    %c0_i32 = arith.constant 0 : i32
    %c0_i32_0 = arith.constant 0 : i32
    return %1, %c0_i32 : i32, i32
  }
  func.func @transform_5(%arg0: i32, %arg1: i32) -> (i32, i32, i32) {
    %c0_i32 = arith.constant 0 : i32
    %c0_i32_0 = arith.constant 0 : i32
    %c0_i32_1 = arith.constant 0 : i32
    return %arg0, %c0_i32, %c0_i32_0 : i32, i32, i32
  }
  func.func @transform_6(%arg0: i32, %arg1: i32) -> (i32, i32, i32) {
    %c0_i32 = arith.constant 0 : i32
    %c0_i32_0 = arith.constant 0 : i32
    %c0_i32_1 = arith.constant 0 : i32
    return %arg0, %c0_i32, %c0_i32_0 : i32, i32, i32
  }
}

module attributes {stable_mosaic.version = 11 : i64} {
  func.func @_depthwise_prelu_stats_kernel(%arg0: i32, %arg1: i32, %arg2: memref<512x128xf32, #tpu.memory_space<vmem>>, %arg3: memref<8x128xf32, #tpu.memory_space<vmem>>, %arg4: memref<8x128xf32, #tpu.memory_space<vmem>>, %arg5: memref<1x128xf32, #tpu.memory_space<vmem>>, %arg6: memref<1x128xf32, #tpu.memory_space<vmem>>, %arg7: memref<3x128xf32, #tpu.memory_space<vmem>>, %arg8: memref<1x128xf32, #tpu.memory_space<vmem>>, %arg9: memref<1x1xf32, #tpu.memory_space<vmem>>, %arg10: memref<512x128xf32, #tpu.memory_space<vmem>>, %arg11: memref<1x1x128xf32, #tpu.memory_space<vmem>>, %arg12: memref<1x1x128xf32, #tpu.memory_space<vmem>>) attributes {dimension_semantics = [#tpu.dimension_semantics<parallel>, #tpu.dimension_semantics<arbitrary>], iteration_bounds = array<i64: 2, 1>, scalar_prefetch = 0 : i64, scratch_operands = 0 : i64, tpu.core_type = #tpu.core_type<tc>, window_params = [{transform_indices = @transform_0, window_bounds = array<i64: 512, 128>}, {transform_indices = @transform_1, window_bounds = array<i64: 8, 128>}, {transform_indices = @transform_2, window_bounds = array<i64: 8, 128>}, {pipeline_mode = #tpu.pipeline_mode<synchronous>, transform_indices = @transform_3, window_bounds = array<i64: 1, 128>}, {pipeline_mode = #tpu.pipeline_mode<synchronous>, transform_indices = @transform_4, window_bounds = array<i64: 1, 128>}, {pipeline_mode = #tpu.pipeline_mode<synchronous>, transform_indices = @transform_5, window_bounds = array<i64: 3, 128>}, {pipeline_mode = #tpu.pipeline_mode<synchronous>, transform_indices = @transform_6, window_bounds = array<i64: 1, 128>}, {pipeline_mode = #tpu.pipeline_mode<synchronous>, transform_indices = @transform_7, window_bounds = array<i64: 1, 1>}, {transform_indices = @transform_8, window_bounds = array<i64: 512, 128>}, {transform_indices = @transform_9, window_bounds = array<i64: 1, 1, 128>}, {transform_indices = @transform_10, window_bounds = array<i64: 1, 1, 128>}]} {
    %c1_i32 = arith.constant 1 : i32
    %0 = arith.muli %arg0, %c1_i32 : i32
    %1 = arith.addi %0, %arg1 : i32
    %c0_i32 = arith.constant 0 : i32
    %2 = arith.cmpi eq, %arg1, %c0_i32 : i32
    %3 = arith.extui %2 : i1 to i32
    %c0_i32_0 = arith.constant 0 : i32
    %4 = arith.cmpi ne, %3, %c0_i32_0 : i32
    scf.if %4 {
      %cst_46 = arith.constant 0.000000e+00 : f32
      %95 = vector.broadcast %cst_46 : f32 to vector<1x128xf32>
      %c0_47 = arith.constant 0 : index
      %c0_48 = arith.constant 0 : index
      %c0_49 = arith.constant 0 : index
      %96 = vector.load %arg11[%c0_47, %c0_48, %c0_49] : memref<1x1x128xf32, #tpu.memory_space<vmem>>, vector<1x1x128xf32>
      %97 = vector.shape_cast %96 : vector<1x1x128xf32> to vector<1x128xf32>
      %98 = vector.shape_cast %95 : vector<1x128xf32> to vector<1x1x128xf32>
      tpu.vector_store %arg11[%c0_47, %c0_48, %c0_49], %98 {strides = array<i32>} : memref<1x1x128xf32, #tpu.memory_space<vmem>>, vector<1x1x128xf32>,
      %cst_50 = arith.constant 0.000000e+00 : f32
      %99 = vector.broadcast %cst_50 : f32 to vector<1x128xf32>
      %c0_51 = arith.constant 0 : index
      %c0_52 = arith.constant 0 : index
      %c0_53 = arith.constant 0 : index
      %100 = vector.load %arg12[%c0_51, %c0_52, %c0_53] : memref<1x1x128xf32, #tpu.memory_space<vmem>>, vector<1x1x128xf32>
      %101 = vector.shape_cast %100 : vector<1x1x128xf32> to vector<1x128xf32>
      %102 = vector.shape_cast %99 : vector<1x128xf32> to vector<1x1x128xf32>
      tpu.vector_store %arg12[%c0_51, %c0_52, %c0_53], %102 {strides = array<i32>} : memref<1x1x128xf32, #tpu.memory_space<vmem>>, vector<1x1x128xf32>,
    } else {
    }
    %c0 = arith.constant 0 : index
    %c0_1 = arith.constant 0 : index
    %5 = vector.load %arg5[%c0, %c0_1] : memref<1x128xf32, #tpu.memory_space<vmem>>, vector<1x128xf32>
    %c0_2 = arith.constant 0 : index
    %c0_3 = arith.constant 0 : index
    %6 = vector.load %arg6[%c0_2, %c0_3] : memref<1x128xf32, #tpu.memory_space<vmem>>, vector<1x128xf32>
    %c0_4 = arith.constant 0 : index
    %c0_5 = arith.constant 0 : index
    %7 = vector.load %arg2[%c0_4, %c0_5] : memref<512x128xf32, #tpu.memory_space<vmem>>, vector<512x128xf32>
    %8 = vector.broadcast %5 : vector<1x128xf32> to vector<512x128xf32>
    %9 = arith.mulf %7, %8 : vector<512x128xf32>
    %10 = vector.broadcast %6 : vector<1x128xf32> to vector<512x128xf32>
    %11 = arith.addf %9, %10 : vector<512x128xf32>
    %c0_6 = arith.constant 0 : index
    %c0_7 = arith.constant 0 : index
    %12 = vector.load %arg3[%c0_6, %c0_7] : memref<8x128xf32, #tpu.memory_space<vmem>>, vector<8x128xf32>
    %13 = vector.broadcast %5 : vector<1x128xf32> to vector<8x128xf32>
    %14 = arith.mulf %12, %13 : vector<8x128xf32>
    %15 = vector.broadcast %6 : vector<1x128xf32> to vector<8x128xf32>
    %16 = arith.addf %14, %15 : vector<8x128xf32>
    %c0_i32_8 = arith.constant 0 : i32
    %17 = arith.cmpi sgt, %1, %c0_i32_8 : i32
    %cst = arith.constant 0.000000e+00 : f32
    %18 = vector.broadcast %cst : f32 to vector<8x128xf32>
    %19 = arith.select %17, %16, %18 : vector<8x128xf32>
    %c0_9 = arith.constant 0 : index
    %c0_10 = arith.constant 0 : index
    %20 = vector.load %arg4[%c0_9, %c0_10] : memref<8x128xf32, #tpu.memory_space<vmem>>, vector<8x128xf32>
    %21 = vector.broadcast %5 : vector<1x128xf32> to vector<8x128xf32>
    %22 = arith.mulf %20, %21 : vector<8x128xf32>
    %23 = vector.broadcast %6 : vector<1x128xf32> to vector<8x128xf32>
    %24 = arith.addf %22, %23 : vector<8x128xf32>
    %c1_i32_11 = arith.constant 1 : i32
    %25 = arith.addi %1, %c1_i32_11 : i32
    %c512_i32 = arith.constant 512 : i32
    %26 = arith.muli %25, %c512_i32 : i32
    %27 = tpu.iota {dimensions = array<i32: 0>} : vector<8x128xi32>
    %28 = vector.broadcast %26 : i32 to vector<8x128xi32>
    %29 = arith.addi %28, %27 : vector<8x128xi32>
    %c1024_i32 = arith.constant 1024 : i32
    %30 = vector.broadcast %c1024_i32 : i32 to vector<8x128xi32>
    %31 = arith.cmpi slt, %29, %30 : vector<8x128xi32>
    %cst_12 = arith.constant 0.000000e+00 : f32
    %32 = vector.broadcast %cst_12 : f32 to vector<8x128xf32>
    %33 = arith.select %31, %24, %32 : vector<8x128xi1>, vector<8x128xf32>
    %34 = tpu.concatenate %19, %11, %33 in 0 : vector<8x128xf32>, vector<512x128xf32>, vector<8x128xf32> -> vector<528x128xf32>
    %35 = vector.extract_strided_slice %34 {offsets = [7, 0], sizes = [512, 128], strides = [1, 1]} : vector<528x128xf32> to vector<512x128xf32>
    %c0_13 = arith.constant 0 : index
    %c0_14 = arith.constant 0 : index
    %36 = vector.load %arg7[%c0_13, %c0_14] : memref<3x128xf32, #tpu.memory_space<vmem>>, vector<1x128xf32>
    %37 = vector.broadcast %36 : vector<1x128xf32> to vector<512x128xf32>
    %38 = arith.mulf %35, %37 : vector<512x128xf32>
    %39 = vector.extract_strided_slice %34 {offsets = [8, 0], sizes = [512, 128], strides = [1, 1]} : vector<528x128xf32> to vector<512x128xf32>
    %c1 = arith.constant 1 : index
    %c0_15 = arith.constant 0 : index
    %40 = vector.load %arg7[%c1, %c0_15] : memref<3x128xf32, #tpu.memory_space<vmem>>, vector<1x128xf32>
    %41 = vector.broadcast %40 : vector<1x128xf32> to vector<512x128xf32>
    %42 = arith.mulf %39, %41 : vector<512x128xf32>
    %43 = arith.addf %38, %42 : vector<512x128xf32>
    %44 = vector.extract_strided_slice %34 {offsets = [9, 0], sizes = [512, 128], strides = [1, 1]} : vector<528x128xf32> to vector<512x128xf32>
    %c2 = arith.constant 2 : index
    %c0_16 = arith.constant 0 : index
    %45 = vector.load %arg7[%c2, %c0_16] : memref<3x128xf32, #tpu.memory_space<vmem>>, vector<1x128xf32>
    %46 = vector.broadcast %45 : vector<1x128xf32> to vector<512x128xf32>
    %47 = arith.mulf %44, %46 : vector<512x128xf32>
    %48 = arith.addf %43, %47 : vector<512x128xf32>
    %c0_17 = arith.constant 0 : index
    %c0_18 = arith.constant 0 : index
    %49 = vector.load %arg8[%c0_17, %c0_18] : memref<1x128xf32, #tpu.memory_space<vmem>>, vector<1x128xf32>
    %50 = vector.broadcast %49 : vector<1x128xf32> to vector<512x128xf32>
    %51 = arith.addf %48, %50 : vector<512x128xf32>
    %cst_19 = arith.constant 0.000000e+00 : f32
    %52 = vector.broadcast %cst_19 : f32 to vector<512x128xf32>
    %53 = arith.cmpf ogt, %51, %52 : vector<512x128xf32>
    %c0_20 = arith.constant 0 : index
    %c0_21 = arith.constant 0 : index
    %54 = vector.load %arg9[%c0_20, %c0_21] : memref<1x1xf32, #tpu.memory_space<vmem>>, vector<1x1xf32>
    %55 = vector.broadcast %54 : vector<1x1xf32> to vector<512x128xf32>
    %56 = arith.mulf %51, %55 : vector<512x128xf32>
    %57 = arith.select %53, %51, %56 : vector<512x128xi1>, vector<512x128xf32>
    %c0_22 = arith.constant 0 : index
    %c0_23 = arith.constant 0 : index
    %58 = vector.load %arg10[%c0_22, %c0_23] : memref<512x128xf32, #tpu.memory_space<vmem>>, vector<512x128xf32>
    tpu.vector_store %arg10[%c0_22, %c0_23], %57 {strides = array<i32>} : memref<512x128xf32, #tpu.memory_space<vmem>>, vector<512x128xf32>,
    %c512_i32_24 = arith.constant 512 : i32
    %59 = arith.muli %arg1, %c512_i32_24 : i32
    %60 = arith.sitofp %59 : i32 to f32
    %cst_25 = arith.constant dense<0.000000e+00> : vector<128xf32>
    %61 = vector.multi_reduction <add>, %57, %cst_25 [0] : vector<512x128xf32> to vector<128xf32>
    %62 = vector.shape_cast %61 : vector<128xf32> to vector<1x128xf32>
    %cst_26 = arith.constant 5.120000e+02 : f32
    %63 = vector.broadcast %cst_26 : f32 to vector<1x128xf32>
    %64 = arith.divf %62, %63 : vector<1x128xf32>
    %65 = vector.broadcast %64 : vector<1x128xf32> to vector<512x128xf32>
    %66 = arith.subf %57, %65 : vector<512x128xf32>
    %67 = arith.mulf %66, %66 : vector<512x128xf32>
    %cst_27 = arith.constant dense<0.000000e+00> : vector<128xf32>
    %68 = vector.multi_reduction <add>, %67, %cst_27 [0] : vector<512x128xf32> to vector<128xf32>
    %69 = vector.shape_cast %68 : vector<128xf32> to vector<1x128xf32>
    %cst_28 = arith.constant 5.120000e+02 : f32
    %70 = arith.addf %60, %cst_28 : f32
    %c0_29 = arith.constant 0 : index
    %c0_30 = arith.constant 0 : index
    %c0_31 = arith.constant 0 : index
    %71 = vector.load %arg11[%c0_29, %c0_30, %c0_31] : memref<1x1x128xf32, #tpu.memory_space<vmem>>, vector<1x1x128xf32>
    %72 = vector.shape_cast %71 : vector<1x1x128xf32> to vector<1x128xf32>
    %73 = arith.subf %64, %72 : vector<1x128xf32>
    %c0_32 = arith.constant 0 : index
    %c0_33 = arith.constant 0 : index
    %c0_34 = arith.constant 0 : index
    %74 = vector.load %arg11[%c0_32, %c0_33, %c0_34] : memref<1x1x128xf32, #tpu.memory_space<vmem>>, vector<1x1x128xf32>
    %75 = vector.shape_cast %74 : vector<1x1x128xf32> to vector<1x128xf32>
    %cst_35 = arith.constant 5.120000e+02 : f32
    %76 = arith.divf %cst_35, %70 : f32
    %77 = vector.broadcast %76 : f32 to vector<1x128xf32>
    %78 = arith.mulf %73, %77 : vector<1x128xf32>
    %79 = arith.addf %75, %78 : vector<1x128xf32>
    %c0_36 = arith.constant 0 : index
    %c0_37 = arith.constant 0 : index
    %c0_38 = arith.constant 0 : index
    %80 = vector.load %arg11[%c0_36, %c0_37, %c0_38] : memref<1x1x128xf32, #tpu.memory_space<vmem>>, vector<1x1x128xf32>
    %81 = vector.shape_cast %80 : vector<1x1x128xf32> to vector<1x128xf32>
    %82 = vector.shape_cast %79 : vector<1x128xf32> to vector<1x1x128xf32>
    tpu.vector_store %arg11[%c0_36, %c0_37, %c0_38], %82 {strides = array<i32>} : memref<1x1x128xf32, #tpu.memory_space<vmem>>, vector<1x1x128xf32>,
    %c0_39 = arith.constant 0 : index
    %c0_40 = arith.constant 0 : index
    %c0_41 = arith.constant 0 : index
    %83 = vector.load %arg12[%c0_39, %c0_40, %c0_41] : memref<1x1x128xf32, #tpu.memory_space<vmem>>, vector<1x1x128xf32>
    %84 = vector.shape_cast %83 : vector<1x1x128xf32> to vector<1x128xf32>
    %85 = arith.mulf %73, %73 : vector<1x128xf32>
    %cst_42 = arith.constant 5.120000e+02 : f32
    %86 = arith.mulf %60, %cst_42 : f32
    %87 = arith.divf %86, %70 : f32
    %88 = vector.broadcast %87 : f32 to vector<1x128xf32>
    %89 = arith.mulf %85, %88 : vector<1x128xf32>
    %90 = arith.addf %69, %89 : vector<1x128xf32>
    %91 = arith.addf %84, %90 : vector<1x128xf32>
    %c0_43 = arith.constant 0 : index
    %c0_44 = arith.constant 0 : index
    %c0_45 = arith.constant 0 : index
    %92 = vector.load %arg12[%c0_43, %c0_44, %c0_45] : memref<1x1x128xf32, #tpu.memory_space<vmem>>, vector<1x1x128xf32>
    %93 = vector.shape_cast %92 : vector<1x1x128xf32> to vector<1x128xf32>
    %94 = vector.shape_cast %91 : vector<1x128xf32> to vector<1x1x128xf32>
    tpu.vector_store %arg12[%c0_43, %c0_44, %c0_45], %94 {strides = array<i32>} : memref<1x1x128xf32, #tpu.memory_space<vmem>>, vector<1x1x128xf32>,
    return
  }
  func.func @transform_0(%arg0: i32, %arg1: i32) -> (i32, i32) {
    %c1_i32 = arith.constant 1 : i32
    %0 = arith.muli %arg0, %c1_i32 : i32
    %1 = arith.addi %0, %arg1 : i32
    %c0_i32 = arith.constant 0 : i32
    %c0_i32_0 = arith.constant 0 : i32
    return %1, %c0_i32 : i32, i32
  }
  func.func @transform_1(%arg0: i32, %arg1: i32) -> (i32, i32) {
    %c1_i32 = arith.constant 1 : i32
    %0 = arith.muli %arg0, %c1_i32 : i32
    %1 = arith.addi %0, %arg1 : i32
    %c64_i32 = arith.constant 64 : i32
    %2 = arith.muli %1, %c64_i32 : i32
    %c1_i32_0 = arith.constant 1 : i32
    %3 = arith.subi %2, %c1_i32_0 : i32
    %c0_i32 = arith.constant 0 : i32
    %4 = arith.maxsi %3, %c0_i32 : i32
    %c0_i32_1 = arith.constant 0 : i32
    %c0_i32_2 = arith.constant 0 : i32
    return %4, %c0_i32_1 : i32, i32
  }
  func.func @transform_2(%arg0: i32, %arg1: i32) -> (i32, i32) {
    %c1_i32 = arith.constant 1 : i32
    %0 = arith.muli %arg0, %c1_i32 : i32
    %1 = arith.addi %0, %arg1 : i32
    %c1_i32_0 = arith.constant 1 : i32
    %2 = arith.addi %1, %c1_i32_0 : i32
    %c64_i32 = arith.constant 64 : i32
    %3 = arith.muli %2, %c64_i32 : i32
    %c127_i32 = arith.constant 127 : i32
    %4 = arith.minsi %3, %c127_i32 : i32
    %c0_i32 = arith.constant 0 : i32
    %c0_i32_1 = arith.constant 0 : i32
    return %4, %c0_i32 : i32, i32
  }
  func.func @transform_3(%arg0: i32, %arg1: i32) -> (i32, i32) {
    %c0_i32 = arith.constant 0 : i32
    %c0_i32_0 = arith.constant 0 : i32
    %c0_i32_1 = arith.constant 0 : i32
    return %c0_i32, %c0_i32_0 : i32, i32
  }
  func.func @transform_4(%arg0: i32, %arg1: i32) -> (i32, i32) {
    %c0_i32 = arith.constant 0 : i32
    %c0_i32_0 = arith.constant 0 : i32
    %c0_i32_1 = arith.constant 0 : i32
    return %c0_i32, %c0_i32_0 : i32, i32
  }
  func.func @transform_5(%arg0: i32, %arg1: i32) -> (i32, i32) {
    %c0_i32 = arith.constant 0 : i32
    %c0_i32_0 = arith.constant 0 : i32
    %c0_i32_1 = arith.constant 0 : i32
    return %c0_i32, %c0_i32_0 : i32, i32
  }
  func.func @transform_6(%arg0: i32, %arg1: i32) -> (i32, i32) {
    %c0_i32 = arith.constant 0 : i32
    %c0_i32_0 = arith.constant 0 : i32
    %c0_i32_1 = arith.constant 0 : i32
    return %c0_i32, %c0_i32_0 : i32, i32
  }
  func.func @transform_7(%arg0: i32, %arg1: i32) -> (i32, i32) {
    %c0_i32 = arith.constant 0 : i32
    %c0_i32_0 = arith.constant 0 : i32
    %c0_i32_1 = arith.constant 0 : i32
    return %c0_i32, %c0_i32_0 : i32, i32
  }
  func.func @transform_8(%arg0: i32, %arg1: i32) -> (i32, i32) {
    %c1_i32 = arith.constant 1 : i32
    %0 = arith.muli %arg0, %c1_i32 : i32
    %1 = arith.addi %0, %arg1 : i32
    %c0_i32 = arith.constant 0 : i32
    %c0_i32_0 = arith.constant 0 : i32
    return %1, %c0_i32 : i32, i32
  }
  func.func @transform_9(%arg0: i32, %arg1: i32) -> (i32, i32, i32) {
    %c0_i32 = arith.constant 0 : i32
    %c0_i32_0 = arith.constant 0 : i32
    %c0_i32_1 = arith.constant 0 : i32
    return %arg0, %c0_i32, %c0_i32_0 : i32, i32, i32
  }
  func.func @transform_10(%arg0: i32, %arg1: i32) -> (i32, i32, i32) {
    %c0_i32 = arith.constant 0 : i32
    %c0_i32_0 = arith.constant 0 : i32
    %c0_i32_1 = arith.constant 0 : i32
    return %arg0, %c0_i32, %c0_i32_0 : i32, i32, i32
  }
}

module attributes {stable_mosaic.version = 11 : i64} {
  func.func @_pointwise_residual_kernel(%arg0: i32, %arg1: memref<512x128xf32, #tpu.memory_space<vmem>>, %arg2: memref<64x128xf32, #tpu.memory_space<vmem>>, %arg3: memref<64x1xf32, #tpu.memory_space<vmem>>, %arg4: memref<64x512xf32, #tpu.memory_space<vmem>>, %arg5: memref<64x512xf32, #tpu.memory_space<vmem>>) attributes {dimension_semantics = [#tpu.dimension_semantics<parallel>], iteration_bounds = array<i64: 2>, scalar_prefetch = 0 : i64, scratch_operands = 0 : i64, tpu.core_type = #tpu.core_type<tc>, window_params = [{transform_indices = @transform_0, window_bounds = array<i64: 512, 128>}, {pipeline_mode = #tpu.pipeline_mode<synchronous>, transform_indices = @transform_1, window_bounds = array<i64: 64, 128>}, {pipeline_mode = #tpu.pipeline_mode<synchronous>, transform_indices = @transform_2, window_bounds = array<i64: 64, 1>}, {transform_indices = @transform_3, window_bounds = array<i64: 64, 512>}, {transform_indices = @transform_4, window_bounds = array<i64: 64, 512>}]} {
    %c0 = arith.constant 0 : index
    %c0_0 = arith.constant 0 : index
    %0 = vector.load %arg2[%c0, %c0_0] : memref<64x128xf32, #tpu.memory_space<vmem>>, vector<64x128xf32>
    %c0_1 = arith.constant 0 : index
    %c0_2 = arith.constant 0 : index
    %1 = vector.load %arg1[%c0_1, %c0_2] : memref<512x128xf32, #tpu.memory_space<vmem>>, vector<512x128xf32>
    %cst = arith.constant dense<0.000000e+00> : vector<64x512xf32>
    %2 = tpu.matmul %0, %1, %cst {dimension_numbers = #tpu.dot_dimension_numbers<[1], [1], [0], [0], [0, 0, 1, 0], [], []>} : vector<64x128xf32>, vector<512x128xf32>, vector<64x512xf32> -> vector<64x512xf32>
    %c0_3 = arith.constant 0 : index
    %c0_4 = arith.constant 0 : index
    %3 = vector.load %arg3[%c0_3, %c0_4] : memref<64x1xf32, #tpu.memory_space<vmem>>, vector<64x1xf32>
    %4 = vector.broadcast %3 : vector<64x1xf32> to vector<64x512xf32>
    %5 = arith.addf %2, %4 : vector<64x512xf32>
    %c0_5 = arith.constant 0 : index
    %c0_6 = arith.constant 0 : index
    %6 = vector.load %arg4[%c0_5, %c0_6] : memref<64x512xf32, #tpu.memory_space<vmem>>, vector<64x512xf32>
    %7 = arith.addf %5, %6 : vector<64x512xf32>
    %c0_7 = arith.constant 0 : index
    %c0_8 = arith.constant 0 : index
    %8 = vector.load %arg5[%c0_7, %c0_8] : memref<64x512xf32, #tpu.memory_space<vmem>>, vector<64x512xf32>
    tpu.vector_store %arg5[%c0_7, %c0_8], %7 {strides = array<i32>} : memref<64x512xf32, #tpu.memory_space<vmem>>, vector<64x512xf32>,
    return
  }
  func.func @transform_0(%arg0: i32) -> (i32, i32) {
    %c0_i32 = arith.constant 0 : i32
    %c0_i32_0 = arith.constant 0 : i32
    return %arg0, %c0_i32 : i32, i32
  }
  func.func @transform_1(%arg0: i32) -> (i32, i32) {
    %c0_i32 = arith.constant 0 : i32
    %c0_i32_0 = arith.constant 0 : i32
    %c0_i32_1 = arith.constant 0 : i32
    return %c0_i32, %c0_i32_0 : i32, i32
  }
  func.func @transform_2(%arg0: i32) -> (i32, i32) {
    %c0_i32 = arith.constant 0 : i32
    %c0_i32_0 = arith.constant 0 : i32
    %c0_i32_1 = arith.constant 0 : i32
    return %c0_i32, %c0_i32_0 : i32, i32
  }
  func.func @transform_3(%arg0: i32) -> (i32, i32) {
    %c0_i32 = arith.constant 0 : i32
    %c0_i32_0 = arith.constant 0 : i32
    return %c0_i32, %arg0 : i32, i32
  }
  func.func @transform_4(%arg0: i32) -> (i32, i32) {
    %c0_i32 = arith.constant 0 : i32
    %c0_i32_0 = arith.constant 0 : i32
    return %c0_i32, %arg0 : i32, i32
  }
}

</mosaic_0001>

<llo_original>
// kernel: stcn_block.5
$region0: #{stcn_block.5}
  #allocation0 [shape = 'u32[]', space=smem, size = 0x4, offset = 0x4, fixed_abs, tag = 'smem constant byte address 0x4 - core index']
  #allocation1 [shape = 'u32[144,128]{1,0:T(1,128)}', space=vmem, size = 0x12000, scoped, tag = 'internal scratch']
  %s0 = inlined_call_operand.vmem [shape: f32[1024,128], index: 0, kind: input, shape index: {}]
  %s1 = inlined_call_operand.vmem [shape: f32[64,128], index: 1, kind: input, shape index: {}]
  %s2 = inlined_call_operand.vmem [shape: f32[64,1], index: 2, kind: input, shape index: {}]
  %s3 = inlined_call_operand.vmem [shape: f32[64,1024], index: 3, kind: input, shape index: {}]
  %s4 = inlined_call_operand.hbm [shape: f32[64,1024], index: 4, kind: output, shape index: {}]
  %s5 = sld [smem:[#allocation0]]
  $region72: #{stcn_block.5} parent=0
    _
  %s7 = ssub.s32 1, %s5
  %s8 = scalar_select 0, %s7, %s5
  $region1: #{stcn_block.5} parent=0
    #allocation2 [shape = 'u8[262144]{0}', space=vmem, size = 0x40000, scoped, tag = 'input window, operand 3']
    #allocation3 [shape = 'u8[262144]{0}', space=vmem, size = 0x40000, scoped, tag = 'output window, operand 0']
    #allocation4 [shape = 's32[2]{0}', space=sflag, size = 0x8, scoped, tag = 'scoped memory for stcn_block.5']
    %9 = vsyncpa [#allocation4], 0
    %s10 = scalar_lea.sflag [#allocation4], 1
    %11 = vsyncpa %s10, 0
    loop: start=0, step=1, limit=4
    $region2: #{stcn_block.5} parent=1 // loop_pre_header
      _
    $region3: #{stcn_block.5} parent=1 // loop_header
      %s13 = sphi 0, %s17
      %p14 = scmp.ge.s32.totalorder %s13, 4
      %s23 = sphi 0, %s25
      %s26 = sphi 0, %s23
      %s27 = sphi 0, %s26
      %s43 = sphi 0, %s27
      %s47 = sphi 0, %s47
      %s49 = sphi 0, %s47
      %s50 = sphi 0, %s49
      %s64 = sphi 0, %s50
      %s68 = sphi 0, %s68
      %s70 = sphi 0, %s68
      %s71 = sphi 0, %s70
      %s85 = sphi 0, %s71
      %s91 = sphi 0, %s93
      %s94 = sphi 0, %s91
      %s95 = sphi 0, %s94
      %s111 = sphi 0, %s95
      %s117 = sphi 0, %s119
      %s120 = sphi 0, %s117
      %s121 = sphi 0, %s120
      %s137 = sphi 0, %s121
    $region4: #{stcn_block.5} parent=1 // loop_header_branch
      %16 = sbr.rel (%p14) target = $region8
    $region5: #{stcn_block.5} parent=1 // loop_body
      %s18 = ssub.s32 %s13, 1
      %s19 = ssub.s32 %s13, 2
      %s20 = sadd.s32 %s13, 1
      %s21 = ssub.s32 %s13, %s20
      %p22 = scmp.eq.s32.totalorder %s21, 0
      %s24 = sadd.s32 %s23, 1
      %s25 = scalar_select %p22, %s23, %s24
      %p28 = pneg %p22
      %p29 = scmp.eq.s32.totalorder %s13, 1
      %p30 = por %p28, %p29
      %p31 = scmp.ne.s32.totalorder %s23, %s26
      %p32 = scmp.eq.s32.totalorder %s13, 0
      %p33 = por %p31, %p32
      %p34 = scmp.ne.s32.totalorder %s23, %s26
      %p35 = scmp.eq.s32.totalorder %s18, 1
      %p36 = por %p34, %p35
      %p37 = scmp.ne.s32.totalorder %s26, %s27
      %p38 = scmp.eq.s32.totalorder %s18, 0
      %p39 = por %p37, %p38
      %p40 = scmp.ne.s32.totalorder %s26, %s27
      %p41 = scmp.eq.s32.totalorder %s19, 1
      %p42 = por %p40, %p41
      %p44 = scmp.ne.s32.totalorder %s27, %s43
      %p45 = scmp.eq.s32.totalorder %s19, 0
      %p46 = por %p44, %p45
      %s48 = sadd.s32 %s47, 1
      %p51 = scmp.eq.s32.totalorder %s13, 1
      %p52 = scmp.ne.s32.totalorder %s47, %s49
      %p53 = scmp.eq.s32.totalorder %s13, 0
      %p54 = por %p52, %p53
      %p55 = scmp.ne.s32.totalorder %s47, %s49
      %p56 = scmp.eq.s32.totalorder %s18, 1
      %p57 = por %p55, %p56
      %p58 = scmp.ne.s32.totalorder %s49, %s50
      %p59 = scmp.eq.s32.totalorder %s18, 0
      %p60 = por %p58, %p59
      %p61 = scmp.ne.s32.totalorder %s49, %s50
      %p62 = scmp.eq.s32.totalorder %s19, 1
      %p63 = por %p61, %p62
      %p65 = scmp.ne.s32.totalorder %s50, %s64
      %p66 = scmp.eq.s32.totalorder %s19, 0
      %p67 = por %p65, %p66
      %s69 = sadd.s32 %s68, 1
      %p72 = scmp.eq.s32.totalorder %s13, 1
      %p73 = scmp.ne.s32.totalorder %s68, %s70
      %p74 = scmp.eq.s32.totalorder %s13, 0
      %p75 = por %p73, %p74
      %p76 = scmp.ne.s32.totalorder %s68, %s70
      %p77 = scmp.eq.s32.totalorder %s18, 1
      %p78 = por %p76, %p77
      %p79 = scmp.ne.s32.totalorder %s70, %s71
      %p80 = scmp.eq.s32.totalorder %s18, 0
      %p81 = por %p79, %p80
      %p82 = scmp.ne.s32.totalorder %s70, %s71
      %p83 = scmp.eq.s32.totalorder %s19, 1
      %p84 = por %p82, %p83
      %p86 = scmp.ne.s32.totalorder %s71, %s85
      %p87 = scmp.eq.s32.totalorder %s19, 0
      %p88 = por %p86, %p87
      %s89 = ssub.s32 %s13, %s20
      %p90 = scmp.eq.s32.totalorder %s89, 0
      %s92 = sadd.s32 %s91, 1
      %s93 = scalar_select %p90, %s91, %s92
      %p96 = pneg %p90
      %p97 = scmp.eq.s32.totalorder %s13, 1
      %p98 = por %p96, %p97
      %p99 = scmp.ne.s32.totalorder %s91, %s94
      %p100 = scmp.eq.s32.totalorder %s13, 0
      %p101 = por %p99, %p100
      %p102 = scmp.ne.s32.totalorder %s91, %s94
      %p103 = scmp.eq.s32.totalorder %s18, 1
      %p104 = por %p102, %p103
      %p105 = scmp.ne.s32.totalorder %s94, %s95
      %p106 = scmp.eq.s32.totalorder %s18, 0
      %p107 = por %p105, %p106
      %p108 = scmp.ne.s32.totalorder %s94, %s95
      %p109 = scmp.eq.s32.totalorder %s19, 1
      %p110 = por %p108, %p109
      %p112 = scmp.ne.s32.totalorder %s95, %s111
      %p113 = scmp.eq.s32.totalorder %s19, 0
      %p114 = por %p112, %p113
      %s115 = ssub.s32 %s13, %s20
      %p116 = scmp.eq.s32.totalorder %s115, 0
      %s118 = sadd.s32 %s117, 1
      %s119 = scalar_select %p116, %s117, %s118
      %p122 = pneg %p116
      %p123 = scmp.eq.s32.totalorder %s13, 1
      %p124 = por %p122, %p123
      %p125 = scmp.ne.s32.totalorder %s117, %s120
      %p126 = scmp.eq.s32.totalorder %s13, 0
      %p127 = por %p125, %p126
      %p128 = scmp.ne.s32.totalorder %s117, %s120
      %p129 = scmp.eq.s32.totalorder %s18, 1
      %p130 = por %p128, %p129
      %p131 = scmp.ne.s32.totalorder %s120, %s121
      %p132 = scmp.eq.s32.totalorder %s18, 0
      %p133 = por %p131, %p132
      %p134 = scmp.ne.s32.totalorder %s120, %s121
      %p135 = scmp.eq.s32.totalorder %s19, 1
      %p136 = por %p134, %p135
      %p138 = scmp.ne.s32.totalorder %s121, %s137
      %p139 = scmp.eq.s32.totalorder %s19, 0
      %p140 = por %p138, %p139
      %p141 = scmp.le.s32.totalorder 1, %s13
      %p142 = scmp.lt.s32.totalorder %s13, 3
      %p143 = pnand %p141, %p142
      %p144 = pneg %p143
      // Predicated region
      $region9: #{stcn_block.5} parent=5 // pred_check
        _
      $region10: #{stcn_block.5} parent=5 // pred_check_branch
        %146 = sbr.rel (%p143) target = $region12
      $region11: #{stcn_block.5} parent=5 // pred_region
        %s147 = ssub.s32 %s13, 1
        // Predicated region
        $region13: #{stcn_block.5} parent=11 // pred_check
          %p148 = pneg %p60
        $region14: #{stcn_block.5} parent=11 // pred_check_branch
          %150 = sbr.rel (%p148) target = $region16
        $region15: #{stcn_block.5} parent=11 // pred_region
          _
        $region16: #{stcn_block.5} parent=11 // pred_fallthru
          _
        // Predicated region
        $region17: #{stcn_block.5} parent=11 // pred_check
          %p151 = pneg %p81
        $region18: #{stcn_block.5} parent=11 // pred_check_branch
          %153 = sbr.rel (%p151) target = $region20
        $region19: #{stcn_block.5} parent=11 // pred_region
          _
        $region20: #{stcn_block.5} parent=11 // pred_fallthru
          _
      $region12: #{stcn_block.5} parent=5 // pred_fallthru
        _
      %p154 = scmp.lt.s32.totalorder %s13, 2
      // Predicated region
      $region21: #{stcn_block.5} parent=5 // pred_check
        %p155 = pneg %p154
      $region22: #{stcn_block.5} parent=5 // pred_check_branch
        %157 = sbr.rel (%p155) target = $region24
      $region23: #{stcn_block.5} parent=5 // pred_region
        // Predicated region
        $region25: #{stcn_block.5} parent=23 // pred_check
          %p158 = pneg %p33
        $region26: #{stcn_block.5} parent=23 // pred_check_branch
          %160 = sbr.rel (%p158) target = $region28
        $region27: #{stcn_block.5} parent=23 // pred_region
          %s161 = smul.u32 64, %s13
          %p162 = scmp.lt.s32.totalorder %s161, 127
          %s163 = scalar_select %p162, %s161, 127
          %s164 = smul.addr %s163, 8
          %s165 = scalar_lea.vmem %s0, %s164
          %s166 = smul.u32 64, %s13
        $region28: #{stcn_block.5} parent=23 // pred_fallthru
          _
        // Predicated region
        $region29: #{stcn_block.5} parent=23 // pred_check
          %p167 = pneg %p101
        $region30: #{stcn_block.5} parent=23 // pred_check_branch
          %169 = sbr.rel (%p167) target = $region32
        $region31: #{stcn_block.5} parent=23 // pred_region
          %s170 = sand.u32 %s91, 1
          %s171 = sand.u32 %s91, 1
          %s172 = smul.addr %s171, 256
          %s173 = scalar_lea.vmem [#allocation2], %s172
          %s174 = smul.u32 4, %s13
          %s175 = smul.addr %s174, 8
          %s176 = scalar_lea.vmem %s3, %s175
          // Predicated region
          $region33: #{stcn_block.5} parent=31 // pred_check
            _
          $region34: #{stcn_block.5} parent=31 // pred_check_branch
            %178 = sbr.rel (0) target = $region36
          $region35: #{stcn_block.5} parent=31 // pred_region
            // Predicated region
            $region37: #{stcn_block.5} parent=35 // pred_check
              _
            $region38: #{stcn_block.5} parent=35 // pred_check_branch
              %180 = sbr.rel (0) target = $region40
            $region39: #{stcn_block.5} parent=35 // pred_region
              loop: start=0, step=1, limit=1
              $region41: #{stcn_block.5} parent=39 // loop_pre_header
                _
              $region42: #{stcn_block.5} parent=39 // loop_header
                %s182 = sphi 0, %s186
                %p183 = scmp.ge.s32.totalorder %s182, 1
                %s187 = sphi %s176, %s176
                %s188 = sphi %s173, %s173
              $region43: #{stcn_block.5} parent=39 // loop_header_branch
                %185 = sbr.rel (%p183) target = $region47
              $region44: #{stcn_block.5} parent=39 // loop_body
                %v189 = vld [vmem:[%s187] sm:$0xff]
                %190 = vst [vmem:[%s188] sm:$0xff] %v189
                %v191 = vld [vmem:[%s187 + $0x8] sm:$0xff]
                %192 = vst [vmem:[%s188 + $0x8] sm:$0xff] %v191
                %v193 = vld [vmem:[%s187 + $0x10] sm:$0xff]
                %194 = vst [vmem:[%s188 + $0x10] sm:$0xff] %v193
                %v195 = vld [vmem:[%s187 + $0x18] sm:$0xff]
                %196 = vst [vmem:[%s188 + $0x18] sm:$0xff] %v195
                %v197 = vld [vmem:[%s187 + $0x40] sm:$0xff]
                %198 = vst [vmem:[%s188 + $0x20] sm:$0xff] %v197
                %v199 = vld [vmem:[%s187 + $0x48] sm:$0xff]
                %200 = vst [vmem:[%s188 + $0x28] sm:$0xff] %v199
                %v201 = vld [vmem:[%s187 + $0x50] sm:$0xff]
                %202 = vst [vmem:[%s188 + $0x30] sm:$0xff] %v201
                %v203 = vld [vmem:[%s187 + $0x58] sm:$0xff]
                %204 = vst [vmem:[%s188 + $0x38] sm:$0xff] %v203
                %v205 = vld [vmem:[%s187 + $0x80] sm:$0xff]
                %206 = vst [vmem:[%s188 + $0x40] sm:$0xff] %v205
                %v207 = vld [vmem:[%s187 + $0x88] sm:$0xff]
                %208 = vst [vmem:[%s188 + $0x48] sm:$0xff] %v207
                %v209 = vld [vmem:[%s187 + $0x90] sm:$0xff]
                %210 = vst [vmem:[%s188 + $0x50] sm:$0xff] %v209
                %v211 = vld [vmem:[%s187 + $0x98] sm:$0xff]
                %212 = vst [vmem:[%s188 + $0x58] sm:$0xff] %v211
                %v213 = vld [vmem:[%s187 + $0xc0] sm:$0xff]
                %214 = vst [vmem:[%s188 + $0x60] sm:$0xff] %v213
                %v215 = vld [vmem:[%s187 + $0xc8] sm:$0xff]
                %216 = vst [vmem:[%s188 + $0x68] sm:$0xff] %v215
                %v217 = vld [vmem:[%s187 + $0xd0] sm:$0xff]
                %218 = vst [vmem:[%s188 + $0x70] sm:$0xff] %v217
                %v219 = vld [vmem:[%s187 + $0xd8] sm:$0xff]
                %220 = vst [vmem:[%s188 + $0x78] sm:$0xff] %v219
                %v221 = vld [vmem:[%s187 + $0x100] sm:$0xff]
                %222 = vst [vmem:[%s188 + $0x80] sm:$0xff] %v221
                %v223 = vld [vmem:[%s187 + $0x108] sm:$0xff]
                %224 = vst [vmem:[%s188 + $0x88] sm:$0xff] %v223
                %v225 = vld [vmem:[%s187 + $0x110] sm:$0xff]
                %226 = vst [vmem:[%s188 + $0x90] sm:$0xff] %v225
                %v227 = vld [vmem:[%s187 + $0x118] sm:$0xff]
                %228 = vst [vmem:[%s188 + $0x98] sm:$0xff] %v227
                %v229 = vld [vmem:[%s187 + $0x140] sm:$0xff]
                %230 = vst [vmem:[%s188 + $0xa0] sm:$0xff] %v229
                %v231 = vld [vmem:[%s187 + $0x148] sm:$0xff]
                %232 = vst [vmem:[%s188 + $0xa8] sm:$0xff] %v231
                %v233 = vld [vmem:[%s187 + $0x150] sm:$0xff]
                %234 = vst [vmem:[%s188 + $0xb0] sm:$0xff] %v233
                %v235 = vld [vmem:[%s187 + $0x158] sm:$0xff]
                %236 = vst [vmem:[%s188 + $0xb8] sm:$0xff] %v235
                %v237 = vld [vmem:[%s187 + $0x180] sm:$0xff]
                %238 = vst [vmem:[%s188 + $0xc0] sm:$0xff] %v237
                %v239 = vld [vmem:[%s187 + $0x188] sm:$0xff]
                %240 = vst [vmem:[%s188 + $0xc8] sm:$0xff] %v239
                %v241 = vld [vmem:[%s187 + $0x190] sm:$0xff]
                %242 = vst [vmem:[%s188 + $0xd0] sm:$0xff] %v241
                %v243 = vld [vmem:[%s187 + $0x198] sm:$0xff]
                %244 = vst [vmem:[%s188 + $0xd8] sm:$0xff] %v243
                %v245 = vld [vmem:[%s187 + $0x1c0] sm:$0xff]
                %246 = vst [vmem:[%s188 + $0xe0] sm:$0xff] %v245
                %v247 = vld [vmem:[%s187 + $0x1c8] sm:$0xff]
                %248 = vst [vmem:[%s188 + $0xe8] sm:$0xff] %v247
                %v249 = vld [vmem:[%s187 + $0x1d0] sm:$0xff]
                %250 = vst [vmem:[%s188 + $0xf0] sm:$0xff] %v249
                %v251 = vld [vmem:[%s187 + $0x1d8] sm:$0xff]
                %252 = vst [vmem:[%s188 + $0xf8] sm:$0xff] %v251
              $region45: #{stcn_block.5} parent=39 // loop_footer
                %s186 = sadd.s32 1, %s182
              $region46: #{stcn_block.5} parent=39 // loop_footer_branch
                %181 = sbr.rel target = $region42
              $region47: #{stcn_block.5} parent=39 // loop_exit
                _
            $region40: #{stcn_block.5} parent=35 // pred_fallthru
              _
            // Predicated region
            $region48: #{stcn_block.5} parent=35 // pred_check
              _
            $region49: #{stcn_block.5} parent=35 // pred_check_branch
              %254 = sbr.rel target = $region51
            $region50: #{stcn_block.5} parent=35 // pred_region
              _
            $region51: #{stcn_block.5} parent=35 // pred_fallthru
              _
          $region36: #{stcn_block.5} parent=31 // pred_fallthru
            _
          %255 = vnop
        $region32: #{stcn_block.5} parent=23 // pred_fallthru
          _
      $region24: #{stcn_block.5} parent=5 // pred_fallthru
        _
      %p256 = scmp.le.s32.totalorder 1, %s13
      %p257 = scmp.lt.s32.totalorder %s13, 3
      %p258 = pnand %p256, %p257
      %p259 = pneg %p258
      // Predicated region
      $region52: #{stcn_block.5} parent=5 // pred_check
        _
      $region53: #{stcn_block.5} parent=5 // pred_check_branch
        %261 = sbr.rel (%p258) target = $region55
      $region54: #{stcn_block.5} parent=5 // pred_region
        %s262 = ssub.s32 %s13, 1
        %s263 = sand.u32 %s94, 1
        %s264 = sand.u32 %s94, 1
        %s265 = smul.addr %s264, 256
        %s266 = scalar_lea.vmem [#allocation2], %s265
        // Predicated region
        $region56: #{stcn_block.5} parent=54 // pred_check
          %p267 = pneg %p107
        $region57: #{stcn_block.5} parent=54 // pred_check_branch
          %269 = sbr.rel (%p267) target = $region59
        $region58: #{stcn_block.5} parent=54 // pred_region
          _
        $region59: #{stcn_block.5} parent=54 // pred_fallthru
          _
        %s270 = smul.u32 64, %s18
        %p271 = scmp.lt.s32.totalorder %s270, 127
        %s272 = scalar_select %p271, %s270, 127
        %s273 = smul.addr %s272, 8
        %s274 = scalar_lea.vmem %s0, %s273
        %p275 = pneg %p39
        %p276 = pneg %p36
        %p277 = pneg %p60
        %p278 = pneg %p57
        %p279 = pneg %p81
        %p280 = pneg %p78
        %s281 = sand.u32 %s94, 1
        %s282 = sand.u32 %s94, 1
        %s283 = smul.addr %s282, 256
        %s284 = scalar_lea.vmem [#allocation2], %s283
        %p285 = pneg %p107
        %p286 = pneg %p104
        %p287 = pneg %p133
        %p288 = pneg %p130
        %s289 = sand.u32 %s120, 1
        %s290 = scalar_lea.sflag [#allocation4], %s289
        %s291 = sand.u32 %s120, 1
        %s292 = smul.addr %s291, 256
        %s293 = scalar_lea.vmem [#allocation3], %s292
        %s294 = smul.u32 64, %s18
        %p295 = scmp.lt.s32.totalorder %s294, 127
        %s296 = scalar_select %p295, %s294, 127
        %s297 = smul.addr %s296, 8
        %s298 = scalar_lea.vmem %s0, %s297
        %s299 = smul.u32 64, %s18
        %s300 = smul.u32 4, %s18
        %s301 = smul.u32 4, %s18
        %v302 = vld [vmem:[%s1] sm:$0xff]
        %v303 = vld [vmem:[%s1 + $0x8] sm:$0xff]
        %v304 = vld [vmem:[%s1 + $0x10] sm:$0xff]
        %v305 = vld [vmem:[%s1 + $0x18] sm:$0xff]
        %v306 = vld [vmem:[%s1 + $0x20] sm:$0xff]
        %v307 = vld [vmem:[%s1 + $0x28] sm:$0xff]
        %v308 = vld [vmem:[%s1 + $0x30] sm:$0xff]
        %v309 = vld [vmem:[%s1 + $0x38] sm:$0xff]
        %v310 = vld [vmem:[%s298] sm:$0xff]
        %v311 = vld [vmem:[%s298 + $0x8] sm:$0xff]
        %v312 = vld [vmem:[%s298 + $0x10] sm:$0xff]
        %v313 = vld [vmem:[%s298 + $0x18] sm:$0xff]
        %v314 = vld [vmem:[%s298 + $0x20] sm:$0xff]
        %v315 = vld [vmem:[%s298 + $0x28] sm:$0xff]
        %v316 = vld [vmem:[%s298 + $0x30] sm:$0xff]
        %v317 = vld [vmem:[%s298 + $0x38] sm:$0xff]
        %v318 = vld [vmem:[%s298 + $0x40] sm:$0xff]
        %v319 = vld [vmem:[%s298 + $0x48] sm:$0xff]
        %v320 = vld [vmem:[%s298 + $0x50] sm:$0xff]
        %v321 = vld [vmem:[%s298 + $0x58] sm:$0xff]
        %v322 = vld [vmem:[%s298 + $0x60] sm:$0xff]
        %v323 = vld [vmem:[%s298 + $0x68] sm:$0xff]
        %v324 = vld [vmem:[%s298 + $0x70] sm:$0xff]
        %v325 = vld [vmem:[%s298 + $0x78] sm:$0xff]
        %v326 = vld [vmem:[%s298 + $0x80] sm:$0xff]
        %v327 = vld [vmem:[%s298 + $0x88] sm:$0xff]
        %v328 = vld [vmem:[%s298 + $0x90] sm:$0xff]
        %v329 = vld [vmem:[%s298 + $0x98] sm:$0xff]
        %v330 = vld [vmem:[%s298 + $0xa0] sm:$0xff]
        %v331 = vld [vmem:[%s298 + $0xa8] sm:$0xff]
        %v332 = vld [vmem:[%s298 + $0xb0] sm:$0xff]
        %v333 = vld [vmem:[%s298 + $0xb8] sm:$0xff]
        %v334 = vld [vmem:[%s298 + $0xc0] sm:$0xff]
        %v335 = vld [vmem:[%s298 + $0xc8] sm:$0xff]
        %v336 = vld [vmem:[%s298 + $0xd0] sm:$0xff]
        %v337 = vld [vmem:[%s298 + $0xd8] sm:$0xff]
        %v338 = vld [vmem:[%s298 + $0xe0] sm:$0xff]
        %v339 = vld [vmem:[%s298 + $0xe8] sm:$0xff]
        %v340 = vld [vmem:[%s298 + $0xf0] sm:$0xff]
        %v341 = vld [vmem:[%s298 + $0xf8] sm:$0xff]
        %v342 = vld [vmem:[%s298 + $0x100] sm:$0xff]
        %v343 = vld [vmem:[%s298 + $0x108] sm:$0xff]
        %v344 = vld [vmem:[%s298 + $0x110] sm:$0xff]
        %v345 = vld [vmem:[%s298 + $0x118] sm:$0xff]
        %v346 = vld [vmem:[%s298 + $0x120] sm:$0xff]
        %v347 = vld [vmem:[%s298 + $0x128] sm:$0xff]
        %v348 = vld [vmem:[%s298 + $0x130] sm:$0xff]
        %v349 = vld [vmem:[%s298 + $0x138] sm:$0xff]
        %v350 = vld [vmem:[%s298 + $0x140] sm:$0xff]
        %v351 = vld [vmem:[%s298 + $0x148] sm:$0xff]
        %v352 = vld [vmem:[%s298 + $0x150] sm:$0xff]
        %v353 = vld [vmem:[%s298 + $0x158] sm:$0xff]
        %v354 = vld [vmem:[%s298 + $0x160] sm:$0xff]
        %v355 = vld [vmem:[%s298 + $0x168] sm:$0xff]
        %v356 = vld [vmem:[%s298 + $0x170] sm:$0xff]
        %v357 = vld [vmem:[%s298 + $0x178] sm:$0xff]
        %v358 = vld [vmem:[%s298 + $0x180] sm:$0xff]
        %v359 = vld [vmem:[%s298 + $0x188] sm:$0xff]
        %v360 = vld [vmem:[%s298 + $0x190] sm:$0xff]
        %v361 = vld [vmem:[%s298 + $0x198] sm:$0xff]
        %v362 = vld [vmem:[%s298 + $0x1a0] sm:$0xff]
        %v363 = vld [vmem:[%s298 + $0x1a8] sm:$0xff]
        %v364 = vld [vmem:[%s298 + $0x1b0] sm:$0xff]
        %v365 = vld [vmem:[%s298 + $0x1b8] sm:$0xff]
        %v366 = vld [vmem:[%s298 + $0x1c0] sm:$0xff]
        %v367 = vld [vmem:[%s298 + $0x1c8] sm:$0xff]
        %v368 = vld [vmem:[%s298 + $0x1d0] sm:$0xff]
        %v369 = vld [vmem:[%s298 + $0x1d8] sm:$0xff]
        %v370 = vld [vmem:[%s298 + $0x1e0] sm:$0xff]
        %v371 = vld [vmem:[%s298 + $0x1e8] sm:$0xff]
        %v372 = vld [vmem:[%s298 + $0x1f0] sm:$0xff]
        %v373 = vld [vmem:[%s298 + $0x1f8] sm:$0xff]
        %v374 = vld [vmem:[%s2] sm:$0xff]
        %v375 = vld [vmem:[%s2 + $0x8] sm:$0xff]
        %v376 = vld [vmem:[%s2 + $0x10] sm:$0xff]
        %v377 = vld [vmem:[%s2 + $0x18] sm:$0xff]
        %v378 = vld [vmem:[%s2 + $0x20] sm:$0xff]
        %v379 = vld [vmem:[%s2 + $0x28] sm:$0xff]
        %v380 = vld [vmem:[%s2 + $0x30] sm:$0xff]
        %v381 = vld [vmem:[%s2 + $0x38] sm:$0xff]
        %383 = vset.pattern.permute.xlu0 0
        %384 = vperm.xlu0 %383, %v374
        %v385 = vpop.permute.xlu0 %384
        %388 = vset.pattern.permute.xlu0 0
        %389 = vperm.xlu0 %388, %v375
        %v390 = vpop.permute.xlu0 %389
        %393 = vset.pattern.permute.xlu0 0
        %394 = vperm.xlu0 %393, %v376
        %v395 = vpop.permute.xlu0 %394
        %398 = vset.pattern.permute.xlu0 0
        %399 = vperm.xlu0 %398, %v377
        %v400 = vpop.permute.xlu0 %399
        %403 = vset.pattern.permute.xlu0 0
        %404 = vperm.xlu0 %403, %v378
        %v405 = vpop.permute.xlu0 %404
        %408 = vset.pattern.permute.xlu0 0
        %409 = vperm.xlu0 %408, %v379
        %v410 = vpop.permute.xlu0 %409
        %413 = vset.pattern.permute.xlu0 0
        %414 = vperm.xlu0 %413, %v380
        %v415 = vpop.permute.xlu0 %414
        %418 = vset.pattern.permute.xlu0 0
        %419 = vperm.xlu0 %418, %v381
        %v420 = vpop.permute.xlu0 %419
        %422 = vmatprep.subr.mxu0 0.0
        %423 = vmatpush1.xpose.msra.mxu0 %v310
        %424 = vmatprep.subr.mxu0 0.0
        %425 = vmatpush1.xpose.msra.mxu0 %v311
        %426 = vmatprep.subr.mxu0 0.0
        %427 = vmatpush1.xpose.msra.mxu0 %v312
        %428 = vmatprep.subr.mxu0 0.0
        %429 = vmatpush1.xpose.msra.mxu0 %v313
        %430 = vmatprep.subr.mxu0 0.0
        %431 = vmatpush1.xpose.msra.mxu0 %v314
        %432 = vmatprep.subr.mxu0 0.0
        %433 = vmatpush1.xpose.msra.mxu0 %v315
        %434 = vmatprep.subr.mxu0 0.0
        %435 = vmatpush1.xpose.msra.mxu0 %v316
        %436 = vmatprep.subr.mxu0 0.0
        %437 = vmatpush1.xpose.msra.mxu0 %v317
        %438 = vmatprep.subr.mxu0 0.0
        %439 = vmatpush1.xpose.msra.mxu0 %v318
        %440 = vmatprep.subr.mxu0 0.0
        %441 = vmatpush1.xpose.msra.mxu0 %v319
        %442 = vmatprep.subr.mxu0 0.0
        %443 = vmatpush1.xpose.msra.mxu0 %v320
        %444 = vmatprep.subr.mxu0 0.0
        %445 = vmatpush1.xpose.msra.mxu0 %v321
        %446 = vmatprep.subr.mxu0 0.0
        %447 = vmatpush1.xpose.msra.mxu0 %v322
        %448 = vmatprep.subr.mxu0 0.0
        %449 = vmatpush1.xpose.msra.mxu0 %v323
        %450 = vmatprep.subr.mxu0 0.0
        %451 = vmatpush1.xpose.msra.mxu0 %v324
        %452 = vmatprep.subr.mxu0 0.0
        %453 = vmatpush1.xpose.msra.mxu0 %v325
        %454 = vmatprep.subr.mxu0 0.0
        %455 = vmatpush1.xpose.msra.mxu0 %v326
        %456 = vmatprep.subr.mxu0 0.0
        %457 = vmatpush1.xpose.msra.mxu0 %v327
        %458 = vmatprep.subr.mxu0 0.0
        %459 = vmatpush1.xpose.msra.mxu0 %v328
        %460 = vmatprep.subr.mxu0 0.0
        %461 = vmatpush1.xpose.msra.mxu0 %v329
        %462 = vmatprep.subr.mxu0 0.0
        %463 = vmatpush1.xpose.msra.mxu0 %v330
        %464 = vmatprep.subr.mxu0 0.0
        %465 = vmatpush1.xpose.msra.mxu0 %v331
        %466 = vmatprep.subr.mxu0 0.0
        %467 = vmatpush1.xpose.msra.mxu0 %v332
        %468 = vmatprep.subr.mxu0 0.0
        %469 = vmatpush1.xpose.msra.mxu0 %v333
        %470 = vmatprep.subr.mxu0 0.0
        %471 = vmatpush1.xpose.msra.mxu0 %v334
        %472 = vmatprep.subr.mxu0 0.0
        %473 = vmatpush1.xpose.msra.mxu0 %v335
        %474 = vmatprep.subr.mxu0 0.0
        %475 = vmatpush1.xpose.msra.mxu0 %v336
        %476 = vmatprep.subr.mxu0 0.0
        %477 = vmatpush1.xpose.msra.mxu0 %v337
        %478 = vmatprep.subr.mxu0 0.0
        %479 = vmatpush1.xpose.msra.mxu0 %v338
        %480 = vmatprep.subr.mxu0 0.0
        %481 = vmatpush1.xpose.msra.mxu0 %v339
        %482 = vmatprep.subr.mxu0 0.0
        %483 = vmatpush1.xpose.msra.mxu0 %v340
        %484 = vmatprep.subr.mxu0 0.0
        %485 = vmatpush1.xpose.msra.mxu0 %v341
        %486 = vmatprep.mubr.f32.mxu0 0.0
        %487 = vmatmul.mubr.f32.gmra.mrb[0].mxu0 %v302
        %v488 = vpop.f32.mrb[0].mxu0
        %v489 = vadd.f32 %v385, %v488
        %v490 = vpop.f32.mrb[0].mxu0
        %v491 = vadd.f32 %v385, %v490
        %492 = vmatprep.mubr.f32.mxu0 0.0
        %493 = vmatmul.mubr.f32.gmra.mrb[0].mxu0 %v303
        %v494 = vpop.f32.mrb[0].mxu0
        %v495 = vadd.f32 %v390, %v494
        %v496 = vpop.f32.mrb[0].mxu0
        %v497 = vadd.f32 %v390, %v496
        %498 = vmatprep.mubr.f32.mxu0 0.0
        %499 = vmatmul.mubr.f32.gmra.mrb[0].mxu0 %v304
        %v500 = vpop.f32.mrb[0].mxu0
        %v501 = vadd.f32 %v395, %v500
        %v502 = vpop.f32.mrb[0].mxu0
        %v503 = vadd.f32 %v395, %v502
        %504 = vmatprep.mubr.f32.mxu0 0.0
        %505 = vmatmul.mubr.f32.gmra.mrb[0].mxu0 %v305
        %v506 = vpop.f32.mrb[0].mxu0
        %v507 = vadd.f32 %v400, %v506
        %v508 = vpop.f32.mrb[0].mxu0
        %v509 = vadd.f32 %v400, %v508
        %510 = vmatprep.mubr.f32.mxu0 0.0
        %511 = vmatmul.mubr.f32.gmra.mrb[0].mxu0 %v306
        %v512 = vpop.f32.mrb[0].mxu0
        %v513 = vadd.f32 %v405, %v512
        %v514 = vpop.f32.mrb[0].mxu0
        %v515 = vadd.f32 %v405, %v514
        %516 = vmatprep.mubr.f32.mxu0 0.0
        %517 = vmatmul.mubr.f32.gmra.mrb[0].mxu0 %v307
        %v518 = vpop.f32.mrb[0].mxu0
        %v519 = vadd.f32 %v410, %v518
        %v520 = vpop.f32.mrb[0].mxu0
        %v521 = vadd.f32 %v410, %v520
        %522 = vmatprep.mubr.f32.mxu0 0.0
        %523 = vmatmul.mubr.f32.gmra.mrb[0].mxu0 %v308
        %v524 = vpop.f32.mrb[0].mxu0
        %v525 = vadd.f32 %v415, %v524
        %v526 = vpop.f32.mrb[0].mxu0
        %v527 = vadd.f32 %v415, %v526
        %528 = vmatprep.mubr.f32.mxu0 0.0
        %529 = vmatmul.mubr.f32.gmra.mrb[0].mxu0 %v309
        %v530 = vpop.f32.mrb[0].mxu0
        %v531 = vadd.f32 %v420, %v530
        %v532 = vpop.f32.mrb[0].mxu0
        %v533 = vadd.f32 %v420, %v532
        %534 = vdwg.mxu0
        %535 = vmatprep.subr.mxu0 0.0
        %536 = vmatpush1.xpose.msra.mxu0 %v342
        %537 = vmatprep.subr.mxu0 0.0
        %538 = vmatpush1.xpose.msra.mxu0 %v343
        %539 = vmatprep.subr.mxu0 0.0
        %540 = vmatpush1.xpose.msra.mxu0 %v344
        %541 = vmatprep.subr.mxu0 0.0
        %542 = vmatpush1.xpose.msra.mxu0 %v345
        %543 = vmatprep.subr.mxu0 0.0
        %544 = vmatpush1.xpose.msra.mxu0 %v346
        %545 = vmatprep.subr.mxu0 0.0
        %546 = vmatpush1.xpose.msra.mxu0 %v347
        %547 = vmatprep.subr.mxu0 0.0
        %548 = vmatpush1.xpose.msra.mxu0 %v348
        %549 = vmatprep.subr.mxu0 0.0
        %550 = vmatpush1.xpose.msra.mxu0 %v349
        %551 = vmatprep.subr.mxu0 0.0
        %552 = vmatpush1.xpose.msra.mxu0 %v350
        %553 = vmatprep.subr.mxu0 0.0
        %554 = vmatpush1.xpose.msra.mxu0 %v351
        %555 = vmatprep.subr.mxu0 0.0
        %556 = vmatpush1.xpose.msra.mxu0 %v352
        %557 = vmatprep.subr.mxu0 0.0
        %558 = vmatpush1.xpose.msra.mxu0 %v353
        %559 = vmatprep.subr.mxu0 0.0
        %560 = vmatpush1.xpose.msra.mxu0 %v354
        %561 = vmatprep.subr.mxu0 0.0
        %562 = vmatpush1.xpose.msra.mxu0 %v355
        %563 = vmatprep.subr.mxu0 0.0
        %564 = vmatpush1.xpose.msra.mxu0 %v356
        %565 = vmatprep.subr.mxu0 0.0
        %566 = vmatpush1.xpose.msra.mxu0 %v357
        %567 = vmatprep.subr.mxu0 0.0
        %568 = vmatpush1.xpose.msra.mxu0 %v358
        %569 = vmatprep.subr.mxu0 0.0
        %570 = vmatpush1.xpose.msra.mxu0 %v359
        %571 = vmatprep.subr.mxu0 0.0
        %572 = vmatpush1.xpose.msra.mxu0 %v360
        %573 = vmatprep.subr.mxu0 0.0
        %574 = vmatpush1.xpose.msra.mxu0 %v361
        %575 = vmatprep.subr.mxu0 0.0
        %576 = vmatpush1.xpose.msra.mxu0 %v362
        %577 = vmatprep.subr.mxu0 0.0
        %578 = vmatpush1.xpose.msra.mxu0 %v363
        %579 = vmatprep.subr.mxu0 0.0
        %580 = vmatpush1.xpose.msra.mxu0 %v364
        %581 = vmatprep.subr.mxu0 0.0
        %582 = vmatpush1.xpose.msra.mxu0 %v365
        %583 = vmatprep.subr.mxu0 0.0
        %584 = vmatpush1.xpose.msra.mxu0 %v366
        %585 = vmatprep.subr.mxu0 0.0
        %586 = vmatpush1.xpose.msra.mxu0 %v367
        %587 = vmatprep.subr.mxu0 0.0
        %588 = vmatpush1.xpose.msra.mxu0 %v368
        %589 = vmatprep.subr.mxu0 0.0
        %590 = vmatpush1.xpose.msra.mxu0 %v369
        %591 = vmatprep.subr.mxu0 0.0
        %592 = vmatpush1.xpose.msra.mxu0 %v370
        %593 = vmatprep.subr.mxu0 0.0
        %594 = vmatpush1.xpose.msra.mxu0 %v371
        %595 = vmatprep.subr.mxu0 0.0
        %596 = vmatpush1.xpose.msra.mxu0 %v372
        %597 = vmatprep.subr.mxu0 0.0
        %598 = vmatpush1.xpose.msra.mxu0 %v373
        %599 = vmatprep.mubr.f32.mxu0 0.0
        %600 = vmatmul.mubr.f32.gmra.mrb[0].mxu0 %v302
        %v601 = vpop.f32.mrb[0].mxu0
        %v602 = vadd.f32 %v385, %v601
        %v603 = vpop.f32.mrb[0].mxu0
        %v604 = vadd.f32 %v385, %v603
        %605 = vmatprep.mubr.f32.mxu0 0.0
        %606 = vmatmul.mubr.f32.gmra.mrb[0].mxu0 %v303
        %v607 = vpop.f32.mrb[0].mxu0
        %v608 = vadd.f32 %v390, %v607
        %v609 = vpop.f32.mrb[0].mxu0
        %v610 = vadd.f32 %v390, %v609
        %611 = vmatprep.mubr.f32.mxu0 0.0
        %612 = vmatmul.mubr.f32.gmra.mrb[0].mxu0 %v304
        %v613 = vpop.f32.mrb[0].mxu0
        %v614 = vadd.f32 %v395, %v613
        %v615 = vpop.f32.mrb[0].mxu0
        %v616 = vadd.f32 %v395, %v615
        %617 = vmatprep.mubr.f32.mxu0 0.0
        %618 = vmatmul.mubr.f32.gmra.mrb[0].mxu0 %v305
        %v619 = vpop.f32.mrb[0].mxu0
        %v620 = vadd.f32 %v400, %v619
        %v621 = vpop.f32.mrb[0].mxu0
        %v622 = vadd.f32 %v400, %v621
        %623 = vmatprep.mubr.f32.mxu0 0.0
        %624 = vmatmul.mubr.f32.gmra.mrb[0].mxu0 %v306
        %v625 = vpop.f32.mrb[0].mxu0
        %v626 = vadd.f32 %v405, %v625
        %v627 = vpop.f32.mrb[0].mxu0
        %v628 = vadd.f32 %v405, %v627
        %629 = vmatprep.mubr.f32.mxu0 0.0
        %630 = vmatmul.mubr.f32.gmra.mrb[0].mxu0 %v307
        %v631 = vpop.f32.mrb[0].mxu0
        %v632 = vadd.f32 %v410, %v631
        %v633 = vpop.f32.mrb[0].mxu0
        %v634 = vadd.f32 %v410, %v633
        %635 = vmatprep.mubr.f32.mxu0 0.0
        %636 = vmatmul.mubr.f32.gmra.mrb[0].mxu0 %v308
        %v637 = vpop.f32.mrb[0].mxu0
        %v638 = vadd.f32 %v415, %v637
        %v639 = vpop.f32.mrb[0].mxu0
        %v640 = vadd.f32 %v415, %v639
        %641 = vmatprep.mubr.f32.mxu0 0.0
        %642 = vmatmul.mubr.f32.gmra.mrb[0].mxu0 %v309
        %v643 = vpop.f32.mrb[0].mxu0
        %v644 = vadd.f32 %v420, %v643
        %v645 = vpop.f32.mrb[0].mxu0
        %v646 = vadd.f32 %v420, %v645
        %647 = vdwg.mxu0
        %v648 = vld [vmem:[%s266] sm:$0xff]
        %v649 = vld [vmem:[%s266 + $0x8] sm:$0xff]
        %v650 = vld [vmem:[%s266 + $0x10] sm:$0xff]
        %v651 = vld [vmem:[%s266 + $0x18] sm:$0xff]
        %v652 = vld [vmem:[%s266 + $0x20] sm:$0xff]
        %v653 = vld [vmem:[%s266 + $0x28] sm:$0xff]
        %v654 = vld [vmem:[%s266 + $0x30] sm:$0xff]
        %v655 = vld [vmem:[%s266 + $0x38] sm:$0xff]
        %v656 = vld [vmem:[%s266 + $0x40] sm:$0xff]
        %v657 = vld [vmem:[%s266 + $0x48] sm:$0xff]
        %v658 = vld [vmem:[%s266 + $0x50] sm:$0xff]
        %v659 = vld [vmem:[%s266 + $0x58] sm:$0xff]
        %v660 = vld [vmem:[%s266 + $0x60] sm:$0xff]
        %v661 = vld [vmem:[%s266 + $0x68] sm:$0xff]
        %v662 = vld [vmem:[%s266 + $0x70] sm:$0xff]
        %v663 = vld [vmem:[%s266 + $0x78] sm:$0xff]
        %v664 = vld [vmem:[%s266 + $0x80] sm:$0xff]
        %v665 = vld [vmem:[%s266 + $0x88] sm:$0xff]
        %v666 = vld [vmem:[%s266 + $0x90] sm:$0xff]
        %v667 = vld [vmem:[%s266 + $0x98] sm:$0xff]
        %v668 = vld [vmem:[%s266 + $0xa0] sm:$0xff]
        %v669 = vld [vmem:[%s266 + $0xa8] sm:$0xff]
        %v670 = vld [vmem:[%s266 + $0xb0] sm:$0xff]
        %v671 = vld [vmem:[%s266 + $0xb8] sm:$0xff]
        %v672 = vld [vmem:[%s266 + $0xc0] sm:$0xff]
        %v673 = vld [vmem:[%s266 + $0xc8] sm:$0xff]
        %v674 = vld [vmem:[%s266 + $0xd0] sm:$0xff]
        %v675 = vld [vmem:[%s266 + $0xd8] sm:$0xff]
        %v676 = vld [vmem:[%s266 + $0xe0] sm:$0xff]
        %v677 = vld [vmem:[%s266 + $0xe8] sm:$0xff]
        %v678 = vld [vmem:[%s266 + $0xf0] sm:$0xff]
        %v679 = vld [vmem:[%s266 + $0xf8] sm:$0xff]
        %v680 = vadd.f32 %v489, %v648
        %v681 = vadd.f32 %v491, %v649
        %v682 = vadd.f32 %v602, %v650
        %v683 = vadd.f32 %v604, %v651
        %v684 = vadd.f32 %v495, %v652
        %v685 = vadd.f32 %v497, %v653
        %v686 = vadd.f32 %v608, %v654
        %v687 = vadd.f32 %v610, %v655
        %v688 = vadd.f32 %v501, %v656
        %v689 = vadd.f32 %v503, %v657
        %v690 = vadd.f32 %v614, %v658
        %v691 = vadd.f32 %v616, %v659
        %v692 = vadd.f32 %v507, %v660
        %v693 = vadd.f32 %v509, %v661
        %v694 = vadd.f32 %v620, %v662
        %v695 = vadd.f32 %v622, %v663
        %v696 = vadd.f32 %v513, %v664
        %v697 = vadd.f32 %v515, %v665
        %v698 = vadd.f32 %v626, %v666
        %v699 = vadd.f32 %v628, %v667
        %v700 = vadd.f32 %v519, %v668
        %v701 = vadd.f32 %v521, %v669
        %v702 = vadd.f32 %v632, %v670
        %v703 = vadd.f32 %v634, %v671
        %v704 = vadd.f32 %v525, %v672
        %v705 = vadd.f32 %v527, %v673
        %v706 = vadd.f32 %v638, %v674
        %v707 = vadd.f32 %v640, %v675
        %v708 = vadd.f32 %v531, %v676
        %v709 = vadd.f32 %v533, %v677
        %v710 = vadd.f32 %v644, %v678
        %v711 = vadd.f32 %v646, %v679
        %712 = vst [vmem:[%s293] sm:$0xff] %v680
        %713 = vst [vmem:[%s293 + $0x8] sm:$0xff] %v681
        %714 = vst [vmem:[%s293 + $0x10] sm:$0xff] %v682
        %715 = vst [vmem:[%s293 + $0x18] sm:$0xff] %v683
        %716 = vst [vmem:[%s293 + $0x20] sm:$0xff] %v684
        %717 = vst [vmem:[%s293 + $0x28] sm:$0xff] %v685
        %718 = vst [vmem:[%s293 + $0x30] sm:$0xff] %v686
        %719 = vst [vmem:[%s293 + $0x38] sm:$0xff] %v687
        %720 = vst [vmem:[%s293 + $0x40] sm:$0xff] %v688
        %721 = vst [vmem:[%s293 + $0x48] sm:$0xff] %v689
        %722 = vst [vmem:[%s293 + $0x50] sm:$0xff] %v690
        %723 = vst [vmem:[%s293 + $0x58] sm:$0xff] %v691
        %724 = vst [vmem:[%s293 + $0x60] sm:$0xff] %v692
        %725 = vst [vmem:[%s293 + $0x68] sm:$0xff] %v693
        %726 = vst [vmem:[%s293 + $0x70] sm:$0xff] %v694
        %727 = vst [vmem:[%s293 + $0x78] sm:$0xff] %v695
        %728 = vst [vmem:[%s293 + $0x80] sm:$0xff] %v696
        %729 = vst [vmem:[%s293 + $0x88] sm:$0xff] %v697
        %730 = vst [vmem:[%s293 + $0x90] sm:$0xff] %v698
        %731 = vst [vmem:[%s293 + $0x98] sm:$0xff] %v699
        %732 = vst [vmem:[%s293 + $0xa0] sm:$0xff] %v700
        %733 = vst [vmem:[%s293 + $0xa8] sm:$0xff] %v701
        %734 = vst [vmem:[%s293 + $0xb0] sm:$0xff] %v702
        %735 = vst [vmem:[%s293 + $0xb8] sm:$0xff] %v703
        %736 = vst [vmem:[%s293 + $0xc0] sm:$0xff] %v704
        %737 = vst [vmem:[%s293 + $0xc8] sm:$0xff] %v705
        %738 = vst [vmem:[%s293 + $0xd0] sm:$0xff] %v706
        %739 = vst [vmem:[%s293 + $0xd8] sm:$0xff] %v707
        %740 = vst [vmem:[%s293 + $0xe0] sm:$0xff] %v708
        %741 = vst [vmem:[%s293 + $0xe8] sm:$0xff] %v709
        %742 = vst [vmem:[%s293 + $0xf0] sm:$0xff] %v710
        %743 = vst [vmem:[%s293 + $0xf8] sm:$0xff] %v711
        %s744 = sand.u32 %s120, 1
        %s745 = scalar_lea.sflag [#allocation4], %s744
        %s746 = sand.u32 %s120, 1
        %s747 = smul.addr %s746, 256
        %s748 = scalar_lea.vmem [#allocation3], %s747
        // Predicated region
        $region60: #{stcn_block.5} parent=54 // pred_check
          %p749 = pneg %p130
        $region61: #{stcn_block.5} parent=54 // pred_check_branch
          %751 = sbr.rel (%p749) target = $region63
        $region62: #{stcn_block.5} parent=54 // pred_region
          %s752 = smul.u32 4, %s18
          %s754 = ssub.s32 4096, 4096
          %755 = vsyncadd %s745, %s754
          %s756 = smul.addr %s752, 128
          %s757 = scalar_lea.hbm %s4, %s756
          %s758 = sshll.u32 %s748, 4
          %s759 = int_to_ptr.vmem [resolvable:$true] %s758
          %764 = dma.vmem_to_hbm [thread:$0]  %s759, 4096, %s757, %s745, 512, 1024, 32
        $region63: #{stcn_block.5} parent=54 // pred_fallthru
          _
      $region55: #{stcn_block.5} parent=5 // pred_fallthru
        _
      %p765 = scmp.le.s32.totalorder 2, %s13
      // Predicated region
      $region64: #{stcn_block.5} parent=5 // pred_check
        %p766 = pneg %p765
      $region65: #{stcn_block.5} parent=5 // pred_check_branch
        %768 = sbr.rel (%p766) target = $region67
      $region66: #{stcn_block.5} parent=5 // pred_region
        %s769 = ssub.s32 %s13, 2
        // Predicated region
        $region68: #{stcn_block.5} parent=66 // pred_check
          %p770 = pneg %p136
        $region69: #{stcn_block.5} parent=66 // pred_check_branch
          %772 = sbr.rel (%p770) target = $region71
        $region70: #{stcn_block.5} parent=66 // pred_region
          %s773 = sand.u32 %s121, 1
          %s774 = scalar_lea.sflag [#allocation4], %s773
          %s775 = sand.u32 %s121, 1
          %s776 = smul.addr %s775, 256
          %s777 = scalar_lea.vmem [#allocation3], %s776
          %778 = dma.done %s774, 4096
        $region71: #{stcn_block.5} parent=66 // pred_fallthru
          _
      $region67: #{stcn_block.5} parent=5 // pred_fallthru
        _
    $region6: #{stcn_block.5} parent=1 // loop_footer
      %s17 = sadd.s32 1, %s13
    $region7: #{stcn_block.5} parent=1 // loop_footer_branch
      %12 = sbr.rel target = $region3
    $region8: #{stcn_block.5} parent=1 // loop_exit
      _
    %779 = vsyncpa [#allocation4], 1
    %s780 = scalar_lea.sflag [#allocation4], 1
    %781 = vsyncpa %s780, 1

// kernel: stcn_block.3
$region0: #{stcn_block.3}
  #allocation0 [shape = 'u32[]', space=smem, size = 0x4, offset = 0x4, fixed_abs, tag = 'smem constant byte address 0x4 - core index']
  #allocation1 [shape = 'u32[144,128]{1,0:T(1,128)}', space=vmem, size = 0x12000, scoped, tag = 'internal scratch']
  #allocation2 [shape = 'f32[1,1]{1,0:T(1,128)S(1)}', space=vmem, size = 0x200, scoped, tag = 'scoped memory for stcn_block.3']
  %s0 = inlined_call_operand.hbm [shape: f32[64,1024], index: 0, kind: input, shape index: {}]
  %s1 = inlined_call_operand.hbm [shape: f32[64,128], index: 1, kind: input, shape index: {}]
  %s2 = inlined_call_operand.vmem [shape: f32[1,128], index: 2, kind: input, shape index: {}]
  %s3 = inlined_call_operand.<no memory space> [shape: f32[1,1], index: 3, kind: input, shape index: {}]
  %s4 = inlined_call_operand.vmem [shape: f32[1024,128], index: 4, kind: output, shape index: {0}]
  %s5 = inlined_call_operand.vmem [shape: f32[2,1,128], index: 5, kind: output, shape index: {1}]
  %s6 = inlined_call_operand.vmem [shape: f32[2,1,128], index: 6, kind: output, shape index: {2}]
  %7 = xla_tuple %s4, %s5, %s6
  %s8 = sld [smem:[#allocation0]]
  $region77: #{stcn_block.3} parent=0
    _
  %s10 = ssub.s32 1, %s8
  %s11 = scalar_select 0, %s10, %s8
  %v12 = vstv %s3
  %13 = vst [vmem:[#allocation2] sm:$0x1] %v12
  $region1: #{stcn_block.3} parent=0
    #allocation3 [shape = 'u8[262144]{0}', space=vmem, size = 0x40000, scoped, tag = 'input window, operand 0']
    #allocation4 [shape = 's32[2]{0}', space=sflag, size = 0x8, scoped, tag = 'scoped memory for stcn_block.3']
    #allocation5 [shape = 'u8[32768]{0}', space=vmem, size = 0x8000, scoped, tag = 'input window, operand 1, single buffered']
    #allocation6 [shape = 's32[1]{0}', space=sflag, size = 0x4, scoped, tag = 'scoped memory for stcn_block.3']
    %14 = vsyncpa [#allocation4], 0
    %s15 = scalar_lea.sflag [#allocation4], 1
    %16 = vsyncpa %s15, 0
    %17 = vsyncpa [#allocation6], 0
    loop: start=0, step=1, limit=4
    $region2: #{stcn_block.3} parent=1 // loop_pre_header
      _
    $region3: #{stcn_block.3} parent=1 // loop_header
      %s19 = sphi 0, %s23
      %p20 = scmp.ge.s32.totalorder %s19, 4
      %s26 = sphi 0, %s38
      %s27 = sphi 0, %s34
      %s28 = sphi 0, %s26
      %s29 = sphi 0, %s27
      %s30 = sphi 0, %s28
      %s31 = sphi 0, %s29
      %s43 = sphi 0, %s45
      %s46 = sphi 0, %s43
      %s47 = sphi 0, %s46
      %s63 = sphi 0, %s47
      %s67 = sphi 0, %s67
      %s69 = sphi 0, %s67
      %s70 = sphi 0, %s69
      %s84 = sphi 0, %s70
      %s88 = sphi 0, %s88
      %s90 = sphi 0, %s88
      %s91 = sphi 0, %s90
      %s105 = sphi 0, %s91
      %s109 = sphi 0, %s109
      %s111 = sphi 0, %s109
      %s112 = sphi 0, %s111
      %s126 = sphi 0, %s112
      %s134 = sphi 0, %s136
      %s137 = sphi 0, %s134
      %s138 = sphi 0, %s137
      %s154 = sphi 0, %s138
      %s160 = sphi 0, %s162
      %s163 = sphi 0, %s160
      %s164 = sphi 0, %s163
      %s180 = sphi 0, %s164
      %s186 = sphi 0, %s188
      %s189 = sphi 0, %s186
      %s190 = sphi 0, %s189
      %s206 = sphi 0, %s190
    $region4: #{stcn_block.3} parent=1 // loop_header_branch
      %22 = sbr.rel (%p20) target = $region8
    $region5: #{stcn_block.3} parent=1 // loop_body
      %s24 = ssub.s32 %s19, 1
      %s25 = ssub.s32 %s19, 2
      %s32 = sadd.s32 1, %s27
      %p33 = scmp.ge.s32.totalorder %s32, 1
      %s34 = scalar_select %p33, 0, %s32
      %s35 = sadd.s32 1, %s26
      %s36 = scalar_select %p33, %s35, %s26
      %p37 = scmp.ge.s32.totalorder %s36, 2
      %s38 = scalar_select %p37, 0, %s36
      %s39 = sadd.s32 %s26, %s27
      %s40 = sadd.s32 %s38, %s34
      %s41 = ssub.s32 %s39, %s40
      %p42 = scmp.eq.s32.totalorder %s41, 0
      %s44 = sadd.s32 %s43, 1
      %s45 = scalar_select %p42, %s43, %s44
      %p48 = pneg %p42
      %p49 = scmp.eq.s32.totalorder %s19, 1
      %p50 = por %p48, %p49
      %p51 = scmp.ne.s32.totalorder %s43, %s46
      %p52 = scmp.eq.s32.totalorder %s19, 0
      %p53 = por %p51, %p52
      %p54 = scmp.ne.s32.totalorder %s43, %s46
      %p55 = scmp.eq.s32.totalorder %s24, 1
      %p56 = por %p54, %p55
      %p57 = scmp.ne.s32.totalorder %s46, %s47
      %p58 = scmp.eq.s32.totalorder %s24, 0
      %p59 = por %p57, %p58
      %p60 = scmp.ne.s32.totalorder %s46, %s47
      %p61 = scmp.eq.s32.totalorder %s25, 1
      %p62 = por %p60, %p61
      %p64 = scmp.ne.s32.totalorder %s47, %s63
      %p65 = scmp.eq.s32.totalorder %s25, 0
      %p66 = por %p64, %p65
      %s68 = sadd.s32 %s67, 1
      %p71 = scmp.eq.s32.totalorder %s19, 1
      %p72 = scmp.ne.s32.totalorder %s67, %s69
      %p73 = scmp.eq.s32.totalorder %s19, 0
      %p74 = por %p72, %p73
      %p75 = scmp.ne.s32.totalorder %s67, %s69
      %p76 = scmp.eq.s32.totalorder %s24, 1
      %p77 = por %p75, %p76
      %p78 = scmp.ne.s32.totalorder %s69, %s70
      %p79 = scmp.eq.s32.totalorder %s24, 0
      %p80 = por %p78, %p79
      %p81 = scmp.ne.s32.totalorder %s69, %s70
      %p82 = scmp.eq.s32.totalorder %s25, 1
      %p83 = por %p81, %p82
      %p85 = scmp.ne.s32.totalorder %s70, %s84
      %p86 = scmp.eq.s32.totalorder %s25, 0
      %p87 = por %p85, %p86
      %s89 = sadd.s32 %s88, 1
      %p92 = scmp.eq.s32.totalorder %s19, 1
      %p93 = scmp.ne.s32.totalorder %s88, %s90
      %p94 = scmp.eq.s32.totalorder %s19, 0
      %p95 = por %p93, %p94
      %p96 = scmp.ne.s32.totalorder %s88, %s90
      %p97 = scmp.eq.s32.totalorder %s24, 1
      %p98 = por %p96, %p97
      %p99 = scmp.ne.s32.totalorder %s90, %s91
      %p100 = scmp.eq.s32.totalorder %s24, 0
      %p101 = por %p99, %p100
      %p102 = scmp.ne.s32.totalorder %s90, %s91
      %p103 = scmp.eq.s32.totalorder %s25, 1
      %p104 = por %p102, %p103
      %p106 = scmp.ne.s32.totalorder %s91, %s105
      %p107 = scmp.eq.s32.totalorder %s25, 0
      %p108 = por %p106, %p107
      %s110 = sadd.s32 %s109, 1
      %p113 = scmp.eq.s32.totalorder %s19, 1
      %p114 = scmp.ne.s32.totalorder %s109, %s111
      %p115 = scmp.eq.s32.totalorder %s19, 0
      %p116 = por %p114, %p115
      %p117 = scmp.ne.s32.totalorder %s109, %s111
      %p118 = scmp.eq.s32.totalorder %s24, 1
      %p119 = por %p117, %p118
      %p120 = scmp.ne.s32.totalorder %s111, %s112
      %p121 = scmp.eq.s32.totalorder %s24, 0
      %p122 = por %p120, %p121
      %p123 = scmp.ne.s32.totalorder %s111, %s112
      %p124 = scmp.eq.s32.totalorder %s25, 1
      %p125 = por %p123, %p124
      %p127 = scmp.ne.s32.totalorder %s112, %s126
      %p128 = scmp.eq.s32.totalorder %s25, 0
      %p129 = por %p127, %p128
      %s130 = sadd.s32 %s26, %s27
      %s131 = sadd.s32 %s38, %s34
      %s132 = ssub.s32 %s130, %s131
      %p133 = scmp.eq.s32.totalorder %s132, 0
      %s135 = sadd.s32 %s134, 1
      %s136 = scalar_select %p133, %s134, %s135
      %p139 = pneg %p133
      %p140 = scmp.eq.s32.totalorder %s19, 1
      %p141 = por %p139, %p140
      %p142 = scmp.ne.s32.totalorder %s134, %s137
      %p143 = scmp.eq.s32.totalorder %s19, 0
      %p144 = por %p142, %p143
      %p145 = scmp.ne.s32.totalorder %s134, %s137
      %p146 = scmp.eq.s32.totalorder %s24, 1
      %p147 = por %p145, %p146
      %p148 = scmp.ne.s32.totalorder %s137, %s138
      %p149 = scmp.eq.s32.totalorder %s24, 0
      %p150 = por %p148, %p149
      %p151 = scmp.ne.s32.totalorder %s137, %s138
      %p152 = scmp.eq.s32.totalorder %s25, 1
      %p153 = por %p151, %p152
      %p155 = scmp.ne.s32.totalorder %s138, %s154
      %p156 = scmp.eq.s32.totalorder %s25, 0
      %p157 = por %p155, %p156
      %s158 = ssub.s32 %s26, %s38
      %p159 = scmp.eq.s32.totalorder %s158, 0
      %s161 = sadd.s32 %s160, 1
      %s162 = scalar_select %p159, %s160, %s161
      %p165 = pneg %p159
      %p166 = scmp.eq.s32.totalorder %s19, 1
      %p167 = por %p165, %p166
      %p168 = scmp.ne.s32.totalorder %s160, %s163
      %p169 = scmp.eq.s32.totalorder %s19, 0
      %p170 = por %p168, %p169
      %p171 = scmp.ne.s32.totalorder %s160, %s163
      %p172 = scmp.eq.s32.totalorder %s24, 1
      %p173 = por %p171, %p172
      %p174 = scmp.ne.s32.totalorder %s163, %s164
      %p175 = scmp.eq.s32.totalorder %s24, 0
      %p176 = por %p174, %p175
      %p177 = scmp.ne.s32.totalorder %s163, %s164
      %p178 = scmp.eq.s32.totalorder %s25, 1
      %p179 = por %p177, %p178
      %p181 = scmp.ne.s32.totalorder %s164, %s180
      %p182 = scmp.eq.s32.totalorder %s25, 0
      %p183 = por %p181, %p182
      %s184 = ssub.s32 %s26, %s38
      %p185 = scmp.eq.s32.totalorder %s184, 0
      %s187 = sadd.s32 %s186, 1
      %s188 = scalar_select %p185, %s186, %s187
      %p191 = pneg %p185
      %p192 = scmp.eq.s32.totalorder %s19, 1
      %p193 = por %p191, %p192
      %p194 = scmp.ne.s32.totalorder %s186, %s189
      %p195 = scmp.eq.s32.totalorder %s19, 0
      %p196 = por %p194, %p195
      %p197 = scmp.ne.s32.totalorder %s186, %s189
      %p198 = scmp.eq.s32.totalorder %s24, 1
      %p199 = por %p197, %p198
      %p200 = scmp.ne.s32.totalorder %s189, %s190
      %p201 = scmp.eq.s32.totalorder %s24, 0
      %p202 = por %p200, %p201
      %p203 = scmp.ne.s32.totalorder %s189, %s190
      %p204 = scmp.eq.s32.totalorder %s25, 1
      %p205 = por %p203, %p204
      %p207 = scmp.ne.s32.totalorder %s190, %s206
      %p208 = scmp.eq.s32.totalorder %s25, 0
      %p209 = por %p207, %p208
      %p210 = scmp.le.s32.totalorder 1, %s19
      %p211 = scmp.lt.s32.totalorder %s19, 3
      %p212 = pnand %p210, %p211
      %p213 = pneg %p212
      // Predicated region
      $region9: #{stcn_block.3} parent=5 // pred_check
        _
      $region10: #{stcn_block.3} parent=5 // pred_check_branch
        %215 = sbr.rel (%p212) target = $region12
      $region11: #{stcn_block.3} parent=5 // pred_region
        %s216 = ssub.s32 %s19, 1
        // Predicated region
        $region13: #{stcn_block.3} parent=11 // pred_check
          %p217 = pneg %p80
        $region14: #{stcn_block.3} parent=11 // pred_check_branch
          %219 = sbr.rel (%p217) target = $region16
        $region15: #{stcn_block.3} parent=11 // pred_region
          %s221 = ssub.s32 1024, 1024
          %222 = vsyncadd [#allocation6], %s221
          %s223 = sshll.u32 [#allocation5], 4
          %s224 = int_to_ptr.vmem [resolvable:$true] %s223
          %229 = dma.hbm_to_vmem [thread:$0]  %s1, 1024, %s224, [#allocation6], 128, 128, 8
        $region16: #{stcn_block.3} parent=11 // pred_fallthru
          _
        // Predicated region
        $region17: #{stcn_block.3} parent=11 // pred_check
          %p230 = pneg %p101
        $region18: #{stcn_block.3} parent=11 // pred_check_branch
          %232 = sbr.rel (%p230) target = $region20
        $region19: #{stcn_block.3} parent=11 // pred_region
          _
        $region20: #{stcn_block.3} parent=11 // pred_fallthru
          _
        // Predicated region
        $region21: #{stcn_block.3} parent=11 // pred_check
          %p233 = pneg %p122
        $region22: #{stcn_block.3} parent=11 // pred_check_branch
          %235 = sbr.rel (%p233) target = $region24
        $region23: #{stcn_block.3} parent=11 // pred_region
          _
        $region24: #{stcn_block.3} parent=11 // pred_fallthru
          _
      $region12: #{stcn_block.3} parent=5 // pred_fallthru
        _
      %p236 = scmp.lt.s32.totalorder %s19, 2
      // Predicated region
      $region25: #{stcn_block.3} parent=5 // pred_check
        %p237 = pneg %p236
      $region26: #{stcn_block.3} parent=5 // pred_check_branch
        %239 = sbr.rel (%p237) target = $region28
      $region27: #{stcn_block.3} parent=5 // pred_region
        // Predicated region
        $region29: #{stcn_block.3} parent=27 // pred_check
          %p240 = pneg %p53
        $region30: #{stcn_block.3} parent=27 // pred_check_branch
          %242 = sbr.rel (%p240) target = $region32
        $region31: #{stcn_block.3} parent=27 // pred_region
          %s243 = sand.u32 %s43, 1
          %s244 = scalar_lea.sflag [#allocation4], %s243
          %s245 = sand.u32 %s43, 1
          %s246 = smul.addr %s245, 256
          %s247 = scalar_lea.vmem [#allocation3], %s246
          %s248 = sadd.s32 %s26, %s27
          %s249 = smul.u32 4, %s248
          %s251 = ssub.s32 4096, 4096
          %252 = vsyncadd %s244, %s251
          %s253 = smul.addr %s249, 128
          %s254 = scalar_lea.hbm %s0, %s253
          %s255 = sshll.u32 %s247, 4
          %s256 = int_to_ptr.vmem [resolvable:$true] %s255
          %261 = dma.hbm_to_vmem [thread:$0]  %s254, 4096, %s256, %s244, 1024, 512, 32
        $region32: #{stcn_block.3} parent=27 // pred_fallthru
          _
      $region28: #{stcn_block.3} parent=5 // pred_fallthru
        _
      %p262 = scmp.le.s32.totalorder 1, %s19
      %p263 = scmp.lt.s32.totalorder %s19, 3
      %p264 = pnand %p262, %p263
      %p265 = pneg %p264
      // Predicated region
      $region33: #{stcn_block.3} parent=5 // pred_check
        _
      $region34: #{stcn_block.3} parent=5 // pred_check_branch
        %267 = sbr.rel (%p264) target = $region36
      $region35: #{stcn_block.3} parent=5 // pred_region
        %s268 = ssub.s32 %s19, 1
        %s269 = sand.u32 %s46, 1
        %s270 = scalar_lea.sflag [#allocation4], %s269
        %s271 = sand.u32 %s46, 1
        %s272 = smul.addr %s271, 256
        %s273 = scalar_lea.vmem [#allocation3], %s272
        // Predicated region
        $region37: #{stcn_block.3} parent=35 // pred_check
          %p274 = pneg %p59
        $region38: #{stcn_block.3} parent=35 // pred_check_branch
          %276 = sbr.rel (%p274) target = $region40
        $region39: #{stcn_block.3} parent=35 // pred_region
          %277 = dma.done %s270, 4096
        $region40: #{stcn_block.3} parent=35 // pred_fallthru
          _
        // Predicated region
        $region41: #{stcn_block.3} parent=35 // pred_check
          %p278 = pneg %p80
        $region42: #{stcn_block.3} parent=35 // pred_check_branch
          %280 = sbr.rel (%p278) target = $region44
        $region43: #{stcn_block.3} parent=35 // pred_region
          %281 = dma.done [#allocation6], 1024
        $region44: #{stcn_block.3} parent=35 // pred_fallthru
          _
        %s282 = sand.u32 %s46, 1
        %s283 = scalar_lea.sflag [#allocation4], %s282
        %s284 = sand.u32 %s46, 1
        %s285 = smul.addr %s284, 256
        %s286 = scalar_lea.vmem [#allocation3], %s285
        %p287 = pneg %p59
        %p288 = pneg %p56
        %p289 = pneg %p80
        %p290 = pneg %p77
        %p291 = pneg %p101
        %p292 = pneg %p98
        %p293 = pneg %p122
        %p294 = pneg %p119
        %p295 = pneg %p150
        %p296 = pneg %p147
        %s297 = sadd.s32 %s28, %s29
        %s298 = smul.u32 64, %s297
        %p299 = scmp.lt.s32.totalorder %s298, 127
        %s300 = scalar_select %p299, %s298, 127
        %s301 = smul.addr %s300, 8
        %s302 = scalar_lea.vmem %s4, %s301
        %p303 = pneg %p176
        %p304 = pneg %p173
        %p305 = scmp.lt.s32.totalorder %s28, 1
        %s306 = scalar_select %p305, %s28, 1
        %s307 = scalar_lea.vmem %s5, %s306
        %p308 = pneg %p202
        %p309 = pneg %p199
        %p310 = scmp.lt.s32.totalorder %s28, 1
        %s311 = scalar_select %p310, %s28, 1
        %s312 = scalar_lea.vmem %s6, %s311
        %s313 = sadd.s32 %s28, %s29
        %s314 = smul.u32 4, %s313
        %s315 = sadd.s32 %s28, %s29
        %s316 = smul.u32 64, %s315
        %p317 = scmp.lt.s32.totalorder %s316, 127
        %s318 = scalar_select %p317, %s316, 127
        %s319 = smul.addr %s318, 8
        %s320 = scalar_lea.vmem %s4, %s319
        %s321 = sadd.s32 %s28, %s29
        %s322 = smul.u32 64, %s321
        %p323 = scmp.lt.s32.totalorder %s28, 1
        %s324 = scalar_select %p323, %s28, 1
        %s325 = scalar_lea.vmem %s5, %s324
        %p326 = scmp.lt.s32.totalorder %s28, 1
        %s327 = scalar_select %p326, %s28, 1
        %s328 = scalar_lea.vmem %s6, %s327
        %p329 = scmp.eq.s32.totalorder %s29, 0
        // Predicated region
        $region45: #{stcn_block.3} parent=35 // pred_check
          %p330 = pneg %p329
        $region46: #{stcn_block.3} parent=35 // pred_check_branch
          %332 = sbr.rel (%p330) target = $region48
        $region47: #{stcn_block.3} parent=35 // pred_region
          %333 = vst [vmem:[%s325] sm:$0x1] 0.0
          %334 = vst [vmem:[%s328] sm:$0x1] 0.0
        $region48: #{stcn_block.3} parent=35 // pred_fallthru
          _
        %v335 = vld [vmem:[%s273] sm:$0xff]
        %v336 = vld [vmem:[%s273 + $0x8] sm:$0xff]
        %v337 = vld [vmem:[%s273 + $0x10] sm:$0xff]
        %v338 = vld [vmem:[%s273 + $0x18] sm:$0xff]
        %v339 = vld [vmem:[%s273 + $0x20] sm:$0xff]
        %v340 = vld [vmem:[%s273 + $0x28] sm:$0xff]
        %v341 = vld [vmem:[%s273 + $0x30] sm:$0xff]
        %v342 = vld [vmem:[%s273 + $0x38] sm:$0xff]
        %v343 = vld [vmem:[%s273 + $0x40] sm:$0xff]
        %v344 = vld [vmem:[%s273 + $0x48] sm:$0xff]
        %v345 = vld [vmem:[%s273 + $0x50] sm:$0xff]
        %v346 = vld [vmem:[%s273 + $0x58] sm:$0xff]
        %v347 = vld [vmem:[%s273 + $0x60] sm:$0xff]
        %v348 = vld [vmem:[%s273 + $0x68] sm:$0xff]
        %v349 = vld [vmem:[%s273 + $0x70] sm:$0xff]
        %v350 = vld [vmem:[%s273 + $0x78] sm:$0xff]
        %v351 = vld [vmem:[%s273 + $0x80] sm:$0xff]
        %v352 = vld [vmem:[%s273 + $0x88] sm:$0xff]
        %v353 = vld [vmem:[%s273 + $0x90] sm:$0xff]
        %v354 = vld [vmem:[%s273 + $0x98] sm:$0xff]
        %v355 = vld [vmem:[%s273 + $0xa0] sm:$0xff]
        %v356 = vld [vmem:[%s273 + $0xa8] sm:$0xff]
        %v357 = vld [vmem:[%s273 + $0xb0] sm:$0xff]
        %v358 = vld [vmem:[%s273 + $0xb8] sm:$0xff]
        %v359 = vld [vmem:[%s273 + $0xc0] sm:$0xff]
        %v360 = vld [vmem:[%s273 + $0xc8] sm:$0xff]
        %v361 = vld [vmem:[%s273 + $0xd0] sm:$0xff]
        %v362 = vld [vmem:[%s273 + $0xd8] sm:$0xff]
        %v363 = vld [vmem:[%s273 + $0xe0] sm:$0xff]
        %v364 = vld [vmem:[%s273 + $0xe8] sm:$0xff]
        %v365 = vld [vmem:[%s273 + $0xf0] sm:$0xff]
        %v366 = vld [vmem:[%s273 + $0xf8] sm:$0xff]
        %v367 = vld [vmem:[#allocation5] sm:$0xff]
        %v368 = vld [vmem:[#allocation5 + $0x8] sm:$0xff]
        %v369 = vld [vmem:[#allocation5 + $0x10] sm:$0xff]
        %v370 = vld [vmem:[#allocation5 + $0x18] sm:$0xff]
        %v371 = vld [vmem:[#allocation5 + $0x20] sm:$0xff]
        %v372 = vld [vmem:[#allocation5 + $0x28] sm:$0xff]
        %v373 = vld [vmem:[#allocation5 + $0x30] sm:$0xff]
        %v374 = vld [vmem:[#allocation5 + $0x38] sm:$0xff]
        %v375 = vld [vmem:[%s2] sm:$0x1]
        %v377 = vlaneseq
        %v378 = vshrl.u32 %v377, 7
        %v379 = vsub.s32 0, %v378
        %v380 = vrot.slane %v375, %v379
        %382 = vxpose.xlu0.b32.start [1/16] %v335, 128
        %383 = vxpose.xlu0.b32.cont [2/16] %v339, 128
        %384 = vxpose.xlu0.b32.cont [3/16] %v343, 128
        %385 = vxpose.xlu0.b32.cont [4/16] %v347, 128
        %386 = vxpose.xlu0.b32.cont [5/16] %v351, 128
        %387 = vxpose.xlu0.b32.cont [6/16] %v355, 128
        %388 = vxpose.xlu0.b32.cont [7/16] %v359, 128
        %389 = vxpose.xlu0.b32.cont [8/16] %v363, 128
        %390 = vxpose.xlu0.b32.cont [9/16] 0.0, 128
        %391 = vxpose.xlu0.b32.cont [10/16] 0.0, 128
        %392 = vxpose.xlu0.b32.cont [11/16] 0.0, 128
        %393 = vxpose.xlu0.b32.cont [12/16] 0.0, 128
        %394 = vxpose.xlu0.b32.cont [13/16] 0.0, 128
        %395 = vxpose.xlu0.b32.cont [14/16] 0.0, 128
        %396 = vxpose.xlu0.b32.cont [15/16] 0.0, 128
        %397 = vxpose.xlu0.b32.end [16/16] 0.0, 128
        %v398 = vpop.trf.xlu0
        %v399 = vpop.trf.xlu0
        %v400 = vpop.trf.xlu0
        %v401 = vpop.trf.xlu0
        %v402 = vpop.trf.xlu0
        %v403 = vpop.trf.xlu0
        %v404 = vpop.trf.xlu0
        %v405 = vpop.trf.xlu0
        %v406 = vpop.trf.xlu0
        %v407 = vpop.trf.xlu0
        %v408 = vpop.trf.xlu0
        %v409 = vpop.trf.xlu0
        %v410 = vpop.trf.xlu0
        %v411 = vpop.trf.xlu0
        %v412 = vpop.trf.xlu0
        %v413 = vpop.trf.xlu0
        %414 = vxpose.xlu0.b32.start [1/16] %v336, 128
        %415 = vxpose.xlu0.b32.cont [2/16] %v340, 128
        %416 = vxpose.xlu0.b32.cont [3/16] %v344, 128
        %417 = vxpose.xlu0.b32.cont [4/16] %v348, 128
        %418 = vxpose.xlu0.b32.cont [5/16] %v352, 128
        %419 = vxpose.xlu0.b32.cont [6/16] %v356, 128
        %420 = vxpose.xlu0.b32.cont [7/16] %v360, 128
        %421 = vxpose.xlu0.b32.cont [8/16] %v364, 128
        %422 = vxpose.xlu0.b32.cont [9/16] 0.0, 128
        %423 = vxpose.xlu0.b32.cont [10/16] 0.0, 128
        %424 = vxpose.xlu0.b32.cont [11/16] 0.0, 128
        %425 = vxpose.xlu0.b32.cont [12/16] 0.0, 128
        %426 = vxpose.xlu0.b32.cont [13/16] 0.0, 128
        %427 = vxpose.xlu0.b32.cont [14/16] 0.0, 128
        %428 = vxpose.xlu0.b32.cont [15/16] 0.0, 128
        %429 = vxpose.xlu0.b32.end [16/16] 0.0, 128
        %v430 = vpop.trf.xlu0
        %v431 = vpop.trf.xlu0
        %v432 = vpop.trf.xlu0
        %v433 = vpop.trf.xlu0
        %v434 = vpop.trf.xlu0
        %v435 = vpop.trf.xlu0
        %v436 = vpop.trf.xlu0
        %v437 = vpop.trf.xlu0
        %v438 = vpop.trf.xlu0
        %v439 = vpop.trf.xlu0
        %v440 = vpop.trf.xlu0
        %v441 = vpop.trf.xlu0
        %v442 = vpop.trf.xlu0
        %v443 = vpop.trf.xlu0
        %v444 = vpop.trf.xlu0
        %v445 = vpop.trf.xlu0
        %446 = vxpose.xlu0.b32.start [1/16] %v337, 128
        %447 = vxpose.xlu0.b32.cont [2/16] %v341, 128
        %448 = vxpose.xlu0.b32.cont [3/16] %v345, 128
        %449 = vxpose.xlu0.b32.cont [4/16] %v349, 128
        %450 = vxpose.xlu0.b32.cont [5/16] %v353, 128
        %451 = vxpose.xlu0.b32.cont [6/16] %v357, 128
        %452 = vxpose.xlu0.b32.cont [7/16] %v361, 128
        %453 = vxpose.xlu0.b32.cont [8/16] %v365, 128
        %454 = vxpose.xlu0.b32.cont [9/16] 0.0, 128
        %455 = vxpose.xlu0.b32.cont [10/16] 0.0, 128
        %456 = vxpose.xlu0.b32.cont [11/16] 0.0, 128
        %457 = vxpose.xlu0.b32.cont [12/16] 0.0, 128
        %458 = vxpose.xlu0.b32.cont [13/16] 0.0, 128
        %459 = vxpose.xlu0.b32.cont [14/16] 0.0, 128
        %460 = vxpose.xlu0.b32.cont [15/16] 0.0, 128
        %461 = vxpose.xlu0.b32.end [16/16] 0.0, 128
        %v462 = vpop.trf.xlu0
        %v463 = vpop.trf.xlu0
        %v464 = vpop.trf.xlu0
        %v465 = vpop.trf.xlu0
        %v466 = vpop.trf.xlu0
        %v467 = vpop.trf.xlu0
        %v468 = vpop.trf.xlu0
        %v469 = vpop.trf.xlu0
        %v470 = vpop.trf.xlu0
        %v471 = vpop.trf.xlu0
        %v472 = vpop.trf.xlu0
        %v473 = vpop.trf.xlu0
        %v474 = vpop.trf.xlu0
        %v475 = vpop.trf.xlu0
        %v476 = vpop.trf.xlu0
        %v477 = vpop.trf.xlu0
        %478 = vxpose.xlu0.b32.start [1/16] %v338, 128
        %479 = vxpose.xlu0.b32.cont [2/16] %v342, 128
        %480 = vxpose.xlu0.b32.cont [3/16] %v346, 128
        %481 = vxpose.xlu0.b32.cont [4/16] %v350, 128
        %482 = vxpose.xlu0.b32.cont [5/16] %v354, 128
        %483 = vxpose.xlu0.b32.cont [6/16] %v358, 128
        %484 = vxpose.xlu0.b32.cont [7/16] %v362, 128
        %485 = vxpose.xlu0.b32.cont [8/16] %v366, 128
        %486 = vxpose.xlu0.b32.cont [9/16] 0.0, 128
        %487 = vxpose.xlu0.b32.cont [10/16] 0.0, 128
        %488 = vxpose.xlu0.b32.cont [11/16] 0.0, 128
        %489 = vxpose.xlu0.b32.cont [12/16] 0.0, 128
        %490 = vxpose.xlu0.b32.cont [13/16] 0.0, 128
        %491 = vxpose.xlu0.b32.cont [14/16] 0.0, 128
        %492 = vxpose.xlu0.b32.cont [15/16] 0.0, 128
        %493 = vxpose.xlu0.b32.end [16/16] 0.0, 128
        %v494 = vpop.trf.xlu0
        %v495 = vpop.trf.xlu0
        %v496 = vpop.trf.xlu0
        %v497 = vpop.trf.xlu0
        %v498 = vpop.trf.xlu0
        %v499 = vpop.trf.xlu0
        %v500 = vpop.trf.xlu0
        %v501 = vpop.trf.xlu0
        %v502 = vpop.trf.xlu0
        %v503 = vpop.trf.xlu0
        %v504 = vpop.trf.xlu0
        %v505 = vpop.trf.xlu0
        %v506 = vpop.trf.xlu0
        %v507 = vpop.trf.xlu0
        %v508 = vpop.trf.xlu0
        %v509 = vpop.trf.xlu0
        %vm510 = vcmask 523264
        %v512 = vsel %vm510, %v398, 0
        %v515 = vsel %vm510, %v399, 0
        %v518 = vsel %vm510, %v400, 0
        %v521 = vsel %vm510, %v401, 0
        %v524 = vsel %vm510, %v402, 0
        %v527 = vsel %vm510, %v403, 0
        %v530 = vsel %vm510, %v404, 0
        %v533 = vsel %vm510, %v405, 0
        %v536 = vsel %vm510, %v406, 0
        %v539 = vsel %vm510, %v407, 0
        %v542 = vsel %vm510, %v408, 0
        %v545 = vsel %vm510, %v409, 0
        %v548 = vsel %vm510, %v410, 0
        %v551 = vsel %vm510, %v411, 0
        %v554 = vsel %vm510, %v412, 0
        %v557 = vsel %vm510, %v413, 0
        %v560 = vsel %vm510, %v430, 0
        %v563 = vsel %vm510, %v431, 0
        %v566 = vsel %vm510, %v432, 0
        %v569 = vsel %vm510, %v433, 0
        %v572 = vsel %vm510, %v434, 0
        %v575 = vsel %vm510, %v435, 0
        %v578 = vsel %vm510, %v436, 0
        %v581 = vsel %vm510, %v437, 0
        %v584 = vsel %vm510, %v438, 0
        %v587 = vsel %vm510, %v439, 0
        %v590 = vsel %vm510, %v440, 0
        %v593 = vsel %vm510, %v441, 0
        %v596 = vsel %vm510, %v442, 0
        %v599 = vsel %vm510, %v443, 0
        %v602 = vsel %vm510, %v444, 0
        %v605 = vsel %vm510, %v445, 0
        %v608 = vsel %vm510, %v462, 0
        %v611 = vsel %vm510, %v463, 0
        %v614 = vsel %vm510, %v464, 0
        %v617 = vsel %vm510, %v465, 0
        %v620 = vsel %vm510, %v466, 0
        %v623 = vsel %vm510, %v467, 0
        %v626 = vsel %vm510, %v468, 0
        %v629 = vsel %vm510, %v469, 0
        %v632 = vsel %vm510, %v470, 0
        %v635 = vsel %vm510, %v471, 0
        %v638 = vsel %vm510, %v472, 0
        %v641 = vsel %vm510, %v473, 0
        %v644 = vsel %vm510, %v474, 0
        %v647 = vsel %vm510, %v475, 0
        %v650 = vsel %vm510, %v476, 0
        %v653 = vsel %vm510, %v477, 0
        %v656 = vsel %vm510, %v494, 0
        %v659 = vsel %vm510, %v495, 0
        %v662 = vsel %vm510, %v496, 0
        %v665 = vsel %vm510, %v497, 0
        %v668 = vsel %vm510, %v498, 0
        %v671 = vsel %vm510, %v499, 0
        %v674 = vsel %vm510, %v500, 0
        %v677 = vsel %vm510, %v501, 0
        %v680 = vsel %vm510, %v502, 0
        %v683 = vsel %vm510, %v503, 0
        %v686 = vsel %vm510, %v504, 0
        %v689 = vsel %vm510, %v505, 0
        %v692 = vsel %vm510, %v506, 0
        %v695 = vsel %vm510, %v507, 0
        %v698 = vsel %vm510, %v508, 0
        %v701 = vsel %vm510, %v509, 0
        %703 = vmatprep.subr.mxu0 0.0
        %704 = vmatpush1.msra.mxu0 %v367
        %705 = vmatprep.subr.mxu0 0.0
        %706 = vmatpush1.msra.mxu0 %v368
        %707 = vmatprep.subr.mxu0 0.0
        %708 = vmatpush1.msra.mxu0 %v369
        %709 = vmatprep.subr.mxu0 0.0
        %710 = vmatpush1.msra.mxu0 %v370
        %711 = vmatprep.subr.mxu0 0.0
        %712 = vmatpush1.msra.mxu0 %v371
        %713 = vmatprep.subr.mxu0 0.0
        %714 = vmatpush1.msra.mxu0 %v372
        %715 = vmatprep.subr.mxu0 0.0
        %716 = vmatpush1.msra.mxu0 %v373
        %717 = vmatprep.subr.mxu0 0.0
        %718 = vmatpush1.msra.mxu0 %v374
        %719 = vmatprep.subr.mxu0 0.0
        %720 = vmatpush1.msra.mxu0 0.0
        %721 = vmatprep.subr.mxu0 0.0
        %722 = vmatpush1.msra.mxu0 0.0
        %723 = vmatprep.subr.mxu0 0.0
        %724 = vmatpush1.msra.mxu0 0.0
        %725 = vmatprep.subr.mxu0 0.0
        %726 = vmatpush1.msra.mxu0 0.0
        %727 = vmatprep.subr.mxu0 0.0
        %728 = vmatpush1.msra.mxu0 0.0
        %729 = vmatprep.subr.mxu0 0.0
        %730 = vmatpush1.msra.mxu0 0.0
        %731 = vmatprep.subr.mxu0 0.0
        %732 = vmatpush1.msra.mxu0 0.0
        %733 = vmatprep.subr.mxu0 0.0
        %734 = vmatpush1.msra.mxu0 0.0
        %735 = vmatprep.subr.mxu0 0.0
        %736 = vmatpush1.msra.mxu0 0.0
        %737 = vmatprep.subr.mxu0 0.0
        %738 = vmatpush1.msra.mxu0 0.0
        %739 = vmatprep.subr.mxu0 0.0
        %740 = vmatpush1.msra.mxu0 0.0
        %741 = vmatprep.subr.mxu0 0.0
        %742 = vmatpush1.msra.mxu0 0.0
        %743 = vmatprep.subr.mxu0 0.0
        %744 = vmatpush1.msra.mxu0 0.0
        %745 = vmatprep.subr.mxu0 0.0
        %746 = vmatpush1.msra.mxu0 0.0
        %747 = vmatprep.subr.mxu0 0.0
        %748 = vmatpush1.msra.mxu0 0.0
        %749 = vmatprep.subr.mxu0 0.0
        %750 = vmatpush1.msra.mxu0 0.0
        %751 = vmatprep.subr.mxu0 0.0
        %752 = vmatpush1.msra.mxu0 0.0
        %753 = vmatprep.subr.mxu0 0.0
        %754 = vmatpush1.msra.mxu0 0.0
        %755 = vmatprep.subr.mxu0 0.0
        %756 = vmatpush1.msra.mxu0 0.0
        %757 = vmatprep.subr.mxu0 0.0
        %758 = vmatpush1.msra.mxu0 0.0
        %759 = vmatprep.subr.mxu0 0.0
        %760 = vmatpush1.msra.mxu0 0.0
        %761 = vmatprep.subr.mxu0 0.0
        %762 = vmatpush1.msra.mxu0 0.0
        %763 = vmatprep.subr.mxu0 0.0
        %764 = vmatpush1.msra.mxu0 0.0
        %765 = vmatprep.subr.mxu0 0.0
        %766 = vmatpush1.msra.mxu0 0.0
        %767 = vmatprep.mubr.f32.mxu0 0.0
        %768 = vmatmul.mubr.f32.gmra.mrb[0].mxu0 %v512
        %v769 = vpop.f32.mrb[0].mxu0
        %v770 = vadd.f32 %v380, %v769
        %v771 = vpop.f32.mrb[0].mxu0
        %772 = vmatprep.mubr.f32.mxu0 0.0
        %773 = vmatmul.mubr.f32.gmra.mrb[0].mxu0 %v515
        %v774 = vpop.f32.mrb[0].mxu0
        %v775 = vadd.f32 %v380, %v774
        %v776 = vpop.f32.mrb[0].mxu0
        %777 = vmatprep.mubr.f32.mxu0 0.0
        %778 = vmatmul.mubr.f32.gmra.mrb[0].mxu0 %v518
        %v779 = vpop.f32.mrb[0].mxu0
        %v780 = vadd.f32 %v380, %v779
        %v781 = vpop.f32.mrb[0].mxu0
        %782 = vmatprep.mubr.f32.mxu0 0.0
        %783 = vmatmul.mubr.f32.gmra.mrb[0].mxu0 %v521
        %v784 = vpop.f32.mrb[0].mxu0
        %v785 = vadd.f32 %v380, %v784
        %v786 = vpop.f32.mrb[0].mxu0
        %787 = vmatprep.mubr.f32.mxu0 0.0
        %788 = vmatmul.mubr.f32.gmra.mrb[0].mxu0 %v524
        %v789 = vpop.f32.mrb[0].mxu0
        %v790 = vadd.f32 %v380, %v789
        %v791 = vpop.f32.mrb[0].mxu0
        %792 = vmatprep.mubr.f32.mxu0 0.0
        %793 = vmatmul.mubr.f32.gmra.mrb[0].mxu0 %v527
        %v794 = vpop.f32.mrb[0].mxu0
        %v795 = vadd.f32 %v380, %v794
        %v796 = vpop.f32.mrb[0].mxu0
        %797 = vmatprep.mubr.f32.mxu0 0.0
        %798 = vmatmul.mubr.f32.gmra.mrb[0].mxu0 %v530
        %v799 = vpop.f32.mrb[0].mxu0
        %v800 = vadd.f32 %v380, %v799
        %v801 = vpop.f32.mrb[0].mxu0
        %802 = vmatprep.mubr.f32.mxu0 0.0
        %803 = vmatmul.mubr.f32.gmra.mrb[0].mxu0 %v533
        %v804 = vpop.f32.mrb[0].mxu0
        %v805 = vadd.f32 %v380, %v804
        %v806 = vpop.f32.mrb[0].mxu0
        %807 = vmatprep.mubr.f32.mxu0 0.0
        %808 = vmatmul.mubr.f32.gmra.mrb[0].mxu0 %v536
        %v809 = vpop.f32.mrb[0].mxu0
        %v810 = vadd.f32 %v380, %v809
        %v811 = vpop.f32.mrb[0].mxu0
        %812 = vmatprep.mubr.f32.mxu0 0.0
        %813 = vmatmul.mubr.f32.gmra.mrb[0].mxu0 %v539
        %v814 = vpop.f32.mrb[0].mxu0
        %v815 = vadd.f32 %v380, %v814
        %v816 = vpop.f32.mrb[0].mxu0
        %817 = vmatprep.mubr.f32.mxu0 0.0
        %818 = vmatmul.mubr.f32.gmra.mrb[0].mxu0 %v542
        %v819 = vpop.f32.mrb[0].mxu0
        %v820 = vadd.f32 %v380, %v819
        %v821 = vpop.f32.mrb[0].mxu0
        %822 = vmatprep.mubr.f32.mxu0 0.0
        %823 = vmatmul.mubr.f32.gmra.mrb[0].mxu0 %v545
        %v824 = vpop.f32.mrb[0].mxu0
        %v825 = vadd.f32 %v380, %v824
        %v826 = vpop.f32.mrb[0].mxu0
        %827 = vmatprep.mubr.f32.mxu0 0.0
        %828 = vmatmul.mubr.f32.gmra.mrb[0].mxu0 %v548
        %v829 = vpop.f32.mrb[0].mxu0
        %v830 = vadd.f32 %v380, %v829
        %v831 = vpop.f32.mrb[0].mxu0
        %832 = vmatprep.mubr.f32.mxu0 0.0
        %833 = vmatmul.mubr.f32.gmra.mrb[0].mxu0 %v551
        %v834 = vpop.f32.mrb[0].mxu0
        %v835 = vadd.f32 %v380, %v834
        %v836 = vpop.f32.mrb[0].mxu0
        %837 = vmatprep.mubr.f32.mxu0 0.0
        %838 = vmatmul.mubr.f32.gmra.mrb[0].mxu0 %v554
        %v839 = vpop.f32.mrb[0].mxu0
        %v840 = vadd.f32 %v380, %v839
        %v841 = vpop.f32.mrb[0].mxu0
        %842 = vmatprep.mubr.f32.mxu0 0.0
        %843 = vmatmul.mubr.f32.gmra.mrb[0].mxu0 %v557
        %v844 = vpop.f32.mrb[0].mxu0
        %v845 = vadd.f32 %v380, %v844
        %v846 = vpop.f32.mrb[0].mxu0
        %847 = vmatprep.mubr.f32.mxu0 0.0
        %848 = vmatmul.mubr.f32.gmra.mrb[0].mxu0 %v560
        %v849 = vpop.f32.mrb[0].mxu0
        %v850 = vadd.f32 %v380, %v849
        %v851 = vpop.f32.mrb[0].mxu0
        %852 = vmatprep.mubr.f32.mxu0 0.0
        %853 = vmatmul.mubr.f32.gmra.mrb[0].mxu0 %v563
        %v854 = vpop.f32.mrb[0].mxu0
        %v855 = vadd.f32 %v380, %v854
        %v856 = vpop.f32.mrb[0].mxu0
        %857 = vmatprep.mubr.f32.mxu0 0.0
        %858 = vmatmul.mubr.f32.gmra.mrb[0].mxu0 %v566
        %v859 = vpop.f32.mrb[0].mxu0
        %v860 = vadd.f32 %v380, %v859
        %v861 = vpop.f32.mrb[0].mxu0
        %862 = vmatprep.mubr.f32.mxu0 0.0
        %863 = vmatmul.mubr.f32.gmra.mrb[0].mxu0 %v569
        %v864 = vpop.f32.mrb[0].mxu0
        %v865 = vadd.f32 %v380, %v864
        %v866 = vpop.f32.mrb[0].mxu0
        %867 = vmatprep.mubr.f32.mxu0 0.0
        %868 = vmatmul.mubr.f32.gmra.mrb[0].mxu0 %v572
        %v869 = vpop.f32.mrb[0].mxu0
        %v870 = vadd.f32 %v380, %v869
        %v871 = vpop.f32.mrb[0].mxu0
        %872 = vmatprep.mubr.f32.mxu0 0.0
        %873 = vmatmul.mubr.f32.gmra.mrb[0].mxu0 %v575
        %v874 = vpop.f32.mrb[0].mxu0
        %v875 = vadd.f32 %v380, %v874
        %v876 = vpop.f32.mrb[0].mxu0
        %877 = vmatprep.mubr.f32.mxu0 0.0
        %878 = vmatmul.mubr.f32.gmra.mrb[0].mxu0 %v578
        %v879 = vpop.f32.mrb[0].mxu0
        %v880 = vadd.f32 %v380, %v879
        %v881 = vpop.f32.mrb[0].mxu0
        %882 = vmatprep.mubr.f32.mxu0 0.0
        %883 = vmatmul.mubr.f32.gmra.mrb[0].mxu0 %v581
        %v884 = vpop.f32.mrb[0].mxu0
        %v885 = vadd.f32 %v380, %v884
        %v886 = vpop.f32.mrb[0].mxu0
        %887 = vmatprep.mubr.f32.mxu0 0.0
        %888 = vmatmul.mubr.f32.gmra.mrb[0].mxu0 %v584
        %v889 = vpop.f32.mrb[0].mxu0
        %v890 = vadd.f32 %v380, %v889
        %v891 = vpop.f32.mrb[0].mxu0
        %892 = vmatprep.mubr.f32.mxu0 0.0
        %893 = vmatmul.mubr.f32.gmra.mrb[0].mxu0 %v587
        %v894 = vpop.f32.mrb[0].mxu0
        %v895 = vadd.f32 %v380, %v894
        %v896 = vpop.f32.mrb[0].mxu0
        %897 = vmatprep.mubr.f32.mxu0 0.0
        %898 = vmatmul.mubr.f32.gmra.mrb[0].mxu0 %v590
        %v899 = vpop.f32.mrb[0].mxu0
        %v900 = vadd.f32 %v380, %v899
        %v901 = vpop.f32.mrb[0].mxu0
        %902 = vmatprep.mubr.f32.mxu0 0.0
        %903 = vmatmul.mubr.f32.gmra.mrb[0].mxu0 %v593
        %v904 = vpop.f32.mrb[0].mxu0
        %v905 = vadd.f32 %v380, %v904
        %v906 = vpop.f32.mrb[0].mxu0
        %907 = vmatprep.mubr.f32.mxu0 0.0
        %908 = vmatmul.mubr.f32.gmra.mrb[0].mxu0 %v596
        %v909 = vpop.f32.mrb[0].mxu0
        %v910 = vadd.f32 %v380, %v909
        %v911 = vpop.f32.mrb[0].mxu0
        %912 = vmatprep.mubr.f32.mxu0 0.0
        %913 = vmatmul.mubr.f32.gmra.mrb[0].mxu0 %v599
        %v914 = vpop.f32.mrb[0].mxu0
        %v915 = vadd.f32 %v380, %v914
        %v916 = vpop.f32.mrb[0].mxu0
        %917 = vmatprep.mubr.f32.mxu0 0.0
        %918 = vmatmul.mubr.f32.gmra.mrb[0].mxu0 %v602
        %v919 = vpop.f32.mrb[0].mxu0
        %v920 = vadd.f32 %v380, %v919
        %v921 = vpop.f32.mrb[0].mxu0
        %922 = vmatprep.mubr.f32.mxu0 0.0
        %923 = vmatmul.mubr.f32.gmra.mrb[0].mxu0 %v605
        %v924 = vpop.f32.mrb[0].mxu0
        %v925 = vadd.f32 %v380, %v924
        %v926 = vpop.f32.mrb[0].mxu0
        %927 = vmatprep.mubr.f32.mxu0 0.0
        %928 = vmatmul.mubr.f32.gmra.mrb[0].mxu0 %v608
        %v929 = vpop.f32.mrb[0].mxu0
        %v930 = vadd.f32 %v380, %v929
        %v931 = vpop.f32.mrb[0].mxu0
        %932 = vmatprep.mubr.f32.mxu0 0.0
        %933 = vmatmul.mubr.f32.gmra.mrb[0].mxu0 %v611
        %v934 = vpop.f32.mrb[0].mxu0
        %v935 = vadd.f32 %v380, %v934
        %v936 = vpop.f32.mrb[0].mxu0
        %937 = vmatprep.mubr.f32.mxu0 0.0
        %938 = vmatmul.mubr.f32.gmra.mrb[0].mxu0 %v614
        %v939 = vpop.f32.mrb[0].mxu0
        %v940 = vadd.f32 %v380, %v939
        %v941 = vpop.f32.mrb[0].mxu0
        %942 = vmatprep.mubr.f32.mxu0 0.0
        %943 = vmatmul.mubr.f32.gmra.mrb[0].mxu0 %v617
        %v944 = vpop.f32.mrb[0].mxu0
        %v945 = vadd.f32 %v380, %v944
        %v946 = vpop.f32.mrb[0].mxu0
        %947 = vmatprep.mubr.f32.mxu0 0.0
        %948 = vmatmul.mubr.f32.gmra.mrb[0].mxu0 %v620
        %v949 = vpop.f32.mrb[0].mxu0
        %v950 = vadd.f32 %v380, %v949
        %v951 = vpop.f32.mrb[0].mxu0
        %952 = vmatprep.mubr.f32.mxu0 0.0
        %953 = vmatmul.mubr.f32.gmra.mrb[0].mxu0 %v623
        %v954 = vpop.f32.mrb[0].mxu0
        %v955 = vadd.f32 %v380, %v954
        %v956 = vpop.f32.mrb[0].mxu0
        %957 = vmatprep.mubr.f32.mxu0 0.0
        %958 = vmatmul.mubr.f32.gmra.mrb[0].mxu0 %v626
        %v959 = vpop.f32.mrb[0].mxu0
        %v960 = vadd.f32 %v380, %v959
        %v961 = vpop.f32.mrb[0].mxu0
        %962 = vmatprep.mubr.f32.mxu0 0.0
        %963 = vmatmul.mubr.f32.gmra.mrb[0].mxu0 %v629
        %v964 = vpop.f32.mrb[0].mxu0
        %v965 = vadd.f32 %v380, %v964
        %v966 = vpop.f32.mrb[0].mxu0
        %967 = vmatprep.mubr.f32.mxu0 0.0
        %968 = vmatmul.mubr.f32.gmra.mrb[0].mxu0 %v632
        %v969 = vpop.f32.mrb[0].mxu0
        %v970 = vadd.f32 %v380, %v969
        %v971 = vpop.f32.mrb[0].mxu0
        %972 = vmatprep.mubr.f32.mxu0 0.0
        %973 = vmatmul.mubr.f32.gmra.mrb[0].mxu0 %v635
        %v974 = vpop.f32.mrb[0].mxu0
        %v975 = vadd.f32 %v380, %v974
        %v976 = vpop.f32.mrb[0].mxu0
        %977 = vmatprep.mubr.f32.mxu0 0.0
        %978 = vmatmul.mubr.f32.gmra.mrb[0].mxu0 %v638
        %v979 = vpop.f32.mrb[0].mxu0
        %v980 = vadd.f32 %v380, %v979
        %v981 = vpop.f32.mrb[0].mxu0
        %982 = vmatprep.mubr.f32.mxu0 0.0
        %983 = vmatmul.mubr.f32.gmra.mrb[0].mxu0 %v641
        %v984 = vpop.f32.mrb[0].mxu0
        %v985 = vadd.f32 %v380, %v984
        %v986 = vpop.f32.mrb[0].mxu0
        %987 = vmatprep.mubr.f32.mxu0 0.0
        %988 = vmatmul.mubr.f32.gmra.mrb[0].mxu0 %v644
        %v989 = vpop.f32.mrb[0].mxu0
        %v990 = vadd.f32 %v380, %v989
        %v991 = vpop.f32.mrb[0].mxu0
        %992 = vmatprep.mubr.f32.mxu0 0.0
        %993 = vmatmul.mubr.f32.gmra.mrb[0].mxu0 %v647
        %v994 = vpop.f32.mrb[0].mxu0
        %v995 = vadd.f32 %v380, %v994
        %v996 = vpop.f32.mrb[0].mxu0
        %997 = vmatprep.mubr.f32.mxu0 0.0
        %998 = vmatmul.mubr.f32.gmra.mrb[0].mxu0 %v650
        %v999 = vpop.f32.mrb[0].mxu0
        %v1000 = vadd.f32 %v380, %v999
        %v1001 = vpop.f32.mrb[0].mxu0
        %1002 = vmatprep.mubr.f32.mxu0 0.0
        %1003 = vmatmul.mubr.f32.gmra.mrb[0].mxu0 %v653
        %v1004 = vpop.f32.mrb[0].mxu0
        %v1005 = vadd.f32 %v380, %v1004
        %v1006 = vpop.f32.mrb[0].mxu0
        %1007 = vmatprep.mubr.f32.mxu0 0.0
        %1008 = vmatmul.mubr.f32.gmra.mrb[0].mxu0 %v656
        %v1009 = vpop.f32.mrb[0].mxu0
        %v1010 = vadd.f32 %v380, %v1009
        %v1011 = vpop.f32.mrb[0].mxu0
        %1012 = vmatprep.mubr.f32.mxu0 0.0
        %1013 = vmatmul.mubr.f32.gmra.mrb[0].mxu0 %v659
        %v1014 = vpop.f32.mrb[0].mxu0
        %v1015 = vadd.f32 %v380, %v1014
        %v1016 = vpop.f32.mrb[0].mxu0
        %1017 = vmatprep.mubr.f32.mxu0 0.0
        %1018 = vmatmul.mubr.f32.gmra.mrb[0].mxu0 %v662
        %v1019 = vpop.f32.mrb[0].mxu0
        %v1020 = vadd.f32 %v380, %v1019
        %v1021 = vpop.f32.mrb[0].mxu0
        %1022 = vmatprep.mubr.f32.mxu0 0.0
        %1023 = vmatmul.mubr.f32.gmra.mrb[0].mxu0 %v665
        %v1024 = vpop.f32.mrb[0].mxu0
        %v1025 = vadd.f32 %v380, %v1024
        %v1026 = vpop.f32.mrb[0].mxu0
        %1027 = vmatprep.mubr.f32.mxu0 0.0
        %1028 = vmatmul.mubr.f32.gmra.mrb[0].mxu0 %v668
        %v1029 = vpop.f32.mrb[0].mxu0
        %v1030 = vadd.f32 %v380, %v1029
        %v1031 = vpop.f32.mrb[0].mxu0
        %1032 = vmatprep.mubr.f32.mxu0 0.0
        %1033 = vmatmul.mubr.f32.gmra.mrb[0].mxu0 %v671
        %v1034 = vpop.f32.mrb[0].mxu0
        %v1035 = vadd.f32 %v380, %v1034
        %v1036 = vpop.f32.mrb[0].mxu0
        %1037 = vmatprep.mubr.f32.mxu0 0.0
        %1038 = vmatmul.mubr.f32.gmra.mrb[0].mxu0 %v674
        %v1039 = vpop.f32.mrb[0].mxu0
        %v1040 = vadd.f32 %v380, %v1039
        %v1041 = vpop.f32.mrb[0].mxu0
        %1042 = vmatprep.mubr.f32.mxu0 0.0
        %1043 = vmatmul.mubr.f32.gmra.mrb[0].mxu0 %v677
        %v1044 = vpop.f32.mrb[0].mxu0
        %v1045 = vadd.f32 %v380, %v1044
        %v1046 = vpop.f32.mrb[0].mxu0
        %1047 = vmatprep.mubr.f32.mxu0 0.0
        %1048 = vmatmul.mubr.f32.gmra.mrb[0].mxu0 %v680
        %v1049 = vpop.f32.mrb[0].mxu0
        %v1050 = vadd.f32 %v380, %v1049
        %v1051 = vpop.f32.mrb[0].mxu0
        %1052 = vmatprep.mubr.f32.mxu0 0.0
        %1053 = vmatmul.mubr.f32.gmra.mrb[0].mxu0 %v683
        %v1054 = vpop.f32.mrb[0].mxu0
        %v1055 = vadd.f32 %v380, %v1054
        %v1056 = vpop.f32.mrb[0].mxu0
        %1057 = vmatprep.mubr.f32.mxu0 0.0
        %1058 = vmatmul.mubr.f32.gmra.mrb[0].mxu0 %v686
        %v1059 = vpop.f32.mrb[0].mxu0
        %v1060 = vadd.f32 %v380, %v1059
        %v1061 = vpop.f32.mrb[0].mxu0
        %1062 = vmatprep.mubr.f32.mxu0 0.0
        %1063 = vmatmul.mubr.f32.gmra.mrb[0].mxu0 %v689
        %v1064 = vpop.f32.mrb[0].mxu0
        %v1065 = vadd.f32 %v380, %v1064
        %v1066 = vpop.f32.mrb[0].mxu0
        %1067 = vmatprep.mubr.f32.mxu0 0.0
        %1068 = vmatmul.mubr.f32.gmra.mrb[0].mxu0 %v692
        %v1069 = vpop.f32.mrb[0].mxu0
        %v1070 = vadd.f32 %v380, %v1069
        %v1071 = vpop.f32.mrb[0].mxu0
        %1072 = vmatprep.mubr.f32.mxu0 0.0
        %1073 = vmatmul.mubr.f32.gmra.mrb[0].mxu0 %v695
        %v1074 = vpop.f32.mrb[0].mxu0
        %v1075 = vadd.f32 %v380, %v1074
        %v1076 = vpop.f32.mrb[0].mxu0
        %1077 = vmatprep.mubr.f32.mxu0 0.0
        %1078 = vmatmul.mubr.f32.gmra.mrb[0].mxu0 %v698
        %v1079 = vpop.f32.mrb[0].mxu0
        %v1080 = vadd.f32 %v380, %v1079
        %v1081 = vpop.f32.mrb[0].mxu0
        %1082 = vmatprep.mubr.f32.mxu0 0.0
        %1083 = vmatmul.mubr.f32.gmra.mrb[0].mxu0 %v701
        %v1084 = vpop.f32.mrb[0].mxu0
        %v1085 = vadd.f32 %v380, %v1084
        %v1086 = vpop.f32.mrb[0].mxu0
        %1087 = vdwg.mxu0
        %vm1088 = vcmp.gt.f32.partialorder %v770, 0.0
        %vm1089 = vcmp.gt.f32.partialorder %v775, 0.0
        %vm1090 = vcmp.gt.f32.partialorder %v780, 0.0
        %vm1091 = vcmp.gt.f32.partialorder %v785, 0.0
        %vm1092 = vcmp.gt.f32.partialorder %v790, 0.0
        %vm1093 = vcmp.gt.f32.partialorder %v795, 0.0
        %vm1094 = vcmp.gt.f32.partialorder %v800, 0.0
        %vm1095 = vcmp.gt.f32.partialorder %v805, 0.0
        %vm1096 = vcmp.gt.f32.partialorder %v810, 0.0
        %vm1097 = vcmp.gt.f32.partialorder %v815, 0.0
        %vm1098 = vcmp.gt.f32.partialorder %v820, 0.0
        %vm1099 = vcmp.gt.f32.partialorder %v825, 0.0
        %vm1100 = vcmp.gt.f32.partialorder %v830, 0.0
        %vm1101 = vcmp.gt.f32.partialorder %v835, 0.0
        %vm1102 = vcmp.gt.f32.partialorder %v840, 0.0
        %vm1103 = vcmp.gt.f32.partialorder %v845, 0.0
        %vm1104 = vcmp.gt.f32.partialorder %v850, 0.0
        %vm1105 = vcmp.gt.f32.partialorder %v855, 0.0
        %vm1106 = vcmp.gt.f32.partialorder %v860, 0.0
        %vm1107 = vcmp.gt.f32.partialorder %v865, 0.0
        %vm1108 = vcmp.gt.f32.partialorder %v870, 0.0
        %vm1109 = vcmp.gt.f32.partialorder %v875, 0.0
        %vm1110 = vcmp.gt.f32.partialorder %v880, 0.0
        %vm1111 = vcmp.gt.f32.partialorder %v885, 0.0
        %vm1112 = vcmp.gt.f32.partialorder %v890, 0.0
        %vm1113 = vcmp.gt.f32.partialorder %v895, 0.0
        %vm1114 = vcmp.gt.f32.partialorder %v900, 0.0
        %vm1115 = vcmp.gt.f32.partialorder %v905, 0.0
        %vm1116 = vcmp.gt.f32.partialorder %v910, 0.0
        %vm1117 = vcmp.gt.f32.partialorder %v915, 0.0
        %vm1118 = vcmp.gt.f32.partialorder %v920, 0.0
        %vm1119 = vcmp.gt.f32.partialorder %v925, 0.0
        %vm1120 = vcmp.gt.f32.partialorder %v930, 0.0
        %vm1121 = vcmp.gt.f32.partialorder %v935, 0.0
        %vm1122 = vcmp.gt.f32.partialorder %v940, 0.0
        %vm1123 = vcmp.gt.f32.partialorder %v945, 0.0
        %vm1124 = vcmp.gt.f32.partialorder %v950, 0.0
        %vm1125 = vcmp.gt.f32.partialorder %v955, 0.0
        %vm1126 = vcmp.gt.f32.partialorder %v960, 0.0
        %vm1127 = vcmp.gt.f32.partialorder %v965, 0.0
        %vm1128 = vcmp.gt.f32.partialorder %v970, 0.0
        %vm1129 = vcmp.gt.f32.partialorder %v975, 0.0
        %vm1130 = vcmp.gt.f32.partialorder %v980, 0.0
        %vm1131 = vcmp.gt.f32.partialorder %v985, 0.0
        %vm1132 = vcmp.gt.f32.partialorder %v990, 0.0
        %vm1133 = vcmp.gt.f32.partialorder %v995, 0.0
        %vm1134 = vcmp.gt.f32.partialorder %v1000, 0.0
        %vm1135 = vcmp.gt.f32.partialorder %v1005, 0.0
        %vm1136 = vcmp.gt.f32.partialorder %v1010, 0.0
        %vm1137 = vcmp.gt.f32.partialorder %v1015, 0.0
        %vm1138 = vcmp.gt.f32.partialorder %v1020, 0.0
        %vm1139 = vcmp.gt.f32.partialorder %v1025, 0.0
        %vm1140 = vcmp.gt.f32.partialorder %v1030, 0.0
        %vm1141 = vcmp.gt.f32.partialorder %v1035, 0.0
        %vm1142 = vcmp.gt.f32.partialorder %v1040, 0.0
        %vm1143 = vcmp.gt.f32.partialorder %v1045, 0.0
        %vm1144 = vcmp.gt.f32.partialorder %v1050, 0.0
        %vm1145 = vcmp.gt.f32.partialorder %v1055, 0.0
        %vm1146 = vcmp.gt.f32.partialorder %v1060, 0.0
        %vm1147 = vcmp.gt.f32.partialorder %v1065, 0.0
        %vm1148 = vcmp.gt.f32.partialorder %v1070, 0.0
        %vm1149 = vcmp.gt.f32.partialorder %v1075, 0.0
        %vm1150 = vcmp.gt.f32.partialorder %v1080, 0.0
        %vm1151 = vcmp.gt.f32.partialorder %v1085, 0.0
        %v1152 = vld [vmem:[#allocation2] sm:$0x1]
        %v1154 = vlaneseq
        %v1155 = vshrl.u32 %v1154, 7
        %v1156 = vsub.s32 0, %v1155
        %v1157 = vrot.slane %v1152, %v1156
        %1158 = vset.pattern.permute.xlu0 0
        %1159 = vperm.xlu0 %1158, %v1157
        %v1160 = vpop.permute.xlu0 %1159
        %v1162 = vmul.f32 %v770, %v1160
        %v1163 = vmul.f32 %v775, %v1160
        %v1164 = vmul.f32 %v780, %v1160
        %v1165 = vmul.f32 %v785, %v1160
        %v1166 = vmul.f32 %v790, %v1160
        %v1167 = vmul.f32 %v795, %v1160
        %v1168 = vmul.f32 %v800, %v1160
        %v1169 = vmul.f32 %v805, %v1160
        %v1170 = vmul.f32 %v810, %v1160
        %v1171 = vmul.f32 %v815, %v1160
        %v1172 = vmul.f32 %v820, %v1160
        %v1173 = vmul.f32 %v825, %v1160
        %v1174 = vmul.f32 %v830, %v1160
        %v1175 = vmul.f32 %v835, %v1160
        %v1176 = vmul.f32 %v840, %v1160
        %v1177 = vmul.f32 %v845, %v1160
        %v1178 = vmul.f32 %v850, %v1160
        %v1179 = vmul.f32 %v855, %v1160
        %v1180 = vmul.f32 %v860, %v1160
        %v1181 = vmul.f32 %v865, %v1160
        %v1182 = vmul.f32 %v870, %v1160
        %v1183 = vmul.f32 %v875, %v1160
        %v1184 = vmul.f32 %v880, %v1160
        %v1185 = vmul.f32 %v885, %v1160
        %v1186 = vmul.f32 %v890, %v1160
        %v1187 = vmul.f32 %v895, %v1160
        %v1188 = vmul.f32 %v900, %v1160
        %v1189 = vmul.f32 %v905, %v1160
        %v1190 = vmul.f32 %v910, %v1160
        %v1191 = vmul.f32 %v915, %v1160
        %v1192 = vmul.f32 %v920, %v1160
        %v1193 = vmul.f32 %v925, %v1160
        %v1194 = vmul.f32 %v930, %v1160
        %v1195 = vmul.f32 %v935, %v1160
        %v1196 = vmul.f32 %v940, %v1160
        %v1197 = vmul.f32 %v945, %v1160
        %v1198 = vmul.f32 %v950, %v1160
        %v1199 = vmul.f32 %v955, %v1160
        %v1200 = vmul.f32 %v960, %v1160
        %v1201 = vmul.f32 %v965, %v1160
        %v1202 = vmul.f32 %v970, %v1160
        %v1203 = vmul.f32 %v975, %v1160
        %v1204 = vmul.f32 %v980, %v1160
        %v1205 = vmul.f32 %v985, %v1160
        %v1206 = vmul.f32 %v990, %v1160
        %v1207 = vmul.f32 %v995, %v1160
        %v1208 = vmul.f32 %v1000, %v1160
        %v1209 = vmul.f32 %v1005, %v1160
        %v1210 = vmul.f32 %v1010, %v1160
        %v1211 = vmul.f32 %v1015, %v1160
        %v1212 = vmul.f32 %v1020, %v1160
        %v1213 = vmul.f32 %v1025, %v1160
        %v1214 = vmul.f32 %v1030, %v1160
        %v1215 = vmul.f32 %v1035, %v1160
        %v1216 = vmul.f32 %v1040, %v1160
        %v1217 = vmul.f32 %v1045, %v1160
        %v1218 = vmul.f32 %v1050, %v1160
        %v1219 = vmul.f32 %v1055, %v1160
        %v1220 = vmul.f32 %v1060, %v1160
        %v1221 = vmul.f32 %v1065, %v1160
        %v1222 = vmul.f32 %v1070, %v1160
        %v1223 = vmul.f32 %v1075, %v1160
        %v1224 = vmul.f32 %v1080, %v1160
        %v1225 = vmul.f32 %v1085, %v1160
        %v1226 = vsel %vm1088, %v770, %v1162
        %v1227 = vsel %vm1089, %v775, %v1163
        %v1228 = vsel %vm1090, %v780, %v1164
        %v1229 = vsel %vm1091, %v785, %v1165
        %v1230 = vsel %vm1092, %v790, %v1166
        %v1231 = vsel %vm1093, %v795, %v1167
        %v1232 = vsel %vm1094, %v800, %v1168
        %v1233 = vsel %vm1095, %v805, %v1169
        %v1234 = vsel %vm1096, %v810, %v1170
        %v1235 = vsel %vm1097, %v815, %v1171
        %v1236 = vsel %vm1098, %v820, %v1172
        %v1237 = vsel %vm1099, %v825, %v1173
        %v1238 = vsel %vm1100, %v830, %v1174
        %v1239 = vsel %vm1101, %v835, %v1175
        %v1240 = vsel %vm1102, %v840, %v1176
        %v1241 = vsel %vm1103, %v845, %v1177
        %v1242 = vsel %vm1104, %v850, %v1178
        %v1243 = vsel %vm1105, %v855, %v1179
        %v1244 = vsel %vm1106, %v860, %v1180
        %v1245 = vsel %vm1107, %v865, %v1181
        %v1246 = vsel %vm1108, %v870, %v1182
        %v1247 = vsel %vm1109, %v875, %v1183
        %v1248 = vsel %vm1110, %v880, %v1184
        %v1249 = vsel %vm1111, %v885, %v1185
        %v1250 = vsel %vm1112, %v890, %v1186
        %v1251 = vsel %vm1113, %v895, %v1187
        %v1252 = vsel %vm1114, %v900, %v1188
        %v1253 = vsel %vm1115, %v905, %v1189
        %v1254 = vsel %vm1116, %v910, %v1190
        %v1255 = vsel %vm1117, %v915, %v1191
        %v1256 = vsel %vm1118, %v920, %v1192
        %v1257 = vsel %vm1119, %v925, %v1193
        %v1258 = vsel %vm1120, %v930, %v1194
        %v1259 = vsel %vm1121, %v935, %v1195
        %v1260 = vsel %vm1122, %v940, %v1196
        %v1261 = vsel %vm1123, %v945, %v1197
        %v1262 = vsel %vm1124, %v950, %v1198
        %v1263 = vsel %vm1125, %v955, %v1199
        %v1264 = vsel %vm1126, %v960, %v1200
        %v1265 = vsel %vm1127, %v965, %v1201
        %v1266 = vsel %vm1128, %v970, %v1202
        %v1267 = vsel %vm1129, %v975, %v1203
        %v1268 = vsel %vm1130, %v980, %v1204
        %v1269 = vsel %vm1131, %v985, %v1205
        %v1270 = vsel %vm1132, %v990, %v1206
        %v1271 = vsel %vm1133, %v995, %v1207
        %v1272 = vsel %vm1134, %v1000, %v1208
        %v1273 = vsel %vm1135, %v1005, %v1209
        %v1274 = vsel %vm1136, %v1010, %v1210
        %v1275 = vsel %vm1137, %v1015, %v1211
        %v1276 = vsel %vm1138, %v1020, %v1212
        %v1277 = vsel %vm1139, %v1025, %v1213
        %v1278 = vsel %vm1140, %v1030, %v1214
        %v1279 = vsel %vm1141, %v1035, %v1215
        %v1280 = vsel %vm1142, %v1040, %v1216
        %v1281 = vsel %vm1143, %v1045, %v1217
        %v1282 = vsel %vm1144, %v1050, %v1218
        %v1283 = vsel %vm1145, %v1055, %v1219
        %v1284 = vsel %vm1146, %v1060, %v1220
        %v1285 = vsel %vm1147, %v1065, %v1221
        %v1286 = vsel %vm1148, %v1070, %v1222
        %v1287 = vsel %vm1149, %v1075, %v1223
        %v1288 = vsel %vm1150, %v1080, %v1224
        %v1289 = vsel %vm1151, %v1085, %v1225
        %1290 = vst [vmem:[%s320] sm:$0xff] %v1226
        %1291 = vst [vmem:[%s320 + $0x8] sm:$0xff] %v1227
        %1292 = vst [vmem:[%s320 + $0x10] sm:$0xff] %v1228
        %1293 = vst [vmem:[%s320 + $0x18] sm:$0xff] %v1229
        %1294 = vst [vmem:[%s320 + $0x20] sm:$0xff] %v1230
        %1295 = vst [vmem:[%s320 + $0x28] sm:$0xff] %v1231
        %1296 = vst [vmem:[%s320 + $0x30] sm:$0xff] %v1232
        %1297 = vst [vmem:[%s320 + $0x38] sm:$0xff] %v1233
        %1298 = vst [vmem:[%s320 + $0x40] sm:$0xff] %v1234
        %1299 = vst [vmem:[%s320 + $0x48] sm:$0xff] %v1235
        %1300 = vst [vmem:[%s320 + $0x50] sm:$0xff] %v1236
        %1301 = vst [vmem:[%s320 + $0x58] sm:$0xff] %v1237
        %1302 = vst [vmem:[%s320 + $0x60] sm:$0xff] %v1238
        %1303 = vst [vmem:[%s320 + $0x68] sm:$0xff] %v1239
        %1304 = vst [vmem:[%s320 + $0x70] sm:$0xff] %v1240
        %1305 = vst [vmem:[%s320 + $0x78] sm:$0xff] %v1241
        %1306 = vst [vmem:[%s320 + $0x80] sm:$0xff] %v1242
        %1307 = vst [vmem:[%s320 + $0x88] sm:$0xff] %v1243
        %1308 = vst [vmem:[%s320 + $0x90] sm:$0xff] %v1244
        %1309 = vst [vmem:[%s320 + $0x98] sm:$0xff] %v1245
        %1310 = vst [vmem:[%s320 + $0xa0] sm:$0xff] %v1246
        %1311 = vst [vmem:[%s320 + $0xa8] sm:$0xff] %v1247
        %1312 = vst [vmem:[%s320 + $0xb0] sm:$0xff] %v1248
        %1313 = vst [vmem:[%s320 + $0xb8] sm:$0xff] %v1249
        %1314 = vst [vmem:[%s320 + $0xc0] sm:$0xff] %v1250
        %1315 = vst [vmem:[%s320 + $0xc8] sm:$0xff] %v1251
        %1316 = vst [vmem:[%s320 + $0xd0] sm:$0xff] %v1252
        %1317 = vst [vmem:[%s320 + $0xd8] sm:$0xff] %v1253
        %1318 = vst [vmem:[%s320 + $0xe0] sm:$0xff] %v1254
        %1319 = vst [vmem:[%s320 + $0xe8] sm:$0xff] %v1255
        %1320 = vst [vmem:[%s320 + $0xf0] sm:$0xff] %v1256
        %1321 = vst [vmem:[%s320 + $0xf8] sm:$0xff] %v1257
        %1322 = vst [vmem:[%s320 + $0x100] sm:$0xff] %v1258
        %1323 = vst [vmem:[%s320 + $0x108] sm:$0xff] %v1259
        %1324 = vst [vmem:[%s320 + $0x110] sm:$0xff] %v1260
        %1325 = vst [vmem:[%s320 + $0x118] sm:$0xff] %v1261
        %1326 = vst [vmem:[%s320 + $0x120] sm:$0xff] %v1262
        %1327 = vst [vmem:[%s320 + $0x128] sm:$0xff] %v1263
        %1328 = vst [vmem:[%s320 + $0x130] sm:$0xff] %v1264
        %1329 = vst [vmem:[%s320 + $0x138] sm:$0xff] %v1265
        %1330 = vst [vmem:[%s320 + $0x140] sm:$0xff] %v1266
        %1331 = vst [vmem:[%s320 + $0x148] sm:$0xff] %v1267
        %1332 = vst [vmem:[%s320 + $0x150] sm:$0xff] %v1268
        %1333 = vst [vmem:[%s320 + $0x158] sm:$0xff] %v1269
        %1334 = vst [vmem:[%s320 + $0x160] sm:$0xff] %v1270
        %1335 = vst [vmem:[%s320 + $0x168] sm:$0xff] %v1271
        %1336 = vst [vmem:[%s320 + $0x170] sm:$0xff] %v1272
        %1337 = vst [vmem:[%s320 + $0x178] sm:$0xff] %v1273
        %1338 = vst [vmem:[%s320 + $0x180] sm:$0xff] %v1274
        %1339 = vst [vmem:[%s320 + $0x188] sm:$0xff] %v1275
        %1340 = vst [vmem:[%s320 + $0x190] sm:$0xff] %v1276
        %1341 = vst [vmem:[%s320 + $0x198] sm:$0xff] %v1277
        %1342 = vst [vmem:[%s320 + $0x1a0] sm:$0xff] %v1278
        %1343 = vst [vmem:[%s320 + $0x1a8] sm:$0xff] %v1279
        %1344 = vst [vmem:[%s320 + $0x1b0] sm:$0xff] %v1280
        %1345 = vst [vmem:[%s320 + $0x1b8] sm:$0xff] %v1281
        %1346 = vst [vmem:[%s320 + $0x1c0] sm:$0xff] %v1282
        %1347 = vst [vmem:[%s320 + $0x1c8] sm:$0xff] %v1283
        %1348 = vst [vmem:[%s320 + $0x1d0] sm:$0xff] %v1284
        %1349 = vst [vmem:[%s320 + $0x1d8] sm:$0xff] %v1285
        %1350 = vst [vmem:[%s320 + $0x1e0] sm:$0xff] %v1286
        %1351 = vst [vmem:[%s320 + $0x1e8] sm:$0xff] %v1287
        %1352 = vst [vmem:[%s320 + $0x1f0] sm:$0xff] %v1288
        %1353 = vst [vmem:[%s320 + $0x1f8] sm:$0xff] %v1289
        %s1354 = smul.u32 %s29, 512
        %s1355 = scvt.s32.f32 %s1354
        %v1356 = vadd.f32 %v1226, %v1227
        %v1357 = vadd.f32 %v1356, %v1228
        %v1358 = vadd.f32 %v1357, %v1229
        %v1359 = vadd.f32 %v1358, %v1230
        %v1360 = vadd.f32 %v1359, %v1231
        %v1361 = vadd.f32 %v1360, %v1232
        %v1362 = vadd.f32 %v1361, %v1233
        %v1363 = vadd.f32 %v1362, %v1234
        %v1364 = vadd.f32 %v1363, %v1235
        %v1365 = vadd.f32 %v1364, %v1236
        %v1366 = vadd.f32 %v1365, %v1237
        %v1367 = vadd.f32 %v1366, %v1238
        %v1368 = vadd.f32 %v1367, %v1239
        %v1369 = vadd.f32 %v1368, %v1240
        %v1370 = vadd.f32 %v1369, %v1241
        %v1371 = vadd.f32 %v1370, %v1242
        %v1372 = vadd.f32 %v1371, %v1243
        %v1373 = vadd.f32 %v1372, %v1244
        %v1374 = vadd.f32 %v1373, %v1245
        %v1375 = vadd.f32 %v1374, %v1246
        %v1376 = vadd.f32 %v1375, %v1247
        %v1377 = vadd.f32 %v1376, %v1248
        %v1378 = vadd.f32 %v1377, %v1249
        %v1379 = vadd.f32 %v1378, %v1250
        %v1380 = vadd.f32 %v1379, %v1251
        %v1381 = vadd.f32 %v1380, %v1252
        %v1382 = vadd.f32 %v1381, %v1253
        %v1383 = vadd.f32 %v1382, %v1254
        %v1384 = vadd.f32 %v1383, %v1255
        %v1385 = vadd.f32 %v1384, %v1256
        %v1386 = vadd.f32 %v1385, %v1257
        %v1387 = vadd.f32 %v1386, %v1258
        %v1388 = vadd.f32 %v1387, %v1259
        %v1389 = vadd.f32 %v1388, %v1260
        %v1390 = vadd.f32 %v1389, %v1261
        %v1391 = vadd.f32 %v1390, %v1262
        %v1392 = vadd.f32 %v1391, %v1263
        %v1393 = vadd.f32 %v1392, %v1264
        %v1394 = vadd.f32 %v1393, %v1265
        %v1395 = vadd.f32 %v1394, %v1266
        %v1396 = vadd.f32 %v1395, %v1267
        %v1397 = vadd.f32 %v1396, %v1268
        %v1398 = vadd.f32 %v1397, %v1269
        %v1399 = vadd.f32 %v1398, %v1270
        %v1400 = vadd.f32 %v1399, %v1271
        %v1401 = vadd.f32 %v1400, %v1272
        %v1402 = vadd.f32 %v1401, %v1273
        %v1403 = vadd.f32 %v1402, %v1274
        %v1404 = vadd.f32 %v1403, %v1275
        %v1405 = vadd.f32 %v1404, %v1276
        %v1406 = vadd.f32 %v1405, %v1277
        %v1407 = vadd.f32 %v1406, %v1278
        %v1408 = vadd.f32 %v1407, %v1279
        %v1409 = vadd.f32 %v1408, %v1280
        %v1410 = vadd.f32 %v1409, %v1281
        %v1411 = vadd.f32 %v1410, %v1282
        %v1412 = vadd.f32 %v1411, %v1283
        %v1413 = vadd.f32 %v1412, %v1284
        %v1414 = vadd.f32 %v1413, %v1285
        %v1415 = vadd.f32 %v1414, %v1286
        %v1416 = vadd.f32 %v1415, %v1287
        %v1417 = vadd.f32 %v1416, %v1288
        %v1418 = vadd.f32 %v1417, %v1289
        %v1419 = vrot.slane %v1418, 4
        %v1420 = vadd.f32 %v1418, %v1419
        %v1421 = vrot.slane %v1420, 2
        %v1422 = vadd.f32 %v1420, %v1421
        %v1423 = vrot.slane %v1422, 1
        %v1424 = vadd.f32 %v1422, %v1423
        %v1425 = vrcp.pop 512.0
        %v1426 = vmul.f32 %v1424, %v1425
        %v1427 = vsub.f32 %v1226, %v1426
        %v1428 = vsub.f32 %v1227, %v1426
        %v1429 = vsub.f32 %v1228, %v1426
        %v1430 = vsub.f32 %v1229, %v1426
        %v1431 = vsub.f32 %v1230, %v1426
        %v1432 = vsub.f32 %v1231, %v1426
        %v1433 = vsub.f32 %v1232, %v1426
        %v1434 = vsub.f32 %v1233, %v1426
        %v1435 = vsub.f32 %v1234, %v1426
        %v1436 = vsub.f32 %v1235, %v1426
        %v1437 = vsub.f32 %v1236, %v1426
        %v1438 = vsub.f32 %v1237, %v1426
        %v1439 = vsub.f32 %v1238, %v1426
        %v1440 = vsub.f32 %v1239, %v1426
        %v1441 = vsub.f32 %v1240, %v1426
        %v1442 = vsub.f32 %v1241, %v1426
        %v1443 = vsub.f32 %v1242, %v1426
        %v1444 = vsub.f32 %v1243, %v1426
        %v1445 = vsub.f32 %v1244, %v1426
        %v1446 = vsub.f32 %v1245, %v1426
        %v1447 = vsub.f32 %v1246, %v1426
        %v1448 = vsub.f32 %v1247, %v1426
        %v1449 = vsub.f32 %v1248, %v1426
        %v1450 = vsub.f32 %v1249, %v1426
        %v1451 = vsub.f32 %v1250, %v1426
        %v1452 = vsub.f32 %v1251, %v1426
        %v1453 = vsub.f32 %v1252, %v1426
        %v1454 = vsub.f32 %v1253, %v1426
        %v1455 = vsub.f32 %v1254, %v1426
        %v1456 = vsub.f32 %v1255, %v1426
        %v1457 = vsub.f32 %v1256, %v1426
        %v1458 = vsub.f32 %v1257, %v1426
        %v1459 = vsub.f32 %v1258, %v1426
        %v1460 = vsub.f32 %v1259, %v1426
        %v1461 = vsub.f32 %v1260, %v1426
        %v1462 = vsub.f32 %v1261, %v1426
        %v1463 = vsub.f32 %v1262, %v1426
        %v1464 = vsub.f32 %v1263, %v1426
        %v1465 = vsub.f32 %v1264, %v1426
        %v1466 = vsub.f32 %v1265, %v1426
        %v1467 = vsub.f32 %v1266, %v1426
        %v1468 = vsub.f32 %v1267, %v1426
        %v1469 = vsub.f32 %v1268, %v1426
        %v1470 = vsub.f32 %v1269, %v1426
        %v1471 = vsub.f32 %v1270, %v1426
        %v1472 = vsub.f32 %v1271, %v1426
        %v1473 = vsub.f32 %v1272, %v1426
        %v1474 = vsub.f32 %v1273, %v1426
        %v1475 = vsub.f32 %v1274, %v1426
        %v1476 = vsub.f32 %v1275, %v1426
        %v1477 = vsub.f32 %v1276, %v1426
        %v1478 = vsub.f32 %v1277, %v1426
        %v1479 = vsub.f32 %v1278, %v1426
        %v1480 = vsub.f32 %v1279, %v1426
        %v1481 = vsub.f32 %v1280, %v1426
        %v1482 = vsub.f32 %v1281, %v1426
        %v1483 = vsub.f32 %v1282, %v1426
        %v1484 = vsub.f32 %v1283, %v1426
        %v1485 = vsub.f32 %v1284, %v1426
        %v1486 = vsub.f32 %v1285, %v1426
        %v1487 = vsub.f32 %v1286, %v1426
        %v1488 = vsub.f32 %v1287, %v1426
        %v1489 = vsub.f32 %v1288, %v1426
        %v1490 = vsub.f32 %v1289, %v1426
        %v1491 = vmul.f32 %v1427, %v1427
        %v1492 = vmul.f32 %v1428, %v1428
        %v1493 = vmul.f32 %v1429, %v1429
        %v1494 = vmul.f32 %v1430, %v1430
        %v1495 = vmul.f32 %v1431, %v1431
        %v1496 = vmul.f32 %v1432, %v1432
        %v1497 = vmul.f32 %v1433, %v1433
        %v1498 = vmul.f32 %v1434, %v1434
        %v1499 = vmul.f32 %v1435, %v1435
        %v1500 = vmul.f32 %v1436, %v1436
        %v1501 = vmul.f32 %v1437, %v1437
        %v1502 = vmul.f32 %v1438, %v1438
        %v1503 = vmul.f32 %v1439, %v1439
        %v1504 = vmul.f32 %v1440, %v1440
        %v1505 = vmul.f32 %v1441, %v1441
        %v1506 = vmul.f32 %v1442, %v1442
        %v1507 = vmul.f32 %v1443, %v1443
        %v1508 = vmul.f32 %v1444, %v1444
        %v1509 = vmul.f32 %v1445, %v1445
        %v1510 = vmul.f32 %v1446, %v1446
        %v1511 = vmul.f32 %v1447, %v1447
        %v1512 = vmul.f32 %v1448, %v1448
        %v1513 = vmul.f32 %v1449, %v1449
        %v1514 = vmul.f32 %v1450, %v1450
        %v1515 = vmul.f32 %v1451, %v1451
        %v1516 = vmul.f32 %v1452, %v1452
        %v1517 = vmul.f32 %v1453, %v1453
        %v1518 = vmul.f32 %v1454, %v1454
        %v1519 = vmul.f32 %v1455, %v1455
        %v1520 = vmul.f32 %v1456, %v1456
        %v1521 = vmul.f32 %v1457, %v1457
        %v1522 = vmul.f32 %v1458, %v1458
        %v1523 = vmul.f32 %v1459, %v1459
        %v1524 = vmul.f32 %v1460, %v1460
        %v1525 = vmul.f32 %v1461, %v1461
        %v1526 = vmul.f32 %v1462, %v1462
        %v1527 = vmul.f32 %v1463, %v1463
        %v1528 = vmul.f32 %v1464, %v1464
        %v1529 = vmul.f32 %v1465, %v1465
        %v1530 = vmul.f32 %v1466, %v1466
        %v1531 = vmul.f32 %v1467, %v1467
        %v1532 = vmul.f32 %v1468, %v1468
        %v1533 = vmul.f32 %v1469, %v1469
        %v1534 = vmul.f32 %v1470, %v1470
        %v1535 = vmul.f32 %v1471, %v1471
        %v1536 = vmul.f32 %v1472, %v1472
        %v1537 = vmul.f32 %v1473, %v1473
        %v1538 = vmul.f32 %v1474, %v1474
        %v1539 = vmul.f32 %v1475, %v1475
        %v1540 = vmul.f32 %v1476, %v1476
        %v1541 = vmul.f32 %v1477, %v1477
        %v1542 = vmul.f32 %v1478, %v1478
        %v1543 = vmul.f32 %v1479, %v1479
        %v1544 = vmul.f32 %v1480, %v1480
        %v1545 = vmul.f32 %v1481, %v1481
        %v1546 = vmul.f32 %v1482, %v1482
        %v1547 = vmul.f32 %v1483, %v1483
        %v1548 = vmul.f32 %v1484, %v1484
        %v1549 = vmul.f32 %v1485, %v1485
        %v1550 = vmul.f32 %v1486, %v1486
        %v1551 = vmul.f32 %v1487, %v1487
        %v1552 = vmul.f32 %v1488, %v1488
        %v1553 = vmul.f32 %v1489, %v1489
        %v1554 = vmul.f32 %v1490, %v1490
        %v1555 = vadd.f32 %v1491, %v1492
        %v1556 = vadd.f32 %v1555, %v1493
        %v1557 = vadd.f32 %v1556, %v1494
        %v1558 = vadd.f32 %v1557, %v1495
        %v1559 = vadd.f32 %v1558, %v1496
        %v1560 = vadd.f32 %v1559, %v1497
        %v1561 = vadd.f32 %v1560, %v1498
        %v1562 = vadd.f32 %v1561, %v1499
        %v1563 = vadd.f32 %v1562, %v1500
        %v1564 = vadd.f32 %v1563, %v1501
        %v1565 = vadd.f32 %v1564, %v1502
        %v1566 = vadd.f32 %v1565, %v1503
        %v1567 = vadd.f32 %v1566, %v1504
        %v1568 = vadd.f32 %v1567, %v1505
        %v1569 = vadd.f32 %v1568, %v1506
        %v1570 = vadd.f32 %v1569, %v1507
        %v1571 = vadd.f32 %v1570, %v1508
        %v1572 = vadd.f32 %v1571, %v1509
        %v1573 = vadd.f32 %v1572, %v1510
        %v1574 = vadd.f32 %v1573, %v1511
        %v1575 = vadd.f32 %v1574, %v1512
        %v1576 = vadd.f32 %v1575, %v1513
        %v1577 = vadd.f32 %v1576, %v1514
        %v1578 = vadd.f32 %v1577, %v1515
        %v1579 = vadd.f32 %v1578, %v1516
        %v1580 = vadd.f32 %v1579, %v1517
        %v1581 = vadd.f32 %v1580, %v1518
        %v1582 = vadd.f32 %v1581, %v1519
        %v1583 = vadd.f32 %v1582, %v1520
        %v1584 = vadd.f32 %v1583, %v1521
        %v1585 = vadd.f32 %v1584, %v1522
        %v1586 = vadd.f32 %v1585, %v1523
        %v1587 = vadd.f32 %v1586, %v1524
        %v1588 = vadd.f32 %v1587, %v1525
        %v1589 = vadd.f32 %v1588, %v1526
        %v1590 = vadd.f32 %v1589, %v1527
        %v1591 = vadd.f32 %v1590, %v1528
        %v1592 = vadd.f32 %v1591, %v1529
        %v1593 = vadd.f32 %v1592, %v1530
        %v1594 = vadd.f32 %v1593, %v1531
        %v1595 = vadd.f32 %v1594, %v1532
        %v1596 = vadd.f32 %v1595, %v1533
        %v1597 = vadd.f32 %v1596, %v1534
        %v1598 = vadd.f32 %v1597, %v1535
        %v1599 = vadd.f32 %v1598, %v1536
        %v1600 = vadd.f32 %v1599, %v1537
        %v1601 = vadd.f32 %v1600, %v1538
        %v1602 = vadd.f32 %v1601, %v1539
        %v1603 = vadd.f32 %v1602, %v1540
        %v1604 = vadd.f32 %v1603, %v1541
        %v1605 = vadd.f32 %v1604, %v1542
        %v1606 = vadd.f32 %v1605, %v1543
        %v1607 = vadd.f32 %v1606, %v1544
        %v1608 = vadd.f32 %v1607, %v1545
        %v1609 = vadd.f32 %v1608, %v1546
        %v1610 = vadd.f32 %v1609, %v1547
        %v1611 = vadd.f32 %v1610, %v1548
        %v1612 = vadd.f32 %v1611, %v1549
        %v1613 = vadd.f32 %v1612, %v1550
        %v1614 = vadd.f32 %v1613, %v1551
        %v1615 = vadd.f32 %v1614, %v1552
        %v1616 = vadd.f32 %v1615, %v1553
        %v1617 = vadd.f32 %v1616, %v1554
        %v1618 = vrot.slane %v1617, 4
        %v1619 = vadd.f32 %v1617, %v1618
        %v1620 = vrot.slane %v1619, 2
        %v1621 = vadd.f32 %v1619, %v1620
        %v1622 = vrot.slane %v1621, 1
        %v1623 = vadd.f32 %v1621, %v1622
        %s1624 = sadd.f32 %s1355, 512.0
        %v1625 = vld [vmem:[%s325] sm:$0x1]
        %v1626 = vsub.f32 %v1426, %v1625
        %v1627 = vstv %s1624
        %v1628 = vrcp.pop %v1627
        %s1629 = vtos %v1628
        %s1630 = smul.f32 512.0, %s1629
        %v1631 = vstv %s1630
        %v1632 = vmul.f32 %v1626, %v1631
        %v1633 = vadd.f32 %v1625, %v1632
        %1634 = vst [vmem:[%s325] sm:$0x1] %v1633
        %v1635 = vld [vmem:[%s328] sm:$0x1]
        %v1636 = vmul.f32 %v1626, %v1626
        %s1637 = smul.f32 %s1355, 512.0
        %v1638 = vstv %s1624
        %v1639 = vrcp.pop %v1638
        %s1640 = vtos %v1639
        %s1641 = smul.f32 %s1637, %s1640
        %v1642 = vstv %s1641
        %v1643 = vmul.f32 %v1636, %v1642
        %v1644 = vadd.f32 %v1623, %v1643
        %v1645 = vadd.f32 %v1635, %v1644
        %1646 = vst [vmem:[%s328] sm:$0x1] %v1645
        %s1647 = sadd.s32 %s28, %s29
        %s1648 = smul.u32 64, %s1647
        %p1649 = scmp.lt.s32.totalorder %s1648, 127
        %s1650 = scalar_select %p1649, %s1648, 127
        %s1651 = smul.addr %s1650, 8
        %s1652 = scalar_lea.vmem %s4, %s1651
        %p1653 = scmp.lt.s32.totalorder %s28, 1
        %s1654 = scalar_select %p1653, %s28, 1
        %s1655 = scalar_lea.vmem %s5, %s1654
        %p1656 = scmp.lt.s32.totalorder %s28, 1
        %s1657 = scalar_select %p1656, %s28, 1
        %s1658 = scalar_lea.vmem %s6, %s1657
        // Predicated region
        $region49: #{stcn_block.3} parent=35 // pred_check
          %p1659 = pneg %p147
        $region50: #{stcn_block.3} parent=35 // pred_check_branch
          %1661 = sbr.rel (%p1659) target = $region52
        $region51: #{stcn_block.3} parent=35 // pred_region
          %s1662 = sadd.s32 %s28, %s29
          %s1663 = smul.u32 64, %s1662
        $region52: #{stcn_block.3} parent=35 // pred_fallthru
          _
        // Predicated region
        $region53: #{stcn_block.3} parent=35 // pred_check
          %p1664 = pneg %p173
        $region54: #{stcn_block.3} parent=35 // pred_check_branch
          %1666 = sbr.rel (%p1664) target = $region56
        $region55: #{stcn_block.3} parent=35 // pred_region
          _
        $region56: #{stcn_block.3} parent=35 // pred_fallthru
          _
        // Predicated region
        $region57: #{stcn_block.3} parent=35 // pred_check
          %p1667 = pneg %p199
        $region58: #{stcn_block.3} parent=35 // pred_check_branch
          %1669 = sbr.rel (%p1667) target = $region60
        $region59: #{stcn_block.3} parent=35 // pred_region
          _
        $region60: #{stcn_block.3} parent=35 // pred_fallthru
          _
      $region36: #{stcn_block.3} parent=5 // pred_fallthru
        _
      %p1670 = scmp.le.s32.totalorder 2, %s19
      // Predicated region
      $region61: #{stcn_block.3} parent=5 // pred_check
        %p1671 = pneg %p1670
      $region62: #{stcn_block.3} parent=5 // pred_check_branch
        %1673 = sbr.rel (%p1671) target = $region64
      $region63: #{stcn_block.3} parent=5 // pred_region
        %s1674 = ssub.s32 %s19, 2
        // Predicated region
        $region65: #{stcn_block.3} parent=63 // pred_check
          %p1675 = pneg %p153
        $region66: #{stcn_block.3} parent=63 // pred_check_branch
          %1677 = sbr.rel (%p1675) target = $region68
        $region67: #{stcn_block.3} parent=63 // pred_region
          %s1678 = sadd.s32 %s30, %s31
          %s1679 = smul.u32 64, %s1678
          %p1680 = scmp.lt.s32.totalorder %s1679, 127
          %s1681 = scalar_select %p1680, %s1679, 127
          %s1682 = smul.addr %s1681, 8
          %s1683 = scalar_lea.vmem %s4, %s1682
        $region68: #{stcn_block.3} parent=63 // pred_fallthru
          _
        // Predicated region
        $region69: #{stcn_block.3} parent=63 // pred_check
          %p1684 = pneg %p179
        $region70: #{stcn_block.3} parent=63 // pred_check_branch
          %1686 = sbr.rel (%p1684) target = $region72
        $region71: #{stcn_block.3} parent=63 // pred_region
          %p1687 = scmp.lt.s32.totalorder %s30, 1
          %s1688 = scalar_select %p1687, %s30, 1
          %s1689 = scalar_lea.vmem %s5, %s1688
        $region72: #{stcn_block.3} parent=63 // pred_fallthru
          _
        // Predicated region
        $region73: #{stcn_block.3} parent=63 // pred_check
          %p1690 = pneg %p205
        $region74: #{stcn_block.3} parent=63 // pred_check_branch
          %1692 = sbr.rel (%p1690) target = $region76
        $region75: #{stcn_block.3} parent=63 // pred_region
          %p1693 = scmp.lt.s32.totalorder %s30, 1
          %s1694 = scalar_select %p1693, %s30, 1
          %s1695 = scalar_lea.vmem %s6, %s1694
        $region76: #{stcn_block.3} parent=63 // pred_fallthru
          _
      $region64: #{stcn_block.3} parent=5 // pred_fallthru
        _
    $region6: #{stcn_block.3} parent=1 // loop_footer
      %s23 = sadd.s32 1, %s19
    $region7: #{stcn_block.3} parent=1 // loop_footer_branch
      %18 = sbr.rel target = $region3
    $region8: #{stcn_block.3} parent=1 // loop_exit
      _
    %1696 = vsyncpa [#allocation4], 1
    %s1697 = scalar_lea.sflag [#allocation4], 1
    %1698 = vsyncpa %s1697, 1
    %1699 = vsyncpa [#allocation6], 1

// kernel: stcn_block.4
$region0: #{stcn_block.4}
  #allocation0 [shape = 'u32[]', space=smem, size = 0x4, offset = 0x4, fixed_abs, tag = 'smem constant byte address 0x4 - core index']
  #allocation1 [shape = 'u32[144,128]{1,0:T(1,128)}', space=vmem, size = 0x12000, scoped, tag = 'internal scratch']
  #allocation2 [shape = 'f32[1,1]{1,0:T(1,128)S(1)}', space=vmem, size = 0x200, scoped, tag = 'scoped memory for stcn_block.4']
  %s0 = inlined_call_operand.vmem [shape: f32[1024,128], index: 0, kind: input, shape index: {}, may-alias: {0,1,2}]
  %s1 = inlined_call_operand.vmem [shape: f32[1024,128], index: 1, kind: input, shape index: {}, may-alias: {0,1,2}]
  %s2 = inlined_call_operand.vmem [shape: f32[1024,128], index: 2, kind: input, shape index: {}, may-alias: {0,1,2}]
  %s3 = inlined_call_operand.vmem [shape: f32[1,128], index: 3, kind: input, shape index: {}]
  %s4 = inlined_call_operand.vmem [shape: f32[1,128], index: 4, kind: input, shape index: {}]
  %s5 = inlined_call_operand.vmem [shape: f32[3,128], index: 5, kind: input, shape index: {}]
  %s6 = inlined_call_operand.vmem [shape: f32[1,128], index: 6, kind: input, shape index: {}]
  %s7 = inlined_call_operand.<no memory space> [shape: f32[1,1], index: 7, kind: input, shape index: {}]
  %s8 = inlined_call_operand.vmem [shape: f32[1024,128], index: 8, kind: output, shape index: {0}]
  %s9 = inlined_call_operand.vmem [shape: f32[2,1,128], index: 9, kind: output, shape index: {1}]
  %s10 = inlined_call_operand.vmem [shape: f32[2,1,128], index: 10, kind: output, shape index: {2}]
  %11 = xla_tuple %s8, %s9, %s10
  %s12 = sld [smem:[#allocation0]]
  $region85: #{stcn_block.4} parent=0
    _
  %s14 = ssub.s32 1, %s12
  %s15 = scalar_select 0, %s14, %s12
  %v16 = vstv %s7
  %17 = vst [vmem:[#allocation2] sm:$0x1] %v16
  loop: start=0, step=1, limit=4
  $region2: #{stcn_block.4} parent=0 // loop_pre_header
    _
  $region3: #{stcn_block.4} parent=0 // loop_header
    %s19 = sphi 0, %s23
    %p20 = scmp.ge.s32.totalorder %s19, 4
    %s26 = sphi 0, %s38
    %s27 = sphi 0, %s34
    %s28 = sphi 0, %s26
    %s29 = sphi 0, %s27
    %s30 = sphi 0, %s28
    %s31 = sphi 0, %s29
    %s43 = sphi 0, %s45
    %s46 = sphi 0, %s43
    %s47 = sphi 0, %s46
    %s63 = sphi 0, %s47
    %s79 = sphi 0, %s81
    %s82 = sphi 0, %s79
    %s83 = sphi 0, %s82
    %s99 = sphi 0, %s83
    %s115 = sphi 0, %s117
    %s118 = sphi 0, %s115
    %s119 = sphi 0, %s118
    %s135 = sphi 0, %s119
    %s139 = sphi 0, %s139
    %s141 = sphi 0, %s139
    %s142 = sphi 0, %s141
    %s156 = sphi 0, %s142
    %s160 = sphi 0, %s160
    %s162 = sphi 0, %s160
    %s163 = sphi 0, %s162
    %s177 = sphi 0, %s163
    %s181 = sphi 0, %s181
    %s183 = sphi 0, %s181
    %s184 = sphi 0, %s183
    %s198 = sphi 0, %s184
    %s202 = sphi 0, %s202
    %s204 = sphi 0, %s202
    %s205 = sphi 0, %s204
    %s219 = sphi 0, %s205
    %s223 = sphi 0, %s223
    %s225 = sphi 0, %s223
    %s226 = sphi 0, %s225
    %s240 = sphi 0, %s226
    %s248 = sphi 0, %s250
    %s251 = sphi 0, %s248
    %s252 = sphi 0, %s251
    %s268 = sphi 0, %s252
    %s274 = sphi 0, %s276
    %s277 = sphi 0, %s274
    %s278 = sphi 0, %s277
    %s294 = sphi 0, %s278
    %s300 = sphi 0, %s302
    %s303 = sphi 0, %s300
    %s304 = sphi 0, %s303
    %s320 = sphi 0, %s304
  $region4: #{stcn_block.4} parent=0 // loop_header_branch
    %22 = sbr.rel (%p20) target = $region8
  $region5: #{stcn_block.4} parent=0 // loop_body
    %s24 = ssub.s32 %s19, 1
    %s25 = ssub.s32 %s19, 2
    %s32 = sadd.s32 1, %s27
    %p33 = scmp.ge.s32.totalorder %s32, 1
    %s34 = scalar_select %p33, 0, %s32
    %s35 = sadd.s32 1, %s26
    %s36 = scalar_select %p33, %s35, %s26
    %p37 = scmp.ge.s32.totalorder %s36, 2
    %s38 = scalar_select %p37, 0, %s36
    %s39 = sadd.s32 %s26, %s27
    %s40 = sadd.s32 %s38, %s34
    %s41 = ssub.s32 %s39, %s40
    %p42 = scmp.eq.s32.totalorder %s41, 0
    %s44 = sadd.s32 %s43, 1
    %s45 = scalar_select %p42, %s43, %s44
    %p48 = pneg %p42
    %p49 = scmp.eq.s32.totalorder %s19, 1
    %p50 = por %p48, %p49
    %p51 = scmp.ne.s32.totalorder %s43, %s46
    %p52 = scmp.eq.s32.totalorder %s19, 0
    %p53 = por %p51, %p52
    %p54 = scmp.ne.s32.totalorder %s43, %s46
    %p55 = scmp.eq.s32.totalorder %s24, 1
    %p56 = por %p54, %p55
    %p57 = scmp.ne.s32.totalorder %s46, %s47
    %p58 = scmp.eq.s32.totalorder %s24, 0
    %p59 = por %p57, %p58
    %p60 = scmp.ne.s32.totalorder %s46, %s47
    %p61 = scmp.eq.s32.totalorder %s25, 1
    %p62 = por %p60, %p61
    %p64 = scmp.ne.s32.totalorder %s47, %s63
    %p65 = scmp.eq.s32.totalorder %s25, 0
    %p66 = por %p64, %p65
    %s67 = sadd.s32 %s26, %s27
    %s68 = smul.u32 %s67, 64
    %s69 = ssub.s32 %s68, 1
    %p70 = scmp.gt.s32.totalorder %s69, 0
    %s71 = scalar_select %p70, %s69, 0
    %s72 = sadd.s32 %s38, %s34
    %s73 = smul.u32 %s72, 64
    %s74 = ssub.s32 %s73, 1
    %p75 = scmp.gt.s32.totalorder %s74, 0
    %s76 = scalar_select %p75, %s74, 0
    %s77 = ssub.s32 %s71, %s76
    %p78 = scmp.eq.s32.totalorder %s77, 0
    %s80 = sadd.s32 %s79, 1
    %s81 = scalar_select %p78, %s79, %s80
    %p84 = pneg %p78
    %p85 = scmp.eq.s32.totalorder %s19, 1
    %p86 = por %p84, %p85
    %p87 = scmp.ne.s32.totalorder %s79, %s82
    %p88 = scmp.eq.s32.totalorder %s19, 0
    %p89 = por %p87, %p88
    %p90 = scmp.ne.s32.totalorder %s79, %s82
    %p91 = scmp.eq.s32.totalorder %s24, 1
    %p92 = por %p90, %p91
    %p93 = scmp.ne.s32.totalorder %s82, %s83
    %p94 = scmp.eq.s32.totalorder %s24, 0
    %p95 = por %p93, %p94
    %p96 = scmp.ne.s32.totalorder %s82, %s83
    %p97 = scmp.eq.s32.totalorder %s25, 1
    %p98 = por %p96, %p97
    %p100 = scmp.ne.s32.totalorder %s83, %s99
    %p101 = scmp.eq.s32.totalorder %s25, 0
    %p102 = por %p100, %p101
    %s103 = sadd.s32 %s26, %s27
    %s104 = sadd.s32 %s103, 1
    %s105 = smul.u32 %s104, 64
    %p106 = scmp.lt.s32.totalorder %s105, 127
    %s107 = scalar_select %p106, %s105, 127
    %s108 = sadd.s32 %s38, %s34
    %s109 = sadd.s32 %s108, 1
    %s110 = smul.u32 %s109, 64
    %p111 = scmp.lt.s32.totalorder %s110, 127
    %s112 = scalar_select %p111, %s110, 127
    %s113 = ssub.s32 %s107, %s112
    %p114 = scmp.eq.s32.totalorder %s113, 0
    %s116 = sadd.s32 %s115, 1
    %s117 = scalar_select %p114, %s115, %s116
    %p120 = pneg %p114
    %p121 = scmp.eq.s32.totalorder %s19, 1
    %p122 = por %p120, %p121
    %p123 = scmp.ne.s32.totalorder %s115, %s118
    %p124 = scmp.eq.s32.totalorder %s19, 0
    %p125 = por %p123, %p124
    %p126 = scmp.ne.s32.totalorder %s115, %s118
    %p127 = scmp.eq.s32.totalorder %s24, 1
    %p128 = por %p126, %p127
    %p129 = scmp.ne.s32.totalorder %s118, %s119
    %p130 = scmp.eq.s32.totalorder %s24, 0
    %p131 = por %p129, %p130
    %p132 = scmp.ne.s32.totalorder %s118, %s119
    %p133 = scmp.eq.s32.totalorder %s25, 1
    %p134 = por %p132, %p133
    %p136 = scmp.ne.s32.totalorder %s119, %s135
    %p137 = scmp.eq.s32.totalorder %s25, 0
    %p138 = por %p136, %p137
    %s140 = sadd.s32 %s139, 1
    %p143 = scmp.eq.s32.totalorder %s19, 1
    %p144 = scmp.ne.s32.totalorder %s139, %s141
    %p145 = scmp.eq.s32.totalorder %s19, 0
    %p146 = por %p144, %p145
    %p147 = scmp.ne.s32.totalorder %s139, %s141
    %p148 = scmp.eq.s32.totalorder %s24, 1
    %p149 = por %p147, %p148
    %p150 = scmp.ne.s32.totalorder %s141, %s142
    %p151 = scmp.eq.s32.totalorder %s24, 0
    %p152 = por %p150, %p151
    %p153 = scmp.ne.s32.totalorder %s141, %s142
    %p154 = scmp.eq.s32.totalorder %s25, 1
    %p155 = por %p153, %p154
    %p157 = scmp.ne.s32.totalorder %s142, %s156
    %p158 = scmp.eq.s32.totalorder %s25, 0
    %p159 = por %p157, %p158
    %s161 = sadd.s32 %s160, 1
    %p164 = scmp.eq.s32.totalorder %s19, 1
    %p165 = scmp.ne.s32.totalorder %s160, %s162
    %p166 = scmp.eq.s32.totalorder %s19, 0
    %p167 = por %p165, %p166
    %p168 = scmp.ne.s32.totalorder %s160, %s162
    %p169 = scmp.eq.s32.totalorder %s24, 1
    %p170 = por %p168, %p169
    %p171 = scmp.ne.s32.totalorder %s162, %s163
    %p172 = scmp.eq.s32.totalorder %s24, 0
    %p173 = por %p171, %p172
    %p174 = scmp.ne.s32.totalorder %s162, %s163
    %p175 = scmp.eq.s32.totalorder %s25, 1
    %p176 = por %p174, %p175
    %p178 = scmp.ne.s32.totalorder %s163, %s177
    %p179 = scmp.eq.s32.totalorder %s25, 0
    %p180 = por %p178, %p179
    %s182 = sadd.s32 %s181, 1
    %p185 = scmp.eq.s32.totalorder %s19, 1
    %p186 = scmp.ne.s32.totalorder %s181, %s183
    %p187 = scmp.eq.s32.totalorder %s19, 0
    %p188 = por %p186, %p187
    %p189 = scmp.ne.s32.totalorder %s181, %s183
    %p190 = scmp.eq.s32.totalorder %s24, 1
    %p191 = por %p189, %p190
    %p192 = scmp.ne.s32.totalorder %s183, %s184
    %p193 = scmp.eq.s32.totalorder %s24, 0
    %p194 = por %p192, %p193
    %p195 = scmp.ne.s32.totalorder %s183, %s184
    %p196 = scmp.eq.s32.totalorder %s25, 1
    %p197 = por %p195, %p196
    %p199 = scmp.ne.s32.totalorder %s184, %s198
    %p200 = scmp.eq.s32.totalorder %s25, 0
    %p201 = por %p199, %p200
    %s203 = sadd.s32 %s202, 1
    %p206 = scmp.eq.s32.totalorder %s19, 1
    %p207 = scmp.ne.s32.totalorder %s202, %s204
    %p208 = scmp.eq.s32.totalorder %s19, 0
    %p209 = por %p207, %p208
    %p210 = scmp.ne.s32.totalorder %s202, %s204
    %p211 = scmp.eq.s32.totalorder %s24, 1
    %p212 = por %p210, %p211
    %p213 = scmp.ne.s32.totalorder %s204, %s205
    %p214 = scmp.eq.s32.totalorder %s24, 0
    %p215 = por %p213, %p214
    %p216 = scmp.ne.s32.totalorder %s204, %s205
    %p217 = scmp.eq.s32.totalorder %s25, 1
    %p218 = por %p216, %p217
    %p220 = scmp.ne.s32.totalorder %s205, %s219
    %p221 = scmp.eq.s32.totalorder %s25, 0
    %p222 = por %p220, %p221
    %s224 = sadd.s32 %s223, 1
    %p227 = scmp.eq.s32.totalorder %s19, 1
    %p228 = scmp.ne.s32.totalorder %s223, %s225
    %p229 = scmp.eq.s32.totalorder %s19, 0
    %p230 = por %p228, %p229
    %p231 = scmp.ne.s32.totalorder %s223, %s225
    %p232 = scmp.eq.s32.totalorder %s24, 1
    %p233 = por %p231, %p232
    %p234 = scmp.ne.s32.totalorder %s225, %s226
    %p235 = scmp.eq.s32.totalorder %s24, 0
    %p236 = por %p234, %p235
    %p237 = scmp.ne.s32.totalorder %s225, %s226
    %p238 = scmp.eq.s32.totalorder %s25, 1
    %p239 = por %p237, %p238
    %p241 = scmp.ne.s32.totalorder %s226, %s240
    %p242 = scmp.eq.s32.totalorder %s25, 0
    %p243 = por %p241, %p242
    %s244 = sadd.s32 %s26, %s27
    %s245 = sadd.s32 %s38, %s34
    %s246 = ssub.s32 %s244, %s245
    %p247 = scmp.eq.s32.totalorder %s246, 0
    %s249 = sadd.s32 %s248, 1
    %s250 = scalar_select %p247, %s248, %s249
    %p253 = pneg %p247
    %p254 = scmp.eq.s32.totalorder %s19, 1
    %p255 = por %p253, %p254
    %p256 = scmp.ne.s32.totalorder %s248, %s251
    %p257 = scmp.eq.s32.totalorder %s19, 0
    %p258 = por %p256, %p257
    %p259 = scmp.ne.s32.totalorder %s248, %s251
    %p260 = scmp.eq.s32.totalorder %s24, 1
    %p261 = por %p259, %p260
    %p262 = scmp.ne.s32.totalorder %s251, %s252
    %p263 = scmp.eq.s32.totalorder %s24, 0
    %p264 = por %p262, %p263
    %p265 = scmp.ne.s32.totalorder %s251, %s252
    %p266 = scmp.eq.s32.totalorder %s25, 1
    %p267 = por %p265, %p266
    %p269 = scmp.ne.s32.totalorder %s252, %s268
    %p270 = scmp.eq.s32.totalorder %s25, 0
    %p271 = por %p269, %p270
    %s272 = ssub.s32 %s26, %s38
    %p273 = scmp.eq.s32.totalorder %s272, 0
    %s275 = sadd.s32 %s274, 1
    %s276 = scalar_select %p273, %s274, %s275
    %p279 = pneg %p273
    %p280 = scmp.eq.s32.totalorder %s19, 1
    %p281 = por %p279, %p280
    %p282 = scmp.ne.s32.totalorder %s274, %s277
    %p283 = scmp.eq.s32.totalorder %s19, 0
    %p284 = por %p282, %p283
    %p285 = scmp.ne.s32.totalorder %s274, %s277
    %p286 = scmp.eq.s32.totalorder %s24, 1
    %p287 = por %p285, %p286
    %p288 = scmp.ne.s32.totalorder %s277, %s278
    %p289 = scmp.eq.s32.totalorder %s24, 0
    %p290 = por %p288, %p289
    %p291 = scmp.ne.s32.totalorder %s277, %s278
    %p292 = scmp.eq.s32.totalorder %s25, 1
    %p293 = por %p291, %p292
    %p295 = scmp.ne.s32.totalorder %s278, %s294
    %p296 = scmp.eq.s32.totalorder %s25, 0
    %p297 = por %p295, %p296
    %s298 = ssub.s32 %s26, %s38
    %p299 = scmp.eq.s32.totalorder %s298, 0
    %s301 = sadd.s32 %s300, 1
    %s302 = scalar_select %p299, %s300, %s301
    %p305 = pneg %p299
    %p306 = scmp.eq.s32.totalorder %s19, 1
    %p307 = por %p305, %p306
    %p308 = scmp.ne.s32.totalorder %s300, %s303
    %p309 = scmp.eq.s32.totalorder %s19, 0
    %p310 = por %p308, %p309
    %p311 = scmp.ne.s32.totalorder %s300, %s303
    %p312 = scmp.eq.s32.totalorder %s24, 1
    %p313 = por %p311, %p312
    %p314 = scmp.ne.s32.totalorder %s303, %s304
    %p315 = scmp.eq.s32.totalorder %s24, 0
    %p316 = por %p314, %p315
    %p317 = scmp.ne.s32.totalorder %s303, %s304
    %p318 = scmp.eq.s32.totalorder %s25, 1
    %p319 = por %p317, %p318
    %p321 = scmp.ne.s32.totalorder %s304, %s320
    %p322 = scmp.eq.s32.totalorder %s25, 0
    %p323 = por %p321, %p322
    %p324 = scmp.le.s32.totalorder 1, %s19
    %p325 = scmp.lt.s32.totalorder %s19, 3
    %p326 = pnand %p324, %p325
    %p327 = pneg %p326
    // Predicated region
    $region9: #{stcn_block.4} parent=5 // pred_check
      _
    $region10: #{stcn_block.4} parent=5 // pred_check_branch
      %329 = sbr.rel (%p326) target = $region12
    $region11: #{stcn_block.4} parent=5 // pred_region
      %s330 = ssub.s32 %s19, 1
      // Predicated region
      $region13: #{stcn_block.4} parent=11 // pred_check
        %p331 = pneg %p152
      $region14: #{stcn_block.4} parent=11 // pred_check_branch
        %333 = sbr.rel (%p331) target = $region16
      $region15: #{stcn_block.4} parent=11 // pred_region
        _
      $region16: #{stcn_block.4} parent=11 // pred_fallthru
        _
      // Predicated region
      $region17: #{stcn_block.4} parent=11 // pred_check
        %p334 = pneg %p173
      $region18: #{stcn_block.4} parent=11 // pred_check_branch
        %336 = sbr.rel (%p334) target = $region20
      $region19: #{stcn_block.4} parent=11 // pred_region
        _
      $region20: #{stcn_block.4} parent=11 // pred_fallthru
        _
      // Predicated region
      $region21: #{stcn_block.4} parent=11 // pred_check
        %p337 = pneg %p194
      $region22: #{stcn_block.4} parent=11 // pred_check_branch
        %339 = sbr.rel (%p337) target = $region24
      $region23: #{stcn_block.4} parent=11 // pred_region
        _
      $region24: #{stcn_block.4} parent=11 // pred_fallthru
        _
      // Predicated region
      $region25: #{stcn_block.4} parent=11 // pred_check
        %p340 = pneg %p215
      $region26: #{stcn_block.4} parent=11 // pred_check_branch
        %342 = sbr.rel (%p340) target = $region28
      $region27: #{stcn_block.4} parent=11 // pred_region
        _
      $region28: #{stcn_block.4} parent=11 // pred_fallthru
        _
      // Predicated region
      $region29: #{stcn_block.4} parent=11 // pred_check
        %p343 = pneg %p236
      $region30: #{stcn_block.4} parent=11 // pred_check_branch
        %345 = sbr.rel (%p343) target = $region32
      $region31: #{stcn_block.4} parent=11 // pred_region
        _
      $region32: #{stcn_block.4} parent=11 // pred_fallthru
        _
    $region12: #{stcn_block.4} parent=5 // pred_fallthru
      _
    %p346 = scmp.lt.s32.totalorder %s19, 2
    // Predicated region
    $region33: #{stcn_block.4} parent=5 // pred_check
      %p347 = pneg %p346
    $region34: #{stcn_block.4} parent=5 // pred_check_branch
      %349 = sbr.rel (%p347) target = $region36
    $region35: #{stcn_block.4} parent=5 // pred_region
      // Predicated region
      $region37: #{stcn_block.4} parent=35 // pred_check
        %p350 = pneg %p53
      $region38: #{stcn_block.4} parent=35 // pred_check_branch
        %352 = sbr.rel (%p350) target = $region40
      $region39: #{stcn_block.4} parent=35 // pred_region
        %s353 = sadd.s32 %s26, %s27
        %s354 = smul.u32 64, %s353
        %p355 = scmp.lt.s32.totalorder %s354, 127
        %s356 = scalar_select %p355, %s354, 127
        %s357 = smul.addr %s356, 8
        %s358 = scalar_lea.vmem %s0, %s357
        %s359 = sadd.s32 %s26, %s27
        %s360 = smul.u32 64, %s359
      $region40: #{stcn_block.4} parent=35 // pred_fallthru
        _
      // Predicated region
      $region41: #{stcn_block.4} parent=35 // pred_check
        %p361 = pneg %p89
      $region42: #{stcn_block.4} parent=35 // pred_check_branch
        %363 = sbr.rel (%p361) target = $region44
      $region43: #{stcn_block.4} parent=35 // pred_region
        %s364 = sadd.s32 %s26, %s27
        %s365 = smul.u32 %s364, 64
        %s366 = ssub.s32 %s365, 1
        %p367 = scmp.gt.s32.totalorder %s366, 0
        %s368 = scalar_select %p367, %s366, 0
        %p369 = scmp.lt.s32.totalorder %s368, 127
        %s370 = scalar_select %p369, %s368, 127
        %s371 = smul.addr %s370, 8
        %s372 = scalar_lea.vmem %s1, %s371
        %s373 = sadd.s32 %s26, %s27
        %s374 = smul.u32 %s373, 64
        %s375 = ssub.s32 %s374, 1
        %p376 = scmp.gt.s32.totalorder %s375, 0
        %s377 = scalar_select %p376, %s375, 0
      $region44: #{stcn_block.4} parent=35 // pred_fallthru
        _
      // Predicated region
      $region45: #{stcn_block.4} parent=35 // pred_check
        %p378 = pneg %p125
      $region46: #{stcn_block.4} parent=35 // pred_check_branch
        %380 = sbr.rel (%p378) target = $region48
      $region47: #{stcn_block.4} parent=35 // pred_region
        %s381 = sadd.s32 %s26, %s27
        %s382 = sadd.s32 %s381, 1
        %s383 = smul.u32 %s382, 64
        %p384 = scmp.lt.s32.totalorder %s383, 127
        %s385 = scalar_select %p384, %s383, 127
        %p386 = scmp.lt.s32.totalorder %s385, 127
        %s387 = scalar_select %p386, %s385, 127
        %s388 = smul.addr %s387, 8
        %s389 = scalar_lea.vmem %s2, %s388
        %s390 = sadd.s32 %s26, %s27
        %s391 = sadd.s32 %s390, 1
        %s392 = smul.u32 %s391, 64
        %p393 = scmp.lt.s32.totalorder %s392, 127
        %s394 = scalar_select %p393, %s392, 127
      $region48: #{stcn_block.4} parent=35 // pred_fallthru
        _
    $region36: #{stcn_block.4} parent=5 // pred_fallthru
      _
    %p395 = scmp.le.s32.totalorder 1, %s19
    %p396 = scmp.lt.s32.totalorder %s19, 3
    %p397 = pnand %p395, %p396
    %p398 = pneg %p397
    // Predicated region
    $region49: #{stcn_block.4} parent=5 // pred_check
      _
    $region50: #{stcn_block.4} parent=5 // pred_check_branch
      %400 = sbr.rel (%p397) target = $region52
    $region51: #{stcn_block.4} parent=5 // pred_region
      %s401 = ssub.s32 %s19, 1
      %s402 = sadd.s32 %s28, %s29
      %s403 = smul.u32 64, %s402
      %p404 = scmp.lt.s32.totalorder %s403, 127
      %s405 = scalar_select %p404, %s403, 127
      %s406 = smul.addr %s405, 8
      %s407 = scalar_lea.vmem %s0, %s406
      %p408 = pneg %p59
      %p409 = pneg %p56
      %s410 = sadd.s32 %s28, %s29
      %s411 = smul.u32 %s410, 64
      %s412 = ssub.s32 %s411, 1
      %p413 = scmp.gt.s32.totalorder %s412, 0
      %s414 = scalar_select %p413, %s412, 0
      %p415 = scmp.lt.s32.totalorder %s414, 127
      %s416 = scalar_select %p415, %s414, 127
      %s417 = smul.addr %s416, 8
      %s418 = scalar_lea.vmem %s1, %s417
      %p419 = pneg %p95
      %p420 = pneg %p92
      %s421 = sadd.s32 %s28, %s29
      %s422 = sadd.s32 %s421, 1
      %s423 = smul.u32 %s422, 64
      %p424 = scmp.lt.s32.totalorder %s423, 127
      %s425 = scalar_select %p424, %s423, 127
      %p426 = scmp.lt.s32.totalorder %s425, 127
      %s427 = scalar_select %p426, %s425, 127
      %s428 = smul.addr %s427, 8
      %s429 = scalar_lea.vmem %s2, %s428
      %p430 = pneg %p131
      %p431 = pneg %p128
      %p432 = pneg %p152
      %p433 = pneg %p149
      %p434 = pneg %p173
      %p435 = pneg %p170
      %p436 = pneg %p194
      %p437 = pneg %p191
      %p438 = pneg %p215
      %p439 = pneg %p212
      %p440 = pneg %p236
      %p441 = pneg %p233
      %p442 = pneg %p264
      %p443 = pneg %p261
      %s444 = sadd.s32 %s28, %s29
      %s445 = smul.u32 64, %s444
      %p446 = scmp.lt.s32.totalorder %s445, 127
      %s447 = scalar_select %p446, %s445, 127
      %s448 = smul.addr %s447, 8
      %s449 = scalar_lea.vmem %s8, %s448
      %p450 = pneg %p290
      %p451 = pneg %p287
      %p452 = scmp.lt.s32.totalorder %s28, 1
      %s453 = scalar_select %p452, %s28, 1
      %s454 = scalar_lea.vmem %s9, %s453
      %p455 = pneg %p316
      %p456 = pneg %p313
      %p457 = scmp.lt.s32.totalorder %s28, 1
      %s458 = scalar_select %p457, %s28, 1
      %s459 = scalar_lea.vmem %s10, %s458
      %s460 = sadd.s32 %s28, %s29
      %s461 = smul.u32 64, %s460
      %p462 = scmp.lt.s32.totalorder %s461, 127
      %s463 = scalar_select %p462, %s461, 127
      %s464 = smul.addr %s463, 8
      %s465 = scalar_lea.vmem %s0, %s464
      %s466 = sadd.s32 %s28, %s29
      %s467 = smul.u32 64, %s466
      %s468 = sadd.s32 %s28, %s29
      %s469 = smul.u32 %s468, 64
      %s470 = ssub.s32 %s469, 1
      %p471 = scmp.gt.s32.totalorder %s470, 0
      %s472 = scalar_select %p471, %s470, 0
      %p473 = scmp.lt.s32.totalorder %s472, 127
      %s474 = scalar_select %p473, %s472, 127
      %s475 = smul.addr %s474, 8
      %s476 = scalar_lea.vmem %s1, %s475
      %s477 = sadd.s32 %s28, %s29
      %s478 = smul.u32 %s477, 64
      %s479 = ssub.s32 %s478, 1
      %p480 = scmp.gt.s32.totalorder %s479, 0
      %s481 = scalar_select %p480, %s479, 0
      %s482 = sadd.s32 %s28, %s29
      %s483 = sadd.s32 %s482, 1
      %s484 = smul.u32 %s483, 64
      %p485 = scmp.lt.s32.totalorder %s484, 127
      %s486 = scalar_select %p485, %s484, 127
      %p487 = scmp.lt.s32.totalorder %s486, 127
      %s488 = scalar_select %p487, %s486, 127
      %s489 = smul.addr %s488, 8
      %s490 = scalar_lea.vmem %s2, %s489
      %s491 = sadd.s32 %s28, %s29
      %s492 = sadd.s32 %s491, 1
      %s493 = smul.u32 %s492, 64
      %p494 = scmp.lt.s32.totalorder %s493, 127
      %s495 = scalar_select %p494, %s493, 127
      %s496 = sadd.s32 %s28, %s29
      %s497 = smul.u32 64, %s496
      %p498 = scmp.lt.s32.totalorder %s497, 127
      %s499 = scalar_select %p498, %s497, 127
      %s500 = smul.addr %s499, 8
      %s501 = scalar_lea.vmem %s8, %s500
      %s502 = sadd.s32 %s28, %s29
      %s503 = smul.u32 64, %s502
      %p504 = scmp.lt.s32.totalorder %s28, 1
      %s505 = scalar_select %p504, %s28, 1
      %s506 = scalar_lea.vmem %s9, %s505
      %p507 = scmp.lt.s32.totalorder %s28, 1
      %s508 = scalar_select %p507, %s28, 1
      %s509 = scalar_lea.vmem %s10, %s508
      %s510 = sadd.s32 %s28, %s29
      %p511 = scmp.eq.s32.totalorder %s29, 0
      // Predicated region
      $region53: #{stcn_block.4} parent=51 // pred_check
        %p512 = pneg %p511
      $region54: #{stcn_block.4} parent=51 // pred_check_branch
        %514 = sbr.rel (%p512) target = $region56
      $region55: #{stcn_block.4} parent=51 // pred_region
        %515 = vst [vmem:[%s506] sm:$0x1] 0.0
        %516 = vst [vmem:[%s509] sm:$0x1] 0.0
      $region56: #{stcn_block.4} parent=51 // pred_fallthru
        _
      %v517 = vld [vmem:[%s3] sm:$0x1]
      %v518 = vld [vmem:[%s4] sm:$0x1]
      %v519 = vld [vmem:[%s465] sm:$0xff]
      %v520 = vld [vmem:[%s465 + $0x8] sm:$0xff]
      %v521 = vld [vmem:[%s465 + $0x10] sm:$0xff]
      %v522 = vld [vmem:[%s465 + $0x18] sm:$0xff]
      %v523 = vld [vmem:[%s465 + $0x20] sm:$0xff]
      %v524 = vld [vmem:[%s465 + $0x28] sm:$0xff]
      %v525 = vld [vmem:[%s465 + $0x30] sm:$0xff]
      %v526 = vld [vmem:[%s465 + $0x38] sm:$0xff]
      %v527 = vld [vmem:[%s465 + $0x40] sm:$0xff]
      %v528 = vld [vmem:[%s465 + $0x48] sm:$0xff]
      %v529 = vld [vmem:[%s465 + $0x50] sm:$0xff]
      %v530 = vld [vmem:[%s465 + $0x58] sm:$0xff]
      %v531 = vld [vmem:[%s465 + $0x60] sm:$0xff]
      %v532 = vld [vmem:[%s465 + $0x68] sm:$0xff]
      %v533 = vld [vmem:[%s465 + $0x70] sm:$0xff]
      %v534 = vld [vmem:[%s465 + $0x78] sm:$0xff]
      %v535 = vld [vmem:[%s465 + $0x80] sm:$0xff]
      %v536 = vld [vmem:[%s465 + $0x88] sm:$0xff]
      %v537 = vld [vmem:[%s465 + $0x90] sm:$0xff]
      %v538 = vld [vmem:[%s465 + $0x98] sm:$0xff]
      %v539 = vld [vmem:[%s465 + $0xa0] sm:$0xff]
      %v540 = vld [vmem:[%s465 + $0xa8] sm:$0xff]
      %v541 = vld [vmem:[%s465 + $0xb0] sm:$0xff]
      %v542 = vld [vmem:[%s465 + $0xb8] sm:$0xff]
      %v543 = vld [vmem:[%s465 + $0xc0] sm:$0xff]
      %v544 = vld [vmem:[%s465 + $0xc8] sm:$0xff]
      %v545 = vld [vmem:[%s465 + $0xd0] sm:$0xff]
      %v546 = vld [vmem:[%s465 + $0xd8] sm:$0xff]
      %v547 = vld [vmem:[%s465 + $0xe0] sm:$0xff]
      %v548 = vld [vmem:[%s465 + $0xe8] sm:$0xff]
      %v549 = vld [vmem:[%s465 + $0xf0] sm:$0xff]
      %v550 = vld [vmem:[%s465 + $0xf8] sm:$0xff]
      %v551 = vld [vmem:[%s465 + $0x100] sm:$0xff]
      %v552 = vld [vmem:[%s465 + $0x108] sm:$0xff]
      %v553 = vld [vmem:[%s465 + $0x110] sm:$0xff]
      %v554 = vld [vmem:[%s465 + $0x118] sm:$0xff]
      %v555 = vld [vmem:[%s465 + $0x120] sm:$0xff]
      %v556 = vld [vmem:[%s465 + $0x128] sm:$0xff]
      %v557 = vld [vmem:[%s465 + $0x130] sm:$0xff]
      %v558 = vld [vmem:[%s465 + $0x138] sm:$0xff]
      %v559 = vld [vmem:[%s465 + $0x140] sm:$0xff]
      %v560 = vld [vmem:[%s465 + $0x148] sm:$0xff]
      %v561 = vld [vmem:[%s465 + $0x150] sm:$0xff]
      %v562 = vld [vmem:[%s465 + $0x158] sm:$0xff]
      %v563 = vld [vmem:[%s465 + $0x160] sm:$0xff]
      %v564 = vld [vmem:[%s465 + $0x168] sm:$0xff]
      %v565 = vld [vmem:[%s465 + $0x170] sm:$0xff]
      %v566 = vld [vmem:[%s465 + $0x178] sm:$0xff]
      %v567 = vld [vmem:[%s465 + $0x180] sm:$0xff]
      %v568 = vld [vmem:[%s465 + $0x188] sm:$0xff]
      %v569 = vld [vmem:[%s465 + $0x190] sm:$0xff]
      %v570 = vld [vmem:[%s465 + $0x198] sm:$0xff]
      %v571 = vld [vmem:[%s465 + $0x1a0] sm:$0xff]
      %v572 = vld [vmem:[%s465 + $0x1a8] sm:$0xff]
      %v573 = vld [vmem:[%s465 + $0x1b0] sm:$0xff]
      %v574 = vld [vmem:[%s465 + $0x1b8] sm:$0xff]
      %v575 = vld [vmem:[%s465 + $0x1c0] sm:$0xff]
      %v576 = vld [vmem:[%s465 + $0x1c8] sm:$0xff]
      %v577 = vld [vmem:[%s465 + $0x1d0] sm:$0xff]
      %v578 = vld [vmem:[%s465 + $0x1d8] sm:$0xff]
      %v579 = vld [vmem:[%s465 + $0x1e0] sm:$0xff]
      %v580 = vld [vmem:[%s465 + $0x1e8] sm:$0xff]
      %v581 = vld [vmem:[%s465 + $0x1f0] sm:$0xff]
      %v582 = vld [vmem:[%s465 + $0x1f8] sm:$0xff]
      %v584 = vlaneseq
      %v585 = vshrl.u32 %v584, 7
      %v586 = vsub.s32 0, %v585
      %v587 = vrot.slane %v517, %v586
      %v589 = vmul.f32 %v519, %v587
      %v590 = vmul.f32 %v520, %v587
      %v591 = vmul.f32 %v521, %v587
      %v592 = vmul.f32 %v522, %v587
      %v593 = vmul.f32 %v523, %v587
      %v594 = vmul.f32 %v524, %v587
      %v595 = vmul.f32 %v525, %v587
      %v596 = vmul.f32 %v526, %v587
      %v597 = vmul.f32 %v527, %v587
      %v598 = vmul.f32 %v528, %v587
      %v599 = vmul.f32 %v529, %v587
      %v600 = vmul.f32 %v530, %v587
      %v601 = vmul.f32 %v531, %v587
      %v602 = vmul.f32 %v532, %v587
      %v603 = vmul.f32 %v533, %v587
      %v604 = vmul.f32 %v534, %v587
      %v605 = vmul.f32 %v535, %v587
      %v606 = vmul.f32 %v536, %v587
      %v607 = vmul.f32 %v537, %v587
      %v608 = vmul.f32 %v538, %v587
      %v609 = vmul.f32 %v539, %v587
      %v610 = vmul.f32 %v540, %v587
      %v611 = vmul.f32 %v541, %v587
      %v612 = vmul.f32 %v542, %v587
      %v613 = vmul.f32 %v543, %v587
      %v614 = vmul.f32 %v544, %v587
      %v615 = vmul.f32 %v545, %v587
      %v616 = vmul.f32 %v546, %v587
      %v617 = vmul.f32 %v547, %v587
      %v618 = vmul.f32 %v548, %v587
      %v619 = vmul.f32 %v549, %v587
      %v620 = vmul.f32 %v550, %v587
      %v621 = vmul.f32 %v551, %v587
      %v622 = vmul.f32 %v552, %v587
      %v623 = vmul.f32 %v553, %v587
      %v624 = vmul.f32 %v554, %v587
      %v625 = vmul.f32 %v555, %v587
      %v626 = vmul.f32 %v556, %v587
      %v627 = vmul.f32 %v557, %v587
      %v628 = vmul.f32 %v558, %v587
      %v629 = vmul.f32 %v559, %v587
      %v630 = vmul.f32 %v560, %v587
      %v631 = vmul.f32 %v561, %v587
      %v632 = vmul.f32 %v562, %v587
      %v633 = vmul.f32 %v563, %v587
      %v634 = vmul.f32 %v564, %v587
      %v635 = vmul.f32 %v565, %v587
      %v636 = vmul.f32 %v566, %v587
      %v637 = vmul.f32 %v567, %v587
      %v638 = vmul.f32 %v568, %v587
      %v639 = vmul.f32 %v569, %v587
      %v640 = vmul.f32 %v570, %v587
      %v641 = vmul.f32 %v571, %v587
      %v642 = vmul.f32 %v572, %v587
      %v643 = vmul.f32 %v573, %v587
      %v644 = vmul.f32 %v574, %v587
      %v645 = vmul.f32 %v575, %v587
      %v646 = vmul.f32 %v576, %v587
      %v647 = vmul.f32 %v577, %v587
      %v648 = vmul.f32 %v578, %v587
      %v649 = vmul.f32 %v579, %v587
      %v650 = vmul.f32 %v580, %v587
      %v651 = vmul.f32 %v581, %v587
      %v652 = vmul.f32 %v582, %v587
      %v654 = vlaneseq
      %v655 = vshrl.u32 %v654, 7
      %v656 = vsub.s32 0, %v655
      %v657 = vrot.slane %v518, %v656
      %v659 = vadd.f32 %v589, %v657
      %v660 = vadd.f32 %v590, %v657
      %v661 = vadd.f32 %v591, %v657
      %v662 = vadd.f32 %v592, %v657
      %v663 = vadd.f32 %v593, %v657
      %v664 = vadd.f32 %v594, %v657
      %v665 = vadd.f32 %v595, %v657
      %v666 = vadd.f32 %v596, %v657
      %v667 = vadd.f32 %v597, %v657
      %v668 = vadd.f32 %v598, %v657
      %v669 = vadd.f32 %v599, %v657
      %v670 = vadd.f32 %v600, %v657
      %v671 = vadd.f32 %v601, %v657
      %v672 = vadd.f32 %v602, %v657
      %v673 = vadd.f32 %v603, %v657
      %v674 = vadd.f32 %v604, %v657
      %v675 = vadd.f32 %v605, %v657
      %v676 = vadd.f32 %v606, %v657
      %v677 = vadd.f32 %v607, %v657
      %v678 = vadd.f32 %v608, %v657
      %v679 = vadd.f32 %v609, %v657
      %v680 = vadd.f32 %v610, %v657
      %v681 = vadd.f32 %v611, %v657
      %v682 = vadd.f32 %v612, %v657
      %v683 = vadd.f32 %v613, %v657
      %v684 = vadd.f32 %v614, %v657
      %v685 = vadd.f32 %v615, %v657
      %v686 = vadd.f32 %v616, %v657
      %v687 = vadd.f32 %v617, %v657
      %v688 = vadd.f32 %v618, %v657
      %v689 = vadd.f32 %v619, %v657
      %v690 = vadd.f32 %v620, %v657
      %v691 = vadd.f32 %v621, %v657
      %v692 = vadd.f32 %v622, %v657
      %v693 = vadd.f32 %v623, %v657
      %v694 = vadd.f32 %v624, %v657
      %v695 = vadd.f32 %v625, %v657
      %v696 = vadd.f32 %v626, %v657
      %v697 = vadd.f32 %v627, %v657
      %v698 = vadd.f32 %v628, %v657
      %v699 = vadd.f32 %v629, %v657
      %v700 = vadd.f32 %v630, %v657
      %v701 = vadd.f32 %v631, %v657
      %v702 = vadd.f32 %v632, %v657
      %v703 = vadd.f32 %v633, %v657
      %v704 = vadd.f32 %v634, %v657
      %v705 = vadd.f32 %v635, %v657
      %v706 = vadd.f32 %v636, %v657
      %v707 = vadd.f32 %v637, %v657
      %v708 = vadd.f32 %v638, %v657
      %v709 = vadd.f32 %v639, %v657
      %v710 = vadd.f32 %v640, %v657
      %v711 = vadd.f32 %v641, %v657
      %v712 = vadd.f32 %v642, %v657
      %v713 = vadd.f32 %v643, %v657
      %v714 = vadd.f32 %v644, %v657
      %v715 = vadd.f32 %v645, %v657
      %v716 = vadd.f32 %v646, %v657
      %v717 = vadd.f32 %v647, %v657
      %v718 = vadd.f32 %v648, %v657
      %v719 = vadd.f32 %v649, %v657
      %v720 = vadd.f32 %v650, %v657
      %v721 = vadd.f32 %v651, %v657
      %v722 = vadd.f32 %v652, %v657
      %v723 = vld [vmem:[%s476] sm:$0xff]
      %v724 = vmul.f32 %v723, %v587
      %v725 = vadd.f32 %v724, %v657
      %p726 = scmp.gt.s32.totalorder %s510, 0
      %s727 = scalar_select %p726, 1, 0
      %v728 = vstv %s727
      %vm729 = vcmp.eq.s32.totalorder %v728, 1
      %v730 = vsel %vm729, %v725, 0.0
      %v731 = vld [vmem:[%s490] sm:$0xff]
      %v732 = vmul.f32 %v731, %v587
      %v733 = vadd.f32 %v732, %v657
      %s734 = sadd.s32 %s510, 1
      %s735 = smul.u32 %s734, 512
      %v736 = vlaneseq
      %v737 = vshrl.u32 %v736, 7
      %v738 = vstv %s735
      %v739 = vadd.s32 %v738, %v737
      %vm740 = vcmp.lt.s32.totalorder %v739, 1024
      %v741 = vsel %vm740, %v733, 0.0
      %v742 = vld [vmem:[%s5] sm:$0x1]
      %v743 = vlaneseq
      %v744 = vshrl.u32 %v743, 7
      %v745 = vsub.s32 0, %v744
      %v746 = vrot.slane %v742, %v745
      %v747 = vmul.f32 %v730, %v746
      %v748 = vmul.f32 %v659, %v746
      %v749 = vmul.f32 %v660, %v746
      %v750 = vmul.f32 %v661, %v746
      %v751 = vmul.f32 %v662, %v746
      %v752 = vmul.f32 %v663, %v746
      %v753 = vmul.f32 %v664, %v746
      %v754 = vmul.f32 %v665, %v746
      %v755 = vmul.f32 %v666, %v746
      %v756 = vmul.f32 %v667, %v746
      %v757 = vmul.f32 %v668, %v746
      %v758 = vmul.f32 %v669, %v746
      %v759 = vmul.f32 %v670, %v746
      %v760 = vmul.f32 %v671, %v746
      %v761 = vmul.f32 %v672, %v746
      %v762 = vmul.f32 %v673, %v746
      %v763 = vmul.f32 %v674, %v746
      %v764 = vmul.f32 %v675, %v746
      %v765 = vmul.f32 %v676, %v746
      %v766 = vmul.f32 %v677, %v746
      %v767 = vmul.f32 %v678, %v746
      %v768 = vmul.f32 %v679, %v746
      %v769 = vmul.f32 %v680, %v746
      %v770 = vmul.f32 %v681, %v746
      %v771 = vmul.f32 %v682, %v746
      %v772 = vmul.f32 %v683, %v746
      %v773 = vmul.f32 %v684, %v746
      %v774 = vmul.f32 %v685, %v746
      %v775 = vmul.f32 %v686, %v746
      %v776 = vmul.f32 %v687, %v746
      %v777 = vmul.f32 %v688, %v746
      %v778 = vmul.f32 %v689, %v746
      %v779 = vmul.f32 %v690, %v746
      %v780 = vmul.f32 %v691, %v746
      %v781 = vmul.f32 %v692, %v746
      %v782 = vmul.f32 %v693, %v746
      %v783 = vmul.f32 %v694, %v746
      %v784 = vmul.f32 %v695, %v746
      %v785 = vmul.f32 %v696, %v746
      %v786 = vmul.f32 %v697, %v746
      %v787 = vmul.f32 %v698, %v746
      %v788 = vmul.f32 %v699, %v746
      %v789 = vmul.f32 %v700, %v746
      %v790 = vmul.f32 %v701, %v746
      %v791 = vmul.f32 %v702, %v746
      %v792 = vmul.f32 %v703, %v746
      %v793 = vmul.f32 %v704, %v746
      %v794 = vmul.f32 %v705, %v746
      %v795 = vmul.f32 %v706, %v746
      %v796 = vmul.f32 %v707, %v746
      %v797 = vmul.f32 %v708, %v746
      %v798 = vmul.f32 %v709, %v746
      %v799 = vmul.f32 %v710, %v746
      %v800 = vmul.f32 %v711, %v746
      %v801 = vmul.f32 %v712, %v746
      %v802 = vmul.f32 %v713, %v746
      %v803 = vmul.f32 %v714, %v746
      %v804 = vmul.f32 %v715, %v746
      %v805 = vmul.f32 %v716, %v746
      %v806 = vmul.f32 %v717, %v746
      %v807 = vmul.f32 %v718, %v746
      %v808 = vmul.f32 %v719, %v746
      %v809 = vmul.f32 %v720, %v746
      %v810 = vmul.f32 %v721, %v746
      %v811 = vmul.f32 %v722, %v746
      %v812 = vld [vmem:[%s5 + $0x1] sm:$0x1]
      %v813 = vlaneseq
      %v814 = vshrl.u32 %v813, 7
      %v815 = vsub.s32 0, %v814
      %v816 = vrot.slane %v812, %v815
      %v817 = vmul.f32 %v659, %v816
      %v818 = vmul.f32 %v660, %v816
      %v819 = vmul.f32 %v661, %v816
      %v820 = vmul.f32 %v662, %v816
      %v821 = vmul.f32 %v663, %v816
      %v822 = vmul.f32 %v664, %v816
      %v823 = vmul.f32 %v665, %v816
      %v824 = vmul.f32 %v666, %v816
      %v825 = vmul.f32 %v667, %v816
      %v826 = vmul.f32 %v668, %v816
      %v827 = vmul.f32 %v669, %v816
      %v828 = vmul.f32 %v670, %v816
      %v829 = vmul.f32 %v671, %v816
      %v830 = vmul.f32 %v672, %v816
      %v831 = vmul.f32 %v673, %v816
      %v832 = vmul.f32 %v674, %v816
      %v833 = vmul.f32 %v675, %v816
      %v834 = vmul.f32 %v676, %v816
      %v835 = vmul.f32 %v677, %v816
      %v836 = vmul.f32 %v678, %v816
      %v837 = vmul.f32 %v679, %v816
      %v838 = vmul.f32 %v680, %v816
      %v839 = vmul.f32 %v681, %v816
      %v840 = vmul.f32 %v682, %v816
      %v841 = vmul.f32 %v683, %v816
      %v842 = vmul.f32 %v684, %v816
      %v843 = vmul.f32 %v685, %v816
      %v844 = vmul.f32 %v686, %v816
      %v845 = vmul.f32 %v687, %v816
      %v846 = vmul.f32 %v688, %v816
      %v847 = vmul.f32 %v689, %v816
      %v848 = vmul.f32 %v690, %v816
      %v849 = vmul.f32 %v691, %v816
      %v850 = vmul.f32 %v692, %v816
      %v851 = vmul.f32 %v693, %v816
      %v852 = vmul.f32 %v694, %v816
      %v853 = vmul.f32 %v695, %v816
      %v854 = vmul.f32 %v696, %v816
      %v855 = vmul.f32 %v697, %v816
      %v856 = vmul.f32 %v698, %v816
      %v857 = vmul.f32 %v699, %v816
      %v858 = vmul.f32 %v700, %v816
      %v859 = vmul.f32 %v701, %v816
      %v860 = vmul.f32 %v702, %v816
      %v861 = vmul.f32 %v703, %v816
      %v862 = vmul.f32 %v704, %v816
      %v863 = vmul.f32 %v705, %v816
      %v864 = vmul.f32 %v706, %v816
      %v865 = vmul.f32 %v707, %v816
      %v866 = vmul.f32 %v708, %v816
      %v867 = vmul.f32 %v709, %v816
      %v868 = vmul.f32 %v710, %v816
      %v869 = vmul.f32 %v711, %v816
      %v870 = vmul.f32 %v712, %v816
      %v871 = vmul.f32 %v713, %v816
      %v872 = vmul.f32 %v714, %v816
      %v873 = vmul.f32 %v715, %v816
      %v874 = vmul.f32 %v716, %v816
      %v875 = vmul.f32 %v717, %v816
      %v876 = vmul.f32 %v718, %v816
      %v877 = vmul.f32 %v719, %v816
      %v878 = vmul.f32 %v720, %v816
      %v879 = vmul.f32 %v721, %v816
      %v880 = vmul.f32 %v722, %v816
      %vm945 = vcmask 1046528
      %v946 = vrot.slane %v817, 1
      %v947 = vrot.slane %v818, 1
      %v948 = vsel %vm945, %v946, %v947
      %v949 = vrot.slane %v819, 1
      %v950 = vsel %vm945, %v947, %v949
      %v951 = vrot.slane %v820, 1
      %v952 = vsel %vm945, %v949, %v951
      %v953 = vrot.slane %v821, 1
      %v954 = vsel %vm945, %v951, %v953
      %v955 = vrot.slane %v822, 1
      %v956 = vsel %vm945, %v953, %v955
      %v957 = vrot.slane %v823, 1
      %v958 = vsel %vm945, %v955, %v957
      %v959 = vrot.slane %v824, 1
      %v960 = vsel %vm945, %v957, %v959
      %v961 = vrot.slane %v825, 1
      %v962 = vsel %vm945, %v959, %v961
      %v963 = vrot.slane %v826, 1
      %v964 = vsel %vm945, %v961, %v963
      %v965 = vrot.slane %v827, 1
      %v966 = vsel %vm945, %v963, %v965
      %v967 = vrot.slane %v828, 1
      %v968 = vsel %vm945, %v965, %v967
      %v969 = vrot.slane %v829, 1
      %v970 = vsel %vm945, %v967, %v969
      %v971 = vrot.slane %v830, 1
      %v972 = vsel %vm945, %v969, %v971
      %v973 = vrot.slane %v831, 1
      %v974 = vsel %vm945, %v971, %v973
      %v975 = vrot.slane %v832, 1
      %v976 = vsel %vm945, %v973, %v975
      %v977 = vrot.slane %v833, 1
      %v978 = vsel %vm945, %v975, %v977
      %v979 = vrot.slane %v834, 1
      %v980 = vsel %vm945, %v977, %v979
      %v981 = vrot.slane %v835, 1
      %v982 = vsel %vm945, %v979, %v981
      %v983 = vrot.slane %v836, 1
      %v984 = vsel %vm945, %v981, %v983
      %v985 = vrot.slane %v837, 1
      %v986 = vsel %vm945, %v983, %v985
      %v987 = vrot.slane %v838, 1
      %v988 = vsel %vm945, %v985, %v987
      %v989 = vrot.slane %v839, 1
      %v990 = vsel %vm945, %v987, %v989
      %v991 = vrot.slane %v840, 1
      %v992 = vsel %vm945, %v989, %v991
      %v993 = vrot.slane %v841, 1
      %v994 = vsel %vm945, %v991, %v993
      %v995 = vrot.slane %v842, 1
      %v996 = vsel %vm945, %v993, %v995
      %v997 = vrot.slane %v843, 1
      %v998 = vsel %vm945, %v995, %v997
      %v999 = vrot.slane %v844, 1
      %v1000 = vsel %vm945, %v997, %v999
      %v1001 = vrot.slane %v845, 1
      %v1002 = vsel %vm945, %v999, %v1001
      %v1003 = vrot.slane %v846, 1
      %v1004 = vsel %vm945, %v1001, %v1003
      %v1005 = vrot.slane %v847, 1
      %v1006 = vsel %vm945, %v1003, %v1005
      %v1007 = vrot.slane %v848, 1
      %v1008 = vsel %vm945, %v1005, %v1007
      %v1009 = vrot.slane %v849, 1
      %v1010 = vsel %vm945, %v1007, %v1009
      %v1011 = vrot.slane %v850, 1
      %v1012 = vsel %vm945, %v1009, %v1011
      %v1013 = vrot.slane %v851, 1
      %v1014 = vsel %vm945, %v1011, %v1013
      %v1015 = vrot.slane %v852, 1
      %v1016 = vsel %vm945, %v1013, %v1015
      %v1017 = vrot.slane %v853, 1
      %v1018 = vsel %vm945, %v1015, %v1017
      %v1019 = vrot.slane %v854, 1
      %v1020 = vsel %vm945, %v1017, %v1019
      %v1021 = vrot.slane %v855, 1
      %v1022 = vsel %vm945, %v1019, %v1021
      %v1023 = vrot.slane %v856, 1
      %v1024 = vsel %vm945, %v1021, %v1023
      %v1025 = vrot.slane %v857, 1
      %v1026 = vsel %vm945, %v1023, %v1025
      %v1027 = vrot.slane %v858, 1
      %v1028 = vsel %vm945, %v1025, %v1027
      %v1029 = vrot.slane %v859, 1
      %v1030 = vsel %vm945, %v1027, %v1029
      %v1031 = vrot.slane %v860, 1
      %v1032 = vsel %vm945, %v1029, %v1031
      %v1033 = vrot.slane %v861, 1
      %v1034 = vsel %vm945, %v1031, %v1033
      %v1035 = vrot.slane %v862, 1
      %v1036 = vsel %vm945, %v1033, %v1035
      %v1037 = vrot.slane %v863, 1
      %v1038 = vsel %vm945, %v1035, %v1037
      %v1039 = vrot.slane %v864, 1
      %v1040 = vsel %vm945, %v1037, %v1039
      %v1041 = vrot.slane %v865, 1
      %v1042 = vsel %vm945, %v1039, %v1041
      %v1043 = vrot.slane %v866, 1
      %v1044 = vsel %vm945, %v1041, %v1043
      %v1045 = vrot.slane %v867, 1
      %v1046 = vsel %vm945, %v1043, %v1045
      %v1047 = vrot.slane %v868, 1
      %v1048 = vsel %vm945, %v1045, %v1047
      %v1049 = vrot.slane %v869, 1
      %v1050 = vsel %vm945, %v1047, %v1049
      %v1051 = vrot.slane %v870, 1
      %v1052 = vsel %vm945, %v1049, %v1051
      %v1053 = vrot.slane %v871, 1
      %v1054 = vsel %vm945, %v1051, %v1053
      %v1055 = vrot.slane %v872, 1
      %v1056 = vsel %vm945, %v1053, %v1055
      %v1057 = vrot.slane %v873, 1
      %v1058 = vsel %vm945, %v1055, %v1057
      %v1059 = vrot.slane %v874, 1
      %v1060 = vsel %vm945, %v1057, %v1059
      %v1061 = vrot.slane %v875, 1
      %v1062 = vsel %vm945, %v1059, %v1061
      %v1063 = vrot.slane %v876, 1
      %v1064 = vsel %vm945, %v1061, %v1063
      %v1065 = vrot.slane %v877, 1
      %v1066 = vsel %vm945, %v1063, %v1065
      %v1067 = vrot.slane %v878, 1
      %v1068 = vsel %vm945, %v1065, %v1067
      %v1069 = vrot.slane %v879, 1
      %v1070 = vsel %vm945, %v1067, %v1069
      %v1071 = vrot.slane %v880, 1
      %v1072 = vsel %vm945, %v1069, %v1071
      %v1138 = vadd.f32 %v747, %v946
      %v1139 = vadd.f32 %v748, %v948
      %v1140 = vadd.f32 %v749, %v950
      %v1141 = vadd.f32 %v750, %v952
      %v1142 = vadd.f32 %v751, %v954
      %v1143 = vadd.f32 %v752, %v956
      %v1144 = vadd.f32 %v753, %v958
      %v1145 = vadd.f32 %v754, %v960
      %v1146 = vadd.f32 %v755, %v962
      %v1147 = vadd.f32 %v756, %v964
      %v1148 = vadd.f32 %v757, %v966
      %v1149 = vadd.f32 %v758, %v968
      %v1150 = vadd.f32 %v759, %v970
      %v1151 = vadd.f32 %v760, %v972
      %v1152 = vadd.f32 %v761, %v974
      %v1153 = vadd.f32 %v762, %v976
      %v1154 = vadd.f32 %v763, %v978
      %v1155 = vadd.f32 %v764, %v980
      %v1156 = vadd.f32 %v765, %v982
      %v1157 = vadd.f32 %v766, %v984
      %v1158 = vadd.f32 %v767, %v986
      %v1159 = vadd.f32 %v768, %v988
      %v1160 = vadd.f32 %v769, %v990
      %v1161 = vadd.f32 %v770, %v992
      %v1162 = vadd.f32 %v771, %v994
      %v1163 = vadd.f32 %v772, %v996
      %v1164 = vadd.f32 %v773, %v998
      %v1165 = vadd.f32 %v774, %v1000
      %v1166 = vadd.f32 %v775, %v1002
      %v1167 = vadd.f32 %v776, %v1004
      %v1168 = vadd.f32 %v777, %v1006
      %v1169 = vadd.f32 %v778, %v1008
      %v1170 = vadd.f32 %v779, %v1010
      %v1171 = vadd.f32 %v780, %v1012
      %v1172 = vadd.f32 %v781, %v1014
      %v1173 = vadd.f32 %v782, %v1016
      %v1174 = vadd.f32 %v783, %v1018
      %v1175 = vadd.f32 %v784, %v1020
      %v1176 = vadd.f32 %v785, %v1022
      %v1177 = vadd.f32 %v786, %v1024
      %v1178 = vadd.f32 %v787, %v1026
      %v1179 = vadd.f32 %v788, %v1028
      %v1180 = vadd.f32 %v789, %v1030
      %v1181 = vadd.f32 %v790, %v1032
      %v1182 = vadd.f32 %v791, %v1034
      %v1183 = vadd.f32 %v792, %v1036
      %v1184 = vadd.f32 %v793, %v1038
      %v1185 = vadd.f32 %v794, %v1040
      %v1186 = vadd.f32 %v795, %v1042
      %v1187 = vadd.f32 %v796, %v1044
      %v1188 = vadd.f32 %v797, %v1046
      %v1189 = vadd.f32 %v798, %v1048
      %v1190 = vadd.f32 %v799, %v1050
      %v1191 = vadd.f32 %v800, %v1052
      %v1192 = vadd.f32 %v801, %v1054
      %v1193 = vadd.f32 %v802, %v1056
      %v1194 = vadd.f32 %v803, %v1058
      %v1195 = vadd.f32 %v804, %v1060
      %v1196 = vadd.f32 %v805, %v1062
      %v1197 = vadd.f32 %v806, %v1064
      %v1198 = vadd.f32 %v807, %v1066
      %v1199 = vadd.f32 %v808, %v1068
      %v1200 = vadd.f32 %v809, %v1070
      %v1201 = vadd.f32 %v810, %v1072
      %v1202 = vadd.f32 %v811, %v1071
      %v1203 = vld [vmem:[%s5 + $0x2] sm:$0x1]
      %v1204 = vlaneseq
      %v1205 = vshrl.u32 %v1204, 7
      %v1206 = vsub.s32 0, %v1205
      %v1207 = vrot.slane %v1203, %v1206
      %v1208 = vmul.f32 %v659, %v1207
      %v1209 = vmul.f32 %v660, %v1207
      %v1210 = vmul.f32 %v661, %v1207
      %v1211 = vmul.f32 %v662, %v1207
      %v1212 = vmul.f32 %v663, %v1207
      %v1213 = vmul.f32 %v664, %v1207
      %v1214 = vmul.f32 %v665, %v1207
      %v1215 = vmul.f32 %v666, %v1207
      %v1216 = vmul.f32 %v667, %v1207
      %v1217 = vmul.f32 %v668, %v1207
      %v1218 = vmul.f32 %v669, %v1207
      %v1219 = vmul.f32 %v670, %v1207
      %v1220 = vmul.f32 %v671, %v1207
      %v1221 = vmul.f32 %v672, %v1207
      %v1222 = vmul.f32 %v673, %v1207
      %v1223 = vmul.f32 %v674, %v1207
      %v1224 = vmul.f32 %v675, %v1207
      %v1225 = vmul.f32 %v676, %v1207
      %v1226 = vmul.f32 %v677, %v1207
      %v1227 = vmul.f32 %v678, %v1207
      %v1228 = vmul.f32 %v679, %v1207
      %v1229 = vmul.f32 %v680, %v1207
      %v1230 = vmul.f32 %v681, %v1207
      %v1231 = vmul.f32 %v682, %v1207
      %v1232 = vmul.f32 %v683, %v1207
      %v1233 = vmul.f32 %v684, %v1207
      %v1234 = vmul.f32 %v685, %v1207
      %v1235 = vmul.f32 %v686, %v1207
      %v1236 = vmul.f32 %v687, %v1207
      %v1237 = vmul.f32 %v688, %v1207
      %v1238 = vmul.f32 %v689, %v1207
      %v1239 = vmul.f32 %v690, %v1207
      %v1240 = vmul.f32 %v691, %v1207
      %v1241 = vmul.f32 %v692, %v1207
      %v1242 = vmul.f32 %v693, %v1207
      %v1243 = vmul.f32 %v694, %v1207
      %v1244 = vmul.f32 %v695, %v1207
      %v1245 = vmul.f32 %v696, %v1207
      %v1246 = vmul.f32 %v697, %v1207
      %v1247 = vmul.f32 %v698, %v1207
      %v1248 = vmul.f32 %v699, %v1207
      %v1249 = vmul.f32 %v700, %v1207
      %v1250 = vmul.f32 %v701, %v1207
      %v1251 = vmul.f32 %v702, %v1207
      %v1252 = vmul.f32 %v703, %v1207
      %v1253 = vmul.f32 %v704, %v1207
      %v1254 = vmul.f32 %v705, %v1207
      %v1255 = vmul.f32 %v706, %v1207
      %v1256 = vmul.f32 %v707, %v1207
      %v1257 = vmul.f32 %v708, %v1207
      %v1258 = vmul.f32 %v709, %v1207
      %v1259 = vmul.f32 %v710, %v1207
      %v1260 = vmul.f32 %v711, %v1207
      %v1261 = vmul.f32 %v712, %v1207
      %v1262 = vmul.f32 %v713, %v1207
      %v1263 = vmul.f32 %v714, %v1207
      %v1264 = vmul.f32 %v715, %v1207
      %v1265 = vmul.f32 %v716, %v1207
      %v1266 = vmul.f32 %v717, %v1207
      %v1267 = vmul.f32 %v718, %v1207
      %v1268 = vmul.f32 %v719, %v1207
      %v1269 = vmul.f32 %v720, %v1207
      %v1270 = vmul.f32 %v721, %v1207
      %v1271 = vmul.f32 %v722, %v1207
      %v1272 = vmul.f32 %v741, %v1207
      %vm1338 = vcmask 1045504
      %v1339 = vrot.slane %v1208, 2
      %v1340 = vrot.slane %v1209, 2
      %v1341 = vsel %vm1338, %v1339, %v1340
      %v1342 = vrot.slane %v1210, 2
      %v1343 = vsel %vm1338, %v1340, %v1342
      %v1344 = vrot.slane %v1211, 2
      %v1345 = vsel %vm1338, %v1342, %v1344
      %v1346 = vrot.slane %v1212, 2
      %v1347 = vsel %vm1338, %v1344, %v1346
      %v1348 = vrot.slane %v1213, 2
      %v1349 = vsel %vm1338, %v1346, %v1348
      %v1350 = vrot.slane %v1214, 2
      %v1351 = vsel %vm1338, %v1348, %v1350
      %v1352 = vrot.slane %v1215, 2
      %v1353 = vsel %vm1338, %v1350, %v1352
      %v1354 = vrot.slane %v1216, 2
      %v1355 = vsel %vm1338, %v1352, %v1354
      %v1356 = vrot.slane %v1217, 2
      %v1357 = vsel %vm1338, %v1354, %v1356
      %v1358 = vrot.slane %v1218, 2
      %v1359 = vsel %vm1338, %v1356, %v1358
      %v1360 = vrot.slane %v1219, 2
      %v1361 = vsel %vm1338, %v1358, %v1360
      %v1362 = vrot.slane %v1220, 2
      %v1363 = vsel %vm1338, %v1360, %v1362
      %v1364 = vrot.slane %v1221, 2
      %v1365 = vsel %vm1338, %v1362, %v1364
      %v1366 = vrot.slane %v1222, 2
      %v1367 = vsel %vm1338, %v1364, %v1366
      %v1368 = vrot.slane %v1223, 2
      %v1369 = vsel %vm1338, %v1366, %v1368
      %v1370 = vrot.slane %v1224, 2
      %v1371 = vsel %vm1338, %v1368, %v1370
      %v1372 = vrot.slane %v1225, 2
      %v1373 = vsel %vm1338, %v1370, %v1372
      %v1374 = vrot.slane %v1226, 2
      %v1375 = vsel %vm1338, %v1372, %v1374
      %v1376 = vrot.slane %v1227, 2
      %v1377 = vsel %vm1338, %v1374, %v1376
      %v1378 = vrot.slane %v1228, 2
      %v1379 = vsel %vm1338, %v1376, %v1378
      %v1380 = vrot.slane %v1229, 2
      %v1381 = vsel %vm1338, %v1378, %v1380
      %v1382 = vrot.slane %v1230, 2
      %v1383 = vsel %vm1338, %v1380, %v1382
      %v1384 = vrot.slane %v1231, 2
      %v1385 = vsel %vm1338, %v1382, %v1384
      %v1386 = vrot.slane %v1232, 2
      %v1387 = vsel %vm1338, %v1384, %v1386
      %v1388 = vrot.slane %v1233, 2
      %v1389 = vsel %vm1338, %v1386, %v1388
      %v1390 = vrot.slane %v1234, 2
      %v1391 = vsel %vm1338, %v1388, %v1390
      %v1392 = vrot.slane %v1235, 2
      %v1393 = vsel %vm1338, %v1390, %v1392
      %v1394 = vrot.slane %v1236, 2
      %v1395 = vsel %vm1338, %v1392, %v1394
      %v1396 = vrot.slane %v1237, 2
      %v1397 = vsel %vm1338, %v1394, %v1396
      %v1398 = vrot.slane %v1238, 2
      %v1399 = vsel %vm1338, %v1396, %v1398
      %v1400 = vrot.slane %v1239, 2
      %v1401 = vsel %vm1338, %v1398, %v1400
      %v1402 = vrot.slane %v1240, 2
      %v1403 = vsel %vm1338, %v1400, %v1402
      %v1404 = vrot.slane %v1241, 2
      %v1405 = vsel %vm1338, %v1402, %v1404
      %v1406 = vrot.slane %v1242, 2
      %v1407 = vsel %vm1338, %v1404, %v1406
      %v1408 = vrot.slane %v1243, 2
      %v1409 = vsel %vm1338, %v1406, %v1408
      %v1410 = vrot.slane %v1244, 2
      %v1411 = vsel %vm1338, %v1408, %v1410
      %v1412 = vrot.slane %v1245, 2
      %v1413 = vsel %vm1338, %v1410, %v1412
      %v1414 = vrot.slane %v1246, 2
      %v1415 = vsel %vm1338, %v1412, %v1414
      %v1416 = vrot.slane %v1247, 2
      %v1417 = vsel %vm1338, %v1414, %v1416
      %v1418 = vrot.slane %v1248, 2
      %v1419 = vsel %vm1338, %v1416, %v1418
      %v1420 = vrot.slane %v1249, 2
      %v1421 = vsel %vm1338, %v1418, %v1420
      %v1422 = vrot.slane %v1250, 2
      %v1423 = vsel %vm1338, %v1420, %v1422
      %v1424 = vrot.slane %v1251, 2
      %v1425 = vsel %vm1338, %v1422, %v1424
      %v1426 = vrot.slane %v1252, 2
      %v1427 = vsel %vm1338, %v1424, %v1426
      %v1428 = vrot.slane %v1253, 2
      %v1429 = vsel %vm1338, %v1426, %v1428
      %v1430 = vrot.slane %v1254, 2
      %v1431 = vsel %vm1338, %v1428, %v1430
      %v1432 = vrot.slane %v1255, 2
      %v1433 = vsel %vm1338, %v1430, %v1432
      %v1434 = vrot.slane %v1256, 2
      %v1435 = vsel %vm1338, %v1432, %v1434
      %v1436 = vrot.slane %v1257, 2
      %v1437 = vsel %vm1338, %v1434, %v1436
      %v1438 = vrot.slane %v1258, 2
      %v1439 = vsel %vm1338, %v1436, %v1438
      %v1440 = vrot.slane %v1259, 2
      %v1441 = vsel %vm1338, %v1438, %v1440
      %v1442 = vrot.slane %v1260, 2
      %v1443 = vsel %vm1338, %v1440, %v1442
      %v1444 = vrot.slane %v1261, 2
      %v1445 = vsel %vm1338, %v1442, %v1444
      %v1446 = vrot.slane %v1262, 2
      %v1447 = vsel %vm1338, %v1444, %v1446
      %v1448 = vrot.slane %v1263, 2
      %v1449 = vsel %vm1338, %v1446, %v1448
      %v1450 = vrot.slane %v1264, 2
      %v1451 = vsel %vm1338, %v1448, %v1450
      %v1452 = vrot.slane %v1265, 2
      %v1453 = vsel %vm1338, %v1450, %v1452
      %v1454 = vrot.slane %v1266, 2
      %v1455 = vsel %vm1338, %v1452, %v1454
      %v1456 = vrot.slane %v1267, 2
      %v1457 = vsel %vm1338, %v1454, %v1456
      %v1458 = vrot.slane %v1268, 2
      %v1459 = vsel %vm1338, %v1456, %v1458
      %v1460 = vrot.slane %v1269, 2
      %v1461 = vsel %vm1338, %v1458, %v1460
      %v1462 = vrot.slane %v1270, 2
      %v1463 = vsel %vm1338, %v1460, %v1462
      %v1464 = vrot.slane %v1271, 2
      %v1465 = vsel %vm1338, %v1462, %v1464
      %v1466 = vrot.slane %v1272, 2
      %v1467 = vsel %vm1338, %v1464, %v1466
      %v1533 = vadd.f32 %v1138, %v1339
      %v1534 = vadd.f32 %v1139, %v1341
      %v1535 = vadd.f32 %v1140, %v1343
      %v1536 = vadd.f32 %v1141, %v1345
      %v1537 = vadd.f32 %v1142, %v1347
      %v1538 = vadd.f32 %v1143, %v1349
      %v1539 = vadd.f32 %v1144, %v1351
      %v1540 = vadd.f32 %v1145, %v1353
      %v1541 = vadd.f32 %v1146, %v1355
      %v1542 = vadd.f32 %v1147, %v1357
      %v1543 = vadd.f32 %v1148, %v1359
      %v1544 = vadd.f32 %v1149, %v1361
      %v1545 = vadd.f32 %v1150, %v1363
      %v1546 = vadd.f32 %v1151, %v1365
      %v1547 = vadd.f32 %v1152, %v1367
      %v1548 = vadd.f32 %v1153, %v1369
      %v1549 = vadd.f32 %v1154, %v1371
      %v1550 = vadd.f32 %v1155, %v1373
      %v1551 = vadd.f32 %v1156, %v1375
      %v1552 = vadd.f32 %v1157, %v1377
      %v1553 = vadd.f32 %v1158, %v1379
      %v1554 = vadd.f32 %v1159, %v1381
      %v1555 = vadd.f32 %v1160, %v1383
      %v1556 = vadd.f32 %v1161, %v1385
      %v1557 = vadd.f32 %v1162, %v1387
      %v1558 = vadd.f32 %v1163, %v1389
      %v1559 = vadd.f32 %v1164, %v1391
      %v1560 = vadd.f32 %v1165, %v1393
      %v1561 = vadd.f32 %v1166, %v1395
      %v1562 = vadd.f32 %v1167, %v1397
      %v1563 = vadd.f32 %v1168, %v1399
      %v1564 = vadd.f32 %v1169, %v1401
      %v1565 = vadd.f32 %v1170, %v1403
      %v1566 = vadd.f32 %v1171, %v1405
      %v1567 = vadd.f32 %v1172, %v1407
      %v1568 = vadd.f32 %v1173, %v1409
      %v1569 = vadd.f32 %v1174, %v1411
      %v1570 = vadd.f32 %v1175, %v1413
      %v1571 = vadd.f32 %v1176, %v1415
      %v1572 = vadd.f32 %v1177, %v1417
      %v1573 = vadd.f32 %v1178, %v1419
      %v1574 = vadd.f32 %v1179, %v1421
      %v1575 = vadd.f32 %v1180, %v1423
      %v1576 = vadd.f32 %v1181, %v1425
      %v1577 = vadd.f32 %v1182, %v1427
      %v1578 = vadd.f32 %v1183, %v1429
      %v1579 = vadd.f32 %v1184, %v1431
      %v1580 = vadd.f32 %v1185, %v1433
      %v1581 = vadd.f32 %v1186, %v1435
      %v1582 = vadd.f32 %v1187, %v1437
      %v1583 = vadd.f32 %v1188, %v1439
      %v1584 = vadd.f32 %v1189, %v1441
      %v1585 = vadd.f32 %v1190, %v1443
      %v1586 = vadd.f32 %v1191, %v1445
      %v1587 = vadd.f32 %v1192, %v1447
      %v1588 = vadd.f32 %v1193, %v1449
      %v1589 = vadd.f32 %v1194, %v1451
      %v1590 = vadd.f32 %v1195, %v1453
      %v1591 = vadd.f32 %v1196, %v1455
      %v1592 = vadd.f32 %v1197, %v1457
      %v1593 = vadd.f32 %v1198, %v1459
      %v1594 = vadd.f32 %v1199, %v1461
      %v1595 = vadd.f32 %v1200, %v1463
      %v1596 = vadd.f32 %v1201, %v1465
      %v1597 = vadd.f32 %v1202, %v1467
      %v1598 = vld [vmem:[%s6] sm:$0x1]
      %v1600 = vlaneseq
      %v1601 = vshrl.u32 %v1600, 7
      %v1602 = vsub.s32 0, %v1601
      %v1603 = vrot.slane %v1598, %v1602
      %v1605 = vadd.f32 %v1533, %v1603
      %v1606 = vadd.f32 %v1534, %v1603
      %v1607 = vadd.f32 %v1535, %v1603
      %v1608 = vadd.f32 %v1536, %v1603
      %v1609 = vadd.f32 %v1537, %v1603
      %v1610 = vadd.f32 %v1538, %v1603
      %v1611 = vadd.f32 %v1539, %v1603
      %v1612 = vadd.f32 %v1540, %v1603
      %v1613 = vadd.f32 %v1541, %v1603
      %v1614 = vadd.f32 %v1542, %v1603
      %v1615 = vadd.f32 %v1543, %v1603
      %v1616 = vadd.f32 %v1544, %v1603
      %v1617 = vadd.f32 %v1545, %v1603
      %v1618 = vadd.f32 %v1546, %v1603
      %v1619 = vadd.f32 %v1547, %v1603
      %v1620 = vadd.f32 %v1548, %v1603
      %v1621 = vadd.f32 %v1549, %v1603
      %v1622 = vadd.f32 %v1550, %v1603
      %v1623 = vadd.f32 %v1551, %v1603
      %v1624 = vadd.f32 %v1552, %v1603
      %v1625 = vadd.f32 %v1553, %v1603
      %v1626 = vadd.f32 %v1554, %v1603
      %v1627 = vadd.f32 %v1555, %v1603
      %v1628 = vadd.f32 %v1556, %v1603
      %v1629 = vadd.f32 %v1557, %v1603
      %v1630 = vadd.f32 %v1558, %v1603
      %v1631 = vadd.f32 %v1559, %v1603
      %v1632 = vadd.f32 %v1560, %v1603
      %v1633 = vadd.f32 %v1561, %v1603
      %v1634 = vadd.f32 %v1562, %v1603
      %v1635 = vadd.f32 %v1563, %v1603
      %v1636 = vadd.f32 %v1564, %v1603
      %v1637 = vadd.f32 %v1565, %v1603
      %v1638 = vadd.f32 %v1566, %v1603
      %v1639 = vadd.f32 %v1567, %v1603
      %v1640 = vadd.f32 %v1568, %v1603
      %v1641 = vadd.f32 %v1569, %v1603
      %v1642 = vadd.f32 %v1570, %v1603
      %v1643 = vadd.f32 %v1571, %v1603
      %v1644 = vadd.f32 %v1572, %v1603
      %v1645 = vadd.f32 %v1573, %v1603
      %v1646 = vadd.f32 %v1574, %v1603
      %v1647 = vadd.f32 %v1575, %v1603
      %v1648 = vadd.f32 %v1576, %v1603
      %v1649 = vadd.f32 %v1577, %v1603
      %v1650 = vadd.f32 %v1578, %v1603
      %v1651 = vadd.f32 %v1579, %v1603
      %v1652 = vadd.f32 %v1580, %v1603
      %v1653 = vadd.f32 %v1581, %v1603
      %v1654 = vadd.f32 %v1582, %v1603
      %v1655 = vadd.f32 %v1583, %v1603
      %v1656 = vadd.f32 %v1584, %v1603
      %v1657 = vadd.f32 %v1585, %v1603
      %v1658 = vadd.f32 %v1586, %v1603
      %v1659 = vadd.f32 %v1587, %v1603
      %v1660 = vadd.f32 %v1588, %v1603
      %v1661 = vadd.f32 %v1589, %v1603
      %v1662 = vadd.f32 %v1590, %v1603
      %v1663 = vadd.f32 %v1591, %v1603
      %v1664 = vadd.f32 %v1592, %v1603
      %v1665 = vadd.f32 %v1593, %v1603
      %v1666 = vadd.f32 %v1594, %v1603
      %v1667 = vadd.f32 %v1595, %v1603
      %v1668 = vadd.f32 %v1596, %v1603
      %v1669 = vadd.f32 %v1597, %v1603
      %vm1670 = vcmp.gt.f32.partialorder %v1605, 0.0
      %vm1671 = vcmp.gt.f32.partialorder %v1606, 0.0
      %vm1672 = vcmp.gt.f32.partialorder %v1607, 0.0
      %vm1673 = vcmp.gt.f32.partialorder %v1608, 0.0
      %vm1674 = vcmp.gt.f32.partialorder %v1609, 0.0
      %vm1675 = vcmp.gt.f32.partialorder %v1610, 0.0
      %vm1676 = vcmp.gt.f32.partialorder %v1611, 0.0
      %vm1677 = vcmp.gt.f32.partialorder %v1612, 0.0
      %vm1678 = vcmp.gt.f32.partialorder %v1613, 0.0
      %vm1679 = vcmp.gt.f32.partialorder %v1614, 0.0
      %vm1680 = vcmp.gt.f32.partialorder %v1615, 0.0
      %vm1681 = vcmp.gt.f32.partialorder %v1616, 0.0
      %vm1682 = vcmp.gt.f32.partialorder %v1617, 0.0
      %vm1683 = vcmp.gt.f32.partialorder %v1618, 0.0
      %vm1684 = vcmp.gt.f32.partialorder %v1619, 0.0
      %vm1685 = vcmp.gt.f32.partialorder %v1620, 0.0
      %vm1686 = vcmp.gt.f32.partialorder %v1621, 0.0
      %vm1687 = vcmp.gt.f32.partialorder %v1622, 0.0
      %vm1688 = vcmp.gt.f32.partialorder %v1623, 0.0
      %vm1689 = vcmp.gt.f32.partialorder %v1624, 0.0
      %vm1690 = vcmp.gt.f32.partialorder %v1625, 0.0
      %vm1691 = vcmp.gt.f32.partialorder %v1626, 0.0
      %vm1692 = vcmp.gt.f32.partialorder %v1627, 0.0
      %vm1693 = vcmp.gt.f32.partialorder %v1628, 0.0
      %vm1694 = vcmp.gt.f32.partialorder %v1629, 0.0
      %vm1695 = vcmp.gt.f32.partialorder %v1630, 0.0
      %vm1696 = vcmp.gt.f32.partialorder %v1631, 0.0
      %vm1697 = vcmp.gt.f32.partialorder %v1632, 0.0
      %vm1698 = vcmp.gt.f32.partialorder %v1633, 0.0
      %vm1699 = vcmp.gt.f32.partialorder %v1634, 0.0
      %vm1700 = vcmp.gt.f32.partialorder %v1635, 0.0
      %vm1701 = vcmp.gt.f32.partialorder %v1636, 0.0
      %vm1702 = vcmp.gt.f32.partialorder %v1637, 0.0
      %vm1703 = vcmp.gt.f32.partialorder %v1638, 0.0
      %vm1704 = vcmp.gt.f32.partialorder %v1639, 0.0
      %vm1705 = vcmp.gt.f32.partialorder %v1640, 0.0
      %vm1706 = vcmp.gt.f32.partialorder %v1641, 0.0
      %vm1707 = vcmp.gt.f32.partialorder %v1642, 0.0
      %vm1708 = vcmp.gt.f32.partialorder %v1643, 0.0
      %vm1709 = vcmp.gt.f32.partialorder %v1644, 0.0
      %vm1710 = vcmp.gt.f32.partialorder %v1645, 0.0
      %vm1711 = vcmp.gt.f32.partialorder %v1646, 0.0
      %vm1712 = vcmp.gt.f32.partialorder %v1647, 0.0
      %vm1713 = vcmp.gt.f32.partialorder %v1648, 0.0
      %vm1714 = vcmp.gt.f32.partialorder %v1649, 0.0
      %vm1715 = vcmp.gt.f32.partialorder %v1650, 0.0
      %vm1716 = vcmp.gt.f32.partialorder %v1651, 0.0
      %vm1717 = vcmp.gt.f32.partialorder %v1652, 0.0
      %vm1718 = vcmp.gt.f32.partialorder %v1653, 0.0
      %vm1719 = vcmp.gt.f32.partialorder %v1654, 0.0
      %vm1720 = vcmp.gt.f32.partialorder %v1655, 0.0
      %vm1721 = vcmp.gt.f32.partialorder %v1656, 0.0
      %vm1722 = vcmp.gt.f32.partialorder %v1657, 0.0
      %vm1723 = vcmp.gt.f32.partialorder %v1658, 0.0
      %vm1724 = vcmp.gt.f32.partialorder %v1659, 0.0
      %vm1725 = vcmp.gt.f32.partialorder %v1660, 0.0
      %vm1726 = vcmp.gt.f32.partialorder %v1661, 0.0
      %vm1727 = vcmp.gt.f32.partialorder %v1662, 0.0
      %vm1728 = vcmp.gt.f32.partialorder %v1663, 0.0
      %vm1729 = vcmp.gt.f32.partialorder %v1664, 0.0
      %vm1730 = vcmp.gt.f32.partialorder %v1665, 0.0
      %vm1731 = vcmp.gt.f32.partialorder %v1666, 0.0
      %vm1732 = vcmp.gt.f32.partialorder %v1667, 0.0
      %vm1733 = vcmp.gt.f32.partialorder %v1668, 0.0
      %vm1734 = vcmp.gt.f32.partialorder %v1669, 0.0
      %v1735 = vld [vmem:[#allocation2] sm:$0x1]
      %v1737 = vlaneseq
      %v1738 = vshrl.u32 %v1737, 7
      %v1739 = vsub.s32 0, %v1738
      %v1740 = vrot.slane %v1735, %v1739
      %1741 = vset.pattern.permute.xlu0 0
      %1742 = vperm.xlu0 %1741, %v1740
      %v1743 = vpop.permute.xlu0 %1742
      %v1745 = vmul.f32 %v1605, %v1743
      %v1746 = vmul.f32 %v1606, %v1743
      %v1747 = vmul.f32 %v1607, %v1743
      %v1748 = vmul.f32 %v1608, %v1743
      %v1749 = vmul.f32 %v1609, %v1743
      %v1750 = vmul.f32 %v1610, %v1743
      %v1751 = vmul.f32 %v1611, %v1743
      %v1752 = vmul.f32 %v1612, %v1743
      %v1753 = vmul.f32 %v1613, %v1743
      %v1754 = vmul.f32 %v1614, %v1743
      %v1755 = vmul.f32 %v1615, %v1743
      %v1756 = vmul.f32 %v1616, %v1743
      %v1757 = vmul.f32 %v1617, %v1743
      %v1758 = vmul.f32 %v1618, %v1743
      %v1759 = vmul.f32 %v1619, %v1743
      %v1760 = vmul.f32 %v1620, %v1743
      %v1761 = vmul.f32 %v1621, %v1743
      %v1762 = vmul.f32 %v1622, %v1743
      %v1763 = vmul.f32 %v1623, %v1743
      %v1764 = vmul.f32 %v1624, %v1743
      %v1765 = vmul.f32 %v1625, %v1743
      %v1766 = vmul.f32 %v1626, %v1743
      %v1767 = vmul.f32 %v1627, %v1743
      %v1768 = vmul.f32 %v1628, %v1743
      %v1769 = vmul.f32 %v1629, %v1743
      %v1770 = vmul.f32 %v1630, %v1743
      %v1771 = vmul.f32 %v1631, %v1743
      %v1772 = vmul.f32 %v1632, %v1743
      %v1773 = vmul.f32 %v1633, %v1743
      %v1774 = vmul.f32 %v1634, %v1743
      %v1775 = vmul.f32 %v1635, %v1743
      %v1776 = vmul.f32 %v1636, %v1743
      %v1777 = vmul.f32 %v1637, %v1743
      %v1778 = vmul.f32 %v1638, %v1743
      %v1779 = vmul.f32 %v1639, %v1743
      %v1780 = vmul.f32 %v1640, %v1743
      %v1781 = vmul.f32 %v1641, %v1743
      %v1782 = vmul.f32 %v1642, %v1743
      %v1783 = vmul.f32 %v1643, %v1743
      %v1784 = vmul.f32 %v1644, %v1743
      %v1785 = vmul.f32 %v1645, %v1743
      %v1786 = vmul.f32 %v1646, %v1743
      %v1787 = vmul.f32 %v1647, %v1743
      %v1788 = vmul.f32 %v1648, %v1743
      %v1789 = vmul.f32 %v1649, %v1743
      %v1790 = vmul.f32 %v1650, %v1743
      %v1791 = vmul.f32 %v1651, %v1743
      %v1792 = vmul.f32 %v1652, %v1743
      %v1793 = vmul.f32 %v1653, %v1743
      %v1794 = vmul.f32 %v1654, %v1743
      %v1795 = vmul.f32 %v1655, %v1743
      %v1796 = vmul.f32 %v1656, %v1743
      %v1797 = vmul.f32 %v1657, %v1743
      %v1798 = vmul.f32 %v1658, %v1743
      %v1799 = vmul.f32 %v1659, %v1743
      %v1800 = vmul.f32 %v1660, %v1743
      %v1801 = vmul.f32 %v1661, %v1743
      %v1802 = vmul.f32 %v1662, %v1743
      %v1803 = vmul.f32 %v1663, %v1743
      %v1804 = vmul.f32 %v1664, %v1743
      %v1805 = vmul.f32 %v1665, %v1743
      %v1806 = vmul.f32 %v1666, %v1743
      %v1807 = vmul.f32 %v1667, %v1743
      %v1808 = vmul.f32 %v1668, %v1743
      %v1809 = vmul.f32 %v1669, %v1743
      %v1810 = vsel %vm1670, %v1605, %v1745
      %v1811 = vsel %vm1671, %v1606, %v1746
      %v1812 = vsel %vm1672, %v1607, %v1747
      %v1813 = vsel %vm1673, %v1608, %v1748
      %v1814 = vsel %vm1674, %v1609, %v1749
      %v1815 = vsel %vm1675, %v1610, %v1750
      %v1816 = vsel %vm1676, %v1611, %v1751
      %v1817 = vsel %vm1677, %v1612, %v1752
      %v1818 = vsel %vm1678, %v1613, %v1753
      %v1819 = vsel %vm1679, %v1614, %v1754
      %v1820 = vsel %vm1680, %v1615, %v1755
      %v1821 = vsel %vm1681, %v1616, %v1756
      %v1822 = vsel %vm1682, %v1617, %v1757
      %v1823 = vsel %vm1683, %v1618, %v1758
      %v1824 = vsel %vm1684, %v1619, %v1759
      %v1825 = vsel %vm1685, %v1620, %v1760
      %v1826 = vsel %vm1686, %v1621, %v1761
      %v1827 = vsel %vm1687, %v1622, %v1762
      %v1828 = vsel %vm1688, %v1623, %v1763
      %v1829 = vsel %vm1689, %v1624, %v1764
      %v1830 = vsel %vm1690, %v1625, %v1765
      %v1831 = vsel %vm1691, %v1626, %v1766
      %v1832 = vsel %vm1692, %v1627, %v1767
      %v1833 = vsel %vm1693, %v1628, %v1768
      %v1834 = vsel %vm1694, %v1629, %v1769
      %v1835 = vsel %vm1695, %v1630, %v1770
      %v1836 = vsel %vm1696, %v1631, %v1771
      %v1837 = vsel %vm1697, %v1632, %v1772
      %v1838 = vsel %vm1698, %v1633, %v1773
      %v1839 = vsel %vm1699, %v1634, %v1774
      %v1840 = vsel %vm1700, %v1635, %v1775
      %v1841 = vsel %vm1701, %v1636, %v1776
      %v1842 = vsel %vm1702, %v1637, %v1777
      %v1843 = vsel %vm1703, %v1638, %v1778
      %v1844 = vsel %vm1704, %v1639, %v1779
      %v1845 = vsel %vm1705, %v1640, %v1780
      %v1846 = vsel %vm1706, %v1641, %v1781
      %v1847 = vsel %vm1707, %v1642, %v1782
      %v1848 = vsel %vm1708, %v1643, %v1783
      %v1849 = vsel %vm1709, %v1644, %v1784
      %v1850 = vsel %vm1710, %v1645, %v1785
      %v1851 = vsel %vm1711, %v1646, %v1786
      %v1852 = vsel %vm1712, %v1647, %v1787
      %v1853 = vsel %vm1713, %v1648, %v1788
      %v1854 = vsel %vm1714, %v1649, %v1789
      %v1855 = vsel %vm1715, %v1650, %v1790
      %v1856 = vsel %vm1716, %v1651, %v1791
      %v1857 = vsel %vm1717, %v1652, %v1792
      %v1858 = vsel %vm1718, %v1653, %v1793
      %v1859 = vsel %vm1719, %v1654, %v1794
      %v1860 = vsel %vm1720, %v1655, %v1795
      %v1861 = vsel %vm1721, %v1656, %v1796
      %v1862 = vsel %vm1722, %v1657, %v1797
      %v1863 = vsel %vm1723, %v1658, %v1798
      %v1864 = vsel %vm1724, %v1659, %v1799
      %v1865 = vsel %vm1725, %v1660, %v1800
      %v1866 = vsel %vm1726, %v1661, %v1801
      %v1867 = vsel %vm1727, %v1662, %v1802
      %v1868 = vsel %vm1728, %v1663, %v1803
      %v1869 = vsel %vm1729, %v1664, %v1804
      %v1870 = vsel %vm1730, %v1665, %v1805
      %v1871 = vsel %vm1731, %v1666, %v1806
      %v1872 = vsel %vm1732, %v1667, %v1807
      %v1873 = vsel %vm1733, %v1668, %v1808
      %v1874 = vsel %vm1734, %v1669, %v1809
      %1875 = vst [vmem:[%s501 - $0x7] sm:$0x80] %v1810
      %1876 = vst [vmem:[%s501 + $0x1] sm:$0xff] %v1811
      %1877 = vst [vmem:[%s501 + $0x9] sm:$0xff] %v1812
      %1878 = vst [vmem:[%s501 + $0x11] sm:$0xff] %v1813
      %1879 = vst [vmem:[%s501 + $0x19] sm:$0xff] %v1814
      %1880 = vst [vmem:[%s501 + $0x21] sm:$0xff] %v1815
      %1881 = vst [vmem:[%s501 + $0x29] sm:$0xff] %v1816
      %1882 = vst [vmem:[%s501 + $0x31] sm:$0xff] %v1817
      %1883 = vst [vmem:[%s501 + $0x39] sm:$0xff] %v1818
      %1884 = vst [vmem:[%s501 + $0x41] sm:$0xff] %v1819
      %1885 = vst [vmem:[%s501 + $0x49] sm:$0xff] %v1820
      %1886 = vst [vmem:[%s501 + $0x51] sm:$0xff] %v1821
      %1887 = vst [vmem:[%s501 + $0x59] sm:$0xff] %v1822
      %1888 = vst [vmem:[%s501 + $0x61] sm:$0xff] %v1823
      %1889 = vst [vmem:[%s501 + $0x69] sm:$0xff] %v1824
      %1890 = vst [vmem:[%s501 + $0x71] sm:$0xff] %v1825
      %1891 = vst [vmem:[%s501 + $0x79] sm:$0xff] %v1826
      %1892 = vst [vmem:[%s501 + $0x81] sm:$0xff] %v1827
      %1893 = vst [vmem:[%s501 + $0x89] sm:$0xff] %v1828
      %1894 = vst [vmem:[%s501 + $0x91] sm:$0xff] %v1829
      %1895 = vst [vmem:[%s501 + $0x99] sm:$0xff] %v1830
      %1896 = vst [vmem:[%s501 + $0xa1] sm:$0xff] %v1831
      %1897 = vst [vmem:[%s501 + $0xa9] sm:$0xff] %v1832
      %1898 = vst [vmem:[%s501 + $0xb1] sm:$0xff] %v1833
      %1899 = vst [vmem:[%s501 + $0xb9] sm:$0xff] %v1834
      %1900 = vst [vmem:[%s501 + $0xc1] sm:$0xff] %v1835
      %1901 = vst [vmem:[%s501 + $0xc9] sm:$0xff] %v1836
      %1902 = vst [vmem:[%s501 + $0xd1] sm:$0xff] %v1837
      %1903 = vst [vmem:[%s501 + $0xd9] sm:$0xff] %v1838
      %1904 = vst [vmem:[%s501 + $0xe1] sm:$0xff] %v1839
      %1905 = vst [vmem:[%s501 + $0xe9] sm:$0xff] %v1840
      %1906 = vst [vmem:[%s501 + $0xf1] sm:$0xff] %v1841
      %1907 = vst [vmem:[%s501 + $0xf9] sm:$0xff] %v1842
      %1908 = vst [vmem:[%s501 + $0x101] sm:$0xff] %v1843
      %1909 = vst [vmem:[%s501 + $0x109] sm:$0xff] %v1844
      %1910 = vst [vmem:[%s501 + $0x111] sm:$0xff] %v1845
      %1911 = vst [vmem:[%s501 + $0x119] sm:$0xff] %v1846
      %1912 = vst [vmem:[%s501 + $0x121] sm:$0xff] %v1847
      %1913 = vst [vmem:[%s501 + $0x129] sm:$0xff] %v1848
      %1914 = vst [vmem:[%s501 + $0x131] sm:$0xff] %v1849
      %1915 = vst [vmem:[%s501 + $0x139] sm:$0xff] %v1850
      %1916 = vst [vmem:[%s501 + $0x141] sm:$0xff] %v1851
      %1917 = vst [vmem:[%s501 + $0x149] sm:$0xff] %v1852
      %1918 = vst [vmem:[%s501 + $0x151] sm:$0xff] %v1853
      %1919 = vst [vmem:[%s501 + $0x159] sm:$0xff] %v1854
      %1920 = vst [vmem:[%s501 + $0x161] sm:$0xff] %v1855
      %1921 = vst [vmem:[%s501 + $0x169] sm:$0xff] %v1856
      %1922 = vst [vmem:[%s501 + $0x171] sm:$0xff] %v1857
      %1923 = vst [vmem:[%s501 + $0x179] sm:$0xff] %v1858
      %1924 = vst [vmem:[%s501 + $0x181] sm:$0xff] %v1859
      %1925 = vst [vmem:[%s501 + $0x189] sm:$0xff] %v1860
      %1926 = vst [vmem:[%s501 + $0x191] sm:$0xff] %v1861
      %1927 = vst [vmem:[%s501 + $0x199] sm:$0xff] %v1862
      %1928 = vst [vmem:[%s501 + $0x1a1] sm:$0xff] %v1863
      %1929 = vst [vmem:[%s501 + $0x1a9] sm:$0xff] %v1864
      %1930 = vst [vmem:[%s501 + $0x1b1] sm:$0xff] %v1865
      %1931 = vst [vmem:[%s501 + $0x1b9] sm:$0xff] %v1866
      %1932 = vst [vmem:[%s501 + $0x1c1] sm:$0xff] %v1867
      %1933 = vst [vmem:[%s501 + $0x1c9] sm:$0xff] %v1868
      %1934 = vst [vmem:[%s501 + $0x1d1] sm:$0xff] %v1869
      %1935 = vst [vmem:[%s501 + $0x1d9] sm:$0xff] %v1870
      %1936 = vst [vmem:[%s501 + $0x1e1] sm:$0xff] %v1871
      %1937 = vst [vmem:[%s501 + $0x1e9] sm:$0xff] %v1872
      %1938 = vst [vmem:[%s501 + $0x1f1] sm:$0xff] %v1873
      %1939 = vst [vmem:[%s501 + $0x1f9] sm:$0x7f] %v1874
      %s1940 = smul.u32 %s29, 512
      %s1941 = scvt.s32.f32 %s1940
      %vm2007 = vcmask 1040384
      %v2008 = vrot.slane %v1810, 7
      %v2009 = vrot.slane %v1811, 7
      %v2010 = vsel %vm2007, %v2008, %v2009
      %v2011 = vrot.slane %v1812, 7
      %v2012 = vsel %vm2007, %v2009, %v2011
      %v2013 = vrot.slane %v1813, 7
      %v2014 = vsel %vm2007, %v2011, %v2013
      %v2015 = vrot.slane %v1814, 7
      %v2016 = vsel %vm2007, %v2013, %v2015
      %v2017 = vrot.slane %v1815, 7
      %v2018 = vsel %vm2007, %v2015, %v2017
      %v2019 = vrot.slane %v1816, 7
      %v2020 = vsel %vm2007, %v2017, %v2019
      %v2021 = vrot.slane %v1817, 7
      %v2022 = vsel %vm2007, %v2019, %v2021
      %v2023 = vrot.slane %v1818, 7
      %v2024 = vsel %vm2007, %v2021, %v2023
      %v2025 = vrot.slane %v1819, 7
      %v2026 = vsel %vm2007, %v2023, %v2025
      %v2027 = vrot.slane %v1820, 7
      %v2028 = vsel %vm2007, %v2025, %v2027
      %v2029 = vrot.slane %v1821, 7
      %v2030 = vsel %vm2007, %v2027, %v2029
      %v2031 = vrot.slane %v1822, 7
      %v2032 = vsel %vm2007, %v2029, %v2031
      %v2033 = vrot.slane %v1823, 7
      %v2034 = vsel %vm2007, %v2031, %v2033
      %v2035 = vrot.slane %v1824, 7
      %v2036 = vsel %vm2007, %v2033, %v2035
      %v2037 = vrot.slane %v1825, 7
      %v2038 = vsel %vm2007, %v2035, %v2037
      %v2039 = vrot.slane %v1826, 7
      %v2040 = vsel %vm2007, %v2037, %v2039
      %v2041 = vrot.slane %v1827, 7
      %v2042 = vsel %vm2007, %v2039, %v2041
      %v2043 = vrot.slane %v1828, 7
      %v2044 = vsel %vm2007, %v2041, %v2043
      %v2045 = vrot.slane %v1829, 7
      %v2046 = vsel %vm2007, %v2043, %v2045
      %v2047 = vrot.slane %v1830, 7
      %v2048 = vsel %vm2007, %v2045, %v2047
      %v2049 = vrot.slane %v1831, 7
      %v2050 = vsel %vm2007, %v2047, %v2049
      %v2051 = vrot.slane %v1832, 7
      %v2052 = vsel %vm2007, %v2049, %v2051
      %v2053 = vrot.slane %v1833, 7
      %v2054 = vsel %vm2007, %v2051, %v2053
      %v2055 = vrot.slane %v1834, 7
      %v2056 = vsel %vm2007, %v2053, %v2055
      %v2057 = vrot.slane %v1835, 7
      %v2058 = vsel %vm2007, %v2055, %v2057
      %v2059 = vrot.slane %v1836, 7
      %v2060 = vsel %vm2007, %v2057, %v2059
      %v2061 = vrot.slane %v1837, 7
      %v2062 = vsel %vm2007, %v2059, %v2061
      %v2063 = vrot.slane %v1838, 7
      %v2064 = vsel %vm2007, %v2061, %v2063
      %v2065 = vrot.slane %v1839, 7
      %v2066 = vsel %vm2007, %v2063, %v2065
      %v2067 = vrot.slane %v1840, 7
      %v2068 = vsel %vm2007, %v2065, %v2067
      %v2069 = vrot.slane %v1841, 7
      %v2070 = vsel %vm2007, %v2067, %v2069
      %v2071 = vrot.slane %v1842, 7
      %v2072 = vsel %vm2007, %v2069, %v2071
      %v2073 = vrot.slane %v1843, 7
      %v2074 = vsel %vm2007, %v2071, %v2073
      %v2075 = vrot.slane %v1844, 7
      %v2076 = vsel %vm2007, %v2073, %v2075
      %v2077 = vrot.slane %v1845, 7
      %v2078 = vsel %vm2007, %v2075, %v2077
      %v2079 = vrot.slane %v1846, 7
      %v2080 = vsel %vm2007, %v2077, %v2079
      %v2081 = vrot.slane %v1847, 7
      %v2082 = vsel %vm2007, %v2079, %v2081
      %v2083 = vrot.slane %v1848, 7
      %v2084 = vsel %vm2007, %v2081, %v2083
      %v2085 = vrot.slane %v1849, 7
      %v2086 = vsel %vm2007, %v2083, %v2085
      %v2087 = vrot.slane %v1850, 7
      %v2088 = vsel %vm2007, %v2085, %v2087
      %v2089 = vrot.slane %v1851, 7
      %v2090 = vsel %vm2007, %v2087, %v2089
      %v2091 = vrot.slane %v1852, 7
      %v2092 = vsel %vm2007, %v2089, %v2091
      %v2093 = vrot.slane %v1853, 7
      %v2094 = vsel %vm2007, %v2091, %v2093
      %v2095 = vrot.slane %v1854, 7
      %v2096 = vsel %vm2007, %v2093, %v2095
      %v2097 = vrot.slane %v1855, 7
      %v2098 = vsel %vm2007, %v2095, %v2097
      %v2099 = vrot.slane %v1856, 7
      %v2100 = vsel %vm2007, %v2097, %v2099
      %v2101 = vrot.slane %v1857, 7
      %v2102 = vsel %vm2007, %v2099, %v2101
      %v2103 = vrot.slane %v1858, 7
      %v2104 = vsel %vm2007, %v2101, %v2103
      %v2105 = vrot.slane %v1859, 7
      %v2106 = vsel %vm2007, %v2103, %v2105
      %v2107 = vrot.slane %v1860, 7
      %v2108 = vsel %vm2007, %v2105, %v2107
      %v2109 = vrot.slane %v1861, 7
      %v2110 = vsel %vm2007, %v2107, %v2109
      %v2111 = vrot.slane %v1862, 7
      %v2112 = vsel %vm2007, %v2109, %v2111
      %v2113 = vrot.slane %v1863, 7
      %v2114 = vsel %vm2007, %v2111, %v2113
      %v2115 = vrot.slane %v1864, 7
      %v2116 = vsel %vm2007, %v2113, %v2115
      %v2117 = vrot.slane %v1865, 7
      %v2118 = vsel %vm2007, %v2115, %v2117
      %v2119 = vrot.slane %v1866, 7
      %v2120 = vsel %vm2007, %v2117, %v2119
      %v2121 = vrot.slane %v1867, 7
      %v2122 = vsel %vm2007, %v2119, %v2121
      %v2123 = vrot.slane %v1868, 7
      %v2124 = vsel %vm2007, %v2121, %v2123
      %v2125 = vrot.slane %v1869, 7
      %v2126 = vsel %vm2007, %v2123, %v2125
      %v2127 = vrot.slane %v1870, 7
      %v2128 = vsel %vm2007, %v2125, %v2127
      %v2129 = vrot.slane %v1871, 7
      %v2130 = vsel %vm2007, %v2127, %v2129
      %v2131 = vrot.slane %v1872, 7
      %v2132 = vsel %vm2007, %v2129, %v2131
      %v2133 = vrot.slane %v1873, 7
      %v2134 = vsel %vm2007, %v2131, %v2133
      %v2135 = vrot.slane %v1874, 7
      %v2136 = vsel %vm2007, %v2133, %v2135
      %v2201 = vadd.f32 %v2010, %v2012
      %v2202 = vadd.f32 %v2201, %v2014
      %v2203 = vadd.f32 %v2202, %v2016
      %v2204 = vadd.f32 %v2203, %v2018
      %v2205 = vadd.f32 %v2204, %v2020
      %v2206 = vadd.f32 %v2205, %v2022
      %v2207 = vadd.f32 %v2206, %v2024
      %v2208 = vadd.f32 %v2207, %v2026
      %v2209 = vadd.f32 %v2208, %v2028
      %v2210 = vadd.f32 %v2209, %v2030
      %v2211 = vadd.f32 %v2210, %v2032
      %v2212 = vadd.f32 %v2211, %v2034
      %v2213 = vadd.f32 %v2212, %v2036
      %v2214 = vadd.f32 %v2213, %v2038
      %v2215 = vadd.f32 %v2214, %v2040
      %v2216 = vadd.f32 %v2215, %v2042
      %v2217 = vadd.f32 %v2216, %v2044
      %v2218 = vadd.f32 %v2217, %v2046
      %v2219 = vadd.f32 %v2218, %v2048
      %v2220 = vadd.f32 %v2219, %v2050
      %v2221 = vadd.f32 %v2220, %v2052
      %v2222 = vadd.f32 %v2221, %v2054
      %v2223 = vadd.f32 %v2222, %v2056
      %v2224 = vadd.f32 %v2223, %v2058
      %v2225 = vadd.f32 %v2224, %v2060
      %v2226 = vadd.f32 %v2225, %v2062
      %v2227 = vadd.f32 %v2226, %v2064
      %v2228 = vadd.f32 %v2227, %v2066
      %v2229 = vadd.f32 %v2228, %v2068
      %v2230 = vadd.f32 %v2229, %v2070
      %v2231 = vadd.f32 %v2230, %v2072
      %v2232 = vadd.f32 %v2231, %v2074
      %v2233 = vadd.f32 %v2232, %v2076
      %v2234 = vadd.f32 %v2233, %v2078
      %v2235 = vadd.f32 %v2234, %v2080
      %v2236 = vadd.f32 %v2235, %v2082
      %v2237 = vadd.f32 %v2236, %v2084
      %v2238 = vadd.f32 %v2237, %v2086
      %v2239 = vadd.f32 %v2238, %v2088
      %v2240 = vadd.f32 %v2239, %v2090
      %v2241 = vadd.f32 %v2240, %v2092
      %v2242 = vadd.f32 %v2241, %v2094
      %v2243 = vadd.f32 %v2242, %v2096
      %v2244 = vadd.f32 %v2243, %v2098
      %v2245 = vadd.f32 %v2244, %v2100
      %v2246 = vadd.f32 %v2245, %v2102
      %v2247 = vadd.f32 %v2246, %v2104
      %v2248 = vadd.f32 %v2247, %v2106
      %v2249 = vadd.f32 %v2248, %v2108
      %v2250 = vadd.f32 %v2249, %v2110
      %v2251 = vadd.f32 %v2250, %v2112
      %v2252 = vadd.f32 %v2251, %v2114
      %v2253 = vadd.f32 %v2252, %v2116
      %v2254 = vadd.f32 %v2253, %v2118
      %v2255 = vadd.f32 %v2254, %v2120
      %v2256 = vadd.f32 %v2255, %v2122
      %v2257 = vadd.f32 %v2256, %v2124
      %v2258 = vadd.f32 %v2257, %v2126
      %v2259 = vadd.f32 %v2258, %v2128
      %v2260 = vadd.f32 %v2259, %v2130
      %v2261 = vadd.f32 %v2260, %v2132
      %v2262 = vadd.f32 %v2261, %v2134
      %v2263 = vadd.f32 %v2262, %v2136
      %v2264 = vrot.slane %v2263, 4
      %v2265 = vadd.f32 %v2263, %v2264
      %v2266 = vrot.slane %v2265, 2
      %v2267 = vadd.f32 %v2265, %v2266
      %v2268 = vrot.slane %v2267, 1
      %v2269 = vadd.f32 %v2267, %v2268
      %v2270 = vrcp.pop 512.0
      %v2271 = vmul.f32 %v2269, %v2270
      %v2272 = vsub.f32 %v1810, %v2271
      %v2273 = vsub.f32 %v1811, %v2271
      %v2274 = vsub.f32 %v1812, %v2271
      %v2275 = vsub.f32 %v1813, %v2271
      %v2276 = vsub.f32 %v1814, %v2271
      %v2277 = vsub.f32 %v1815, %v2271
      %v2278 = vsub.f32 %v1816, %v2271
      %v2279 = vsub.f32 %v1817, %v2271
      %v2280 = vsub.f32 %v1818, %v2271
      %v2281 = vsub.f32 %v1819, %v2271
      %v2282 = vsub.f32 %v1820, %v2271
      %v2283 = vsub.f32 %v1821, %v2271
      %v2284 = vsub.f32 %v1822, %v2271
      %v2285 = vsub.f32 %v1823, %v2271
      %v2286 = vsub.f32 %v1824, %v2271
      %v2287 = vsub.f32 %v1825, %v2271
      %v2288 = vsub.f32 %v1826, %v2271
      %v2289 = vsub.f32 %v1827, %v2271
      %v2290 = vsub.f32 %v1828, %v2271
      %v2291 = vsub.f32 %v1829, %v2271
      %v2292 = vsub.f32 %v1830, %v2271
      %v2293 = vsub.f32 %v1831, %v2271
      %v2294 = vsub.f32 %v1832, %v2271
      %v2295 = vsub.f32 %v1833, %v2271
      %v2296 = vsub.f32 %v1834, %v2271
      %v2297 = vsub.f32 %v1835, %v2271
      %v2298 = vsub.f32 %v1836, %v2271
      %v2299 = vsub.f32 %v1837, %v2271
      %v2300 = vsub.f32 %v1838, %v2271
      %v2301 = vsub.f32 %v1839, %v2271
      %v2302 = vsub.f32 %v1840, %v2271
      %v2303 = vsub.f32 %v1841, %v2271
      %v2304 = vsub.f32 %v1842, %v2271
      %v2305 = vsub.f32 %v1843, %v2271
      %v2306 = vsub.f32 %v1844, %v2271
      %v2307 = vsub.f32 %v1845, %v2271
      %v2308 = vsub.f32 %v1846, %v2271
      %v2309 = vsub.f32 %v1847, %v2271
      %v2310 = vsub.f32 %v1848, %v2271
      %v2311 = vsub.f32 %v1849, %v2271
      %v2312 = vsub.f32 %v1850, %v2271
      %v2313 = vsub.f32 %v1851, %v2271
      %v2314 = vsub.f32 %v1852, %v2271
      %v2315 = vsub.f32 %v1853, %v2271
      %v2316 = vsub.f32 %v1854, %v2271
      %v2317 = vsub.f32 %v1855, %v2271
      %v2318 = vsub.f32 %v1856, %v2271
      %v2319 = vsub.f32 %v1857, %v2271
      %v2320 = vsub.f32 %v1858, %v2271
      %v2321 = vsub.f32 %v1859, %v2271
      %v2322 = vsub.f32 %v1860, %v2271
      %v2323 = vsub.f32 %v1861, %v2271
      %v2324 = vsub.f32 %v1862, %v2271
      %v2325 = vsub.f32 %v1863, %v2271
      %v2326 = vsub.f32 %v1864, %v2271
      %v2327 = vsub.f32 %v1865, %v2271
      %v2328 = vsub.f32 %v1866, %v2271
      %v2329 = vsub.f32 %v1867, %v2271
      %v2330 = vsub.f32 %v1868, %v2271
      %v2331 = vsub.f32 %v1869, %v2271
      %v2332 = vsub.f32 %v1870, %v2271
      %v2333 = vsub.f32 %v1871, %v2271
      %v2334 = vsub.f32 %v1872, %v2271
      %v2335 = vsub.f32 %v1873, %v2271
      %v2336 = vsub.f32 %v1874, %v2271
      %v2337 = vmul.f32 %v2272, %v2272
      %v2338 = vmul.f32 %v2273, %v2273
      %v2339 = vmul.f32 %v2274, %v2274
      %v2340 = vmul.f32 %v2275, %v2275
      %v2341 = vmul.f32 %v2276, %v2276
      %v2342 = vmul.f32 %v2277, %v2277
      %v2343 = vmul.f32 %v2278, %v2278
      %v2344 = vmul.f32 %v2279, %v2279
      %v2345 = vmul.f32 %v2280, %v2280
      %v2346 = vmul.f32 %v2281, %v2281
      %v2347 = vmul.f32 %v2282, %v2282
      %v2348 = vmul.f32 %v2283, %v2283
      %v2349 = vmul.f32 %v2284, %v2284
      %v2350 = vmul.f32 %v2285, %v2285
      %v2351 = vmul.f32 %v2286, %v2286
      %v2352 = vmul.f32 %v2287, %v2287
      %v2353 = vmul.f32 %v2288, %v2288
      %v2354 = vmul.f32 %v2289, %v2289
      %v2355 = vmul.f32 %v2290, %v2290
      %v2356 = vmul.f32 %v2291, %v2291
      %v2357 = vmul.f32 %v2292, %v2292
      %v2358 = vmul.f32 %v2293, %v2293
      %v2359 = vmul.f32 %v2294, %v2294
      %v2360 = vmul.f32 %v2295, %v2295
      %v2361 = vmul.f32 %v2296, %v2296
      %v2362 = vmul.f32 %v2297, %v2297
      %v2363 = vmul.f32 %v2298, %v2298
      %v2364 = vmul.f32 %v2299, %v2299
      %v2365 = vmul.f32 %v2300, %v2300
      %v2366 = vmul.f32 %v2301, %v2301
      %v2367 = vmul.f32 %v2302, %v2302
      %v2368 = vmul.f32 %v2303, %v2303
      %v2369 = vmul.f32 %v2304, %v2304
      %v2370 = vmul.f32 %v2305, %v2305
      %v2371 = vmul.f32 %v2306, %v2306
      %v2372 = vmul.f32 %v2307, %v2307
      %v2373 = vmul.f32 %v2308, %v2308
      %v2374 = vmul.f32 %v2309, %v2309
      %v2375 = vmul.f32 %v2310, %v2310
      %v2376 = vmul.f32 %v2311, %v2311
      %v2377 = vmul.f32 %v2312, %v2312
      %v2378 = vmul.f32 %v2313, %v2313
      %v2379 = vmul.f32 %v2314, %v2314
      %v2380 = vmul.f32 %v2315, %v2315
      %v2381 = vmul.f32 %v2316, %v2316
      %v2382 = vmul.f32 %v2317, %v2317
      %v2383 = vmul.f32 %v2318, %v2318
      %v2384 = vmul.f32 %v2319, %v2319
      %v2385 = vmul.f32 %v2320, %v2320
      %v2386 = vmul.f32 %v2321, %v2321
      %v2387 = vmul.f32 %v2322, %v2322
      %v2388 = vmul.f32 %v2323, %v2323
      %v2389 = vmul.f32 %v2324, %v2324
      %v2390 = vmul.f32 %v2325, %v2325
      %v2391 = vmul.f32 %v2326, %v2326
      %v2392 = vmul.f32 %v2327, %v2327
      %v2393 = vmul.f32 %v2328, %v2328
      %v2394 = vmul.f32 %v2329, %v2329
      %v2395 = vmul.f32 %v2330, %v2330
      %v2396 = vmul.f32 %v2331, %v2331
      %v2397 = vmul.f32 %v2332, %v2332
      %v2398 = vmul.f32 %v2333, %v2333
      %v2399 = vmul.f32 %v2334, %v2334
      %v2400 = vmul.f32 %v2335, %v2335
      %v2401 = vmul.f32 %v2336, %v2336
      %v2467 = vrot.slane %v2337, 7
      %v2468 = vrot.slane %v2338, 7
      %v2469 = vsel %vm2007, %v2467, %v2468
      %v2470 = vrot.slane %v2339, 7
      %v2471 = vsel %vm2007, %v2468, %v2470
      %v2472 = vrot.slane %v2340, 7
      %v2473 = vsel %vm2007, %v2470, %v2472
      %v2474 = vrot.slane %v2341, 7
      %v2475 = vsel %vm2007, %v2472, %v2474
      %v2476 = vrot.slane %v2342, 7
      %v2477 = vsel %vm2007, %v2474, %v2476
      %v2478 = vrot.slane %v2343, 7
      %v2479 = vsel %vm2007, %v2476, %v2478
      %v2480 = vrot.slane %v2344, 7
      %v2481 = vsel %vm2007, %v2478, %v2480
      %v2482 = vrot.slane %v2345, 7
      %v2483 = vsel %vm2007, %v2480, %v2482
      %v2484 = vrot.slane %v2346, 7
      %v2485 = vsel %vm2007, %v2482, %v2484
      %v2486 = vrot.slane %v2347, 7
      %v2487 = vsel %vm2007, %v2484, %v2486
      %v2488 = vrot.slane %v2348, 7
      %v2489 = vsel %vm2007, %v2486, %v2488
      %v2490 = vrot.slane %v2349, 7
      %v2491 = vsel %vm2007, %v2488, %v2490
      %v2492 = vrot.slane %v2350, 7
      %v2493 = vsel %vm2007, %v2490, %v2492
      %v2494 = vrot.slane %v2351, 7
      %v2495 = vsel %vm2007, %v2492, %v2494
      %v2496 = vrot.slane %v2352, 7
      %v2497 = vsel %vm2007, %v2494, %v2496
      %v2498 = vrot.slane %v2353, 7
      %v2499 = vsel %vm2007, %v2496, %v2498
      %v2500 = vrot.slane %v2354, 7
      %v2501 = vsel %vm2007, %v2498, %v2500
      %v2502 = vrot.slane %v2355, 7
      %v2503 = vsel %vm2007, %v2500, %v2502
      %v2504 = vrot.slane %v2356, 7
      %v2505 = vsel %vm2007, %v2502, %v2504
      %v2506 = vrot.slane %v2357, 7
      %v2507 = vsel %vm2007, %v2504, %v2506
      %v2508 = vrot.slane %v2358, 7
      %v2509 = vsel %vm2007, %v2506, %v2508
      %v2510 = vrot.slane %v2359, 7
      %v2511 = vsel %vm2007, %v2508, %v2510
      %v2512 = vrot.slane %v2360, 7
      %v2513 = vsel %vm2007, %v2510, %v2512
      %v2514 = vrot.slane %v2361, 7
      %v2515 = vsel %vm2007, %v2512, %v2514
      %v2516 = vrot.slane %v2362, 7
      %v2517 = vsel %vm2007, %v2514, %v2516
      %v2518 = vrot.slane %v2363, 7
      %v2519 = vsel %vm2007, %v2516, %v2518
      %v2520 = vrot.slane %v2364, 7
      %v2521 = vsel %vm2007, %v2518, %v2520
      %v2522 = vrot.slane %v2365, 7
      %v2523 = vsel %vm2007, %v2520, %v2522
      %v2524 = vrot.slane %v2366, 7
      %v2525 = vsel %vm2007, %v2522, %v2524
      %v2526 = vrot.slane %v2367, 7
      %v2527 = vsel %vm2007, %v2524, %v2526
      %v2528 = vrot.slane %v2368, 7
      %v2529 = vsel %vm2007, %v2526, %v2528
      %v2530 = vrot.slane %v2369, 7
      %v2531 = vsel %vm2007, %v2528, %v2530
      %v2532 = vrot.slane %v2370, 7
      %v2533 = vsel %vm2007, %v2530, %v2532
      %v2534 = vrot.slane %v2371, 7
      %v2535 = vsel %vm2007, %v2532, %v2534
      %v2536 = vrot.slane %v2372, 7
      %v2537 = vsel %vm2007, %v2534, %v2536
      %v2538 = vrot.slane %v2373, 7
      %v2539 = vsel %vm2007, %v2536, %v2538
      %v2540 = vrot.slane %v2374, 7
      %v2541 = vsel %vm2007, %v2538, %v2540
      %v2542 = vrot.slane %v2375, 7
      %v2543 = vsel %vm2007, %v2540, %v2542
      %v2544 = vrot.slane %v2376, 7
      %v2545 = vsel %vm2007, %v2542, %v2544
      %v2546 = vrot.slane %v2377, 7
      %v2547 = vsel %vm2007, %v2544, %v2546
      %v2548 = vrot.slane %v2378, 7
      %v2549 = vsel %vm2007, %v2546, %v2548
      %v2550 = vrot.slane %v2379, 7
      %v2551 = vsel %vm2007, %v2548, %v2550
      %v2552 = vrot.slane %v2380, 7
      %v2553 = vsel %vm2007, %v2550, %v2552
      %v2554 = vrot.slane %v2381, 7
      %v2555 = vsel %vm2007, %v2552, %v2554
      %v2556 = vrot.slane %v2382, 7
      %v2557 = vsel %vm2007, %v2554, %v2556
      %v2558 = vrot.slane %v2383, 7
      %v2559 = vsel %vm2007, %v2556, %v2558
      %v2560 = vrot.slane %v2384, 7
      %v2561 = vsel %vm2007, %v2558, %v2560
      %v2562 = vrot.slane %v2385, 7
      %v2563 = vsel %vm2007, %v2560, %v2562
      %v2564 = vrot.slane %v2386, 7
      %v2565 = vsel %vm2007, %v2562, %v2564
      %v2566 = vrot.slane %v2387, 7
      %v2567 = vsel %vm2007, %v2564, %v2566
      %v2568 = vrot.slane %v2388, 7
      %v2569 = vsel %vm2007, %v2566, %v2568
      %v2570 = vrot.slane %v2389, 7
      %v2571 = vsel %vm2007, %v2568, %v2570
      %v2572 = vrot.slane %v2390, 7
      %v2573 = vsel %vm2007, %v2570, %v2572
      %v2574 = vrot.slane %v2391, 7
      %v2575 = vsel %vm2007, %v2572, %v2574
      %v2576 = vrot.slane %v2392, 7
      %v2577 = vsel %vm2007, %v2574, %v2576
      %v2578 = vrot.slane %v2393, 7
      %v2579 = vsel %vm2007, %v2576, %v2578
      %v2580 = vrot.slane %v2394, 7
      %v2581 = vsel %vm2007, %v2578, %v2580
      %v2582 = vrot.slane %v2395, 7
      %v2583 = vsel %vm2007, %v2580, %v2582
      %v2584 = vrot.slane %v2396, 7
      %v2585 = vsel %vm2007, %v2582, %v2584
      %v2586 = vrot.slane %v2397, 7
      %v2587 = vsel %vm2007, %v2584, %v2586
      %v2588 = vrot.slane %v2398, 7
      %v2589 = vsel %vm2007, %v2586, %v2588
      %v2590 = vrot.slane %v2399, 7
      %v2591 = vsel %vm2007, %v2588, %v2590
      %v2592 = vrot.slane %v2400, 7
      %v2593 = vsel %vm2007, %v2590, %v2592
      %v2594 = vrot.slane %v2401, 7
      %v2595 = vsel %vm2007, %v2592, %v2594
      %v2660 = vadd.f32 %v2469, %v2471
      %v2661 = vadd.f32 %v2660, %v2473
      %v2662 = vadd.f32 %v2661, %v2475
      %v2663 = vadd.f32 %v2662, %v2477
      %v2664 = vadd.f32 %v2663, %v2479
      %v2665 = vadd.f32 %v2664, %v2481
      %v2666 = vadd.f32 %v2665, %v2483
      %v2667 = vadd.f32 %v2666, %v2485
      %v2668 = vadd.f32 %v2667, %v2487
      %v2669 = vadd.f32 %v2668, %v2489
      %v2670 = vadd.f32 %v2669, %v2491
      %v2671 = vadd.f32 %v2670, %v2493
      %v2672 = vadd.f32 %v2671, %v2495
      %v2673 = vadd.f32 %v2672, %v2497
      %v2674 = vadd.f32 %v2673, %v2499
      %v2675 = vadd.f32 %v2674, %v2501
      %v2676 = vadd.f32 %v2675, %v2503
      %v2677 = vadd.f32 %v2676, %v2505
      %v2678 = vadd.f32 %v2677, %v2507
      %v2679 = vadd.f32 %v2678, %v2509
      %v2680 = vadd.f32 %v2679, %v2511
      %v2681 = vadd.f32 %v2680, %v2513
      %v2682 = vadd.f32 %v2681, %v2515
      %v2683 = vadd.f32 %v2682, %v2517
      %v2684 = vadd.f32 %v2683, %v2519
      %v2685 = vadd.f32 %v2684, %v2521
      %v2686 = vadd.f32 %v2685, %v2523
      %v2687 = vadd.f32 %v2686, %v2525
      %v2688 = vadd.f32 %v2687, %v2527
      %v2689 = vadd.f32 %v2688, %v2529
      %v2690 = vadd.f32 %v2689, %v2531
      %v2691 = vadd.f32 %v2690, %v2533
      %v2692 = vadd.f32 %v2691, %v2535
      %v2693 = vadd.f32 %v2692, %v2537
      %v2694 = vadd.f32 %v2693, %v2539
      %v2695 = vadd.f32 %v2694, %v2541
      %v2696 = vadd.f32 %v2695, %v2543
      %v2697 = vadd.f32 %v2696, %v2545
      %v2698 = vadd.f32 %v2697, %v2547
      %v2699 = vadd.f32 %v2698, %v2549
      %v2700 = vadd.f32 %v2699, %v2551
      %v2701 = vadd.f32 %v2700, %v2553
      %v2702 = vadd.f32 %v2701, %v2555
      %v2703 = vadd.f32 %v2702, %v2557
      %v2704 = vadd.f32 %v2703, %v2559
      %v2705 = vadd.f32 %v2704, %v2561
      %v2706 = vadd.f32 %v2705, %v2563
      %v2707 = vadd.f32 %v2706, %v2565
      %v2708 = vadd.f32 %v2707, %v2567
      %v2709 = vadd.f32 %v2708, %v2569
      %v2710 = vadd.f32 %v2709, %v2571
      %v2711 = vadd.f32 %v2710, %v2573
      %v2712 = vadd.f32 %v2711, %v2575
      %v2713 = vadd.f32 %v2712, %v2577
      %v2714 = vadd.f32 %v2713, %v2579
      %v2715 = vadd.f32 %v2714, %v2581
      %v2716 = vadd.f32 %v2715, %v2583
      %v2717 = vadd.f32 %v2716, %v2585
      %v2718 = vadd.f32 %v2717, %v2587
      %v2719 = vadd.f32 %v2718, %v2589
      %v2720 = vadd.f32 %v2719, %v2591
      %v2721 = vadd.f32 %v2720, %v2593
      %v2722 = vadd.f32 %v2721, %v2595
      %v2723 = vrot.slane %v2722, 4
      %v2724 = vadd.f32 %v2722, %v2723
      %v2725 = vrot.slane %v2724, 2
      %v2726 = vadd.f32 %v2724, %v2725
      %v2727 = vrot.slane %v2726, 1
      %v2728 = vadd.f32 %v2726, %v2727
      %s2729 = sadd.f32 %s1941, 512.0
      %v2730 = vld [vmem:[%s506] sm:$0x1]
      %v2731 = vsub.f32 %v2271, %v2730
      %v2732 = vstv %s2729
      %v2733 = vrcp.pop %v2732
      %s2734 = vtos %v2733
      %s2735 = smul.f32 512.0, %s2734
      %v2736 = vstv %s2735
      %v2737 = vmul.f32 %v2731, %v2736
      %v2738 = vadd.f32 %v2730, %v2737
      %2739 = vst [vmem:[%s506] sm:$0x1] %v2738
      %v2740 = vld [vmem:[%s509] sm:$0x1]
      %v2741 = vmul.f32 %v2731, %v2731
      %s2742 = smul.f32 %s1941, 512.0
      %v2743 = vstv %s2729
      %v2744 = vrcp.pop %v2743
      %s2745 = vtos %v2744
      %s2746 = smul.f32 %s2742, %s2745
      %v2747 = vstv %s2746
      %v2748 = vmul.f32 %v2741, %v2747
      %v2749 = vadd.f32 %v2728, %v2748
      %v2750 = vadd.f32 %v2740, %v2749
      %2751 = vst [vmem:[%s509] sm:$0x1] %v2750
      %s2752 = sadd.s32 %s28, %s29
      %s2753 = smul.u32 64, %s2752
      %p2754 = scmp.lt.s32.totalorder %s2753, 127
      %s2755 = scalar_select %p2754, %s2753, 127
      %s2756 = smul.addr %s2755, 8
      %s2757 = scalar_lea.vmem %s8, %s2756
      %p2758 = scmp.lt.s32.totalorder %s28, 1
      %s2759 = scalar_select %p2758, %s28, 1
      %s2760 = scalar_lea.vmem %s9, %s2759
      %p2761 = scmp.lt.s32.totalorder %s28, 1
      %s2762 = scalar_select %p2761, %s28, 1
      %s2763 = scalar_lea.vmem %s10, %s2762
      // Predicated region
      $region57: #{stcn_block.4} parent=51 // pred_check
        %p2764 = pneg %p261
      $region58: #{stcn_block.4} parent=51 // pred_check_branch
        %2766 = sbr.rel (%p2764) target = $region60
      $region59: #{stcn_block.4} parent=51 // pred_region
        %s2767 = sadd.s32 %s28, %s29
        %s2768 = smul.u32 64, %s2767
      $region60: #{stcn_block.4} parent=51 // pred_fallthru
        _
      // Predicated region
      $region61: #{stcn_block.4} parent=51 // pred_check
        %p2769 = pneg %p287
      $region62: #{stcn_block.4} parent=51 // pred_check_branch
        %2771 = sbr.rel (%p2769) target = $region64
      $region63: #{stcn_block.4} parent=51 // pred_region
        _
      $region64: #{stcn_block.4} parent=51 // pred_fallthru
        _
      // Predicated region
      $region65: #{stcn_block.4} parent=51 // pred_check
        %p2772 = pneg %p313
      $region66: #{stcn_block.4} parent=51 // pred_check_branch
        %2774 = sbr.rel (%p2772) target = $region68
      $region67: #{stcn_block.4} parent=51 // pred_region
        _
      $region68: #{stcn_block.4} parent=51 // pred_fallthru
        _
    $region52: #{stcn_block.4} parent=5 // pred_fallthru
      _
    %p2775 = scmp.le.s32.totalorder 2, %s19
    // Predicated region
    $region69: #{stcn_block.4} parent=5 // pred_check
      %p2776 = pneg %p2775
    $region70: #{stcn_block.4} parent=5 // pred_check_branch
      %2778 = sbr.rel (%p2776) target = $region72
    $region71: #{stcn_block.4} parent=5 // pred_region
      %s2779 = ssub.s32 %s19, 2
      // Predicated region
      $region73: #{stcn_block.4} parent=71 // pred_check
        %p2780 = pneg %p267
      $region74: #{stcn_block.4} parent=71 // pred_check_branch
        %2782 = sbr.rel (%p2780) target = $region76
      $region75: #{stcn_block.4} parent=71 // pred_region
        %s2783 = sadd.s32 %s30, %s31
        %s2784 = smul.u32 64, %s2783
        %p2785 = scmp.lt.s32.totalorder %s2784, 127
        %s2786 = scalar_select %p2785, %s2784, 127
        %s2787 = smul.addr %s2786, 8
        %s2788 = scalar_lea.vmem %s8, %s2787
      $region76: #{stcn_block.4} parent=71 // pred_fallthru
        _
      // Predicated region
      $region77: #{stcn_block.4} parent=71 // pred_check
        %p2789 = pneg %p293
      $region78: #{stcn_block.4} parent=71 // pred_check_branch
        %2791 = sbr.rel (%p2789) target = $region80
      $region79: #{stcn_block.4} parent=71 // pred_region
        %p2792 = scmp.lt.s32.totalorder %s30, 1
        %s2793 = scalar_select %p2792, %s30, 1
        %s2794 = scalar_lea.vmem %s9, %s2793
      $region80: #{stcn_block.4} parent=71 // pred_fallthru
        _
      // Predicated region
      $region81: #{stcn_block.4} parent=71 // pred_check
        %p2795 = pneg %p319
      $region82: #{stcn_block.4} parent=71 // pred_check_branch
        %2797 = sbr.rel (%p2795) target = $region84
      $region83: #{stcn_block.4} parent=71 // pred_region
        %p2798 = scmp.lt.s32.totalorder %s30, 1
        %s2799 = scalar_select %p2798, %s30, 1
        %s2800 = scalar_lea.vmem %s10, %s2799
      $region84: #{stcn_block.4} parent=71 // pred_fallthru
        _
    $region72: #{stcn_block.4} parent=5 // pred_fallthru
      _
  $region6: #{stcn_block.4} parent=0 // loop_footer
    %s23 = sadd.s32 1, %s19
  $region7: #{stcn_block.4} parent=0 // loop_footer_branch
    %18 = sbr.rel target = $region3
  $region8: #{stcn_block.4} parent=0 // loop_exit
    _

</llo_original>
